<compile_context>
chip_gen: v7x
topology: tpu7x:2x2x1
jax: 0.10.0
libtpu: 0.0.40
codegen_flags: <defaults>
</compile_context>

<pallas_src>
import jax
import jax.numpy as jnp
from jax import lax
from jax.experimental import pallas as pl
from jax.experimental.pallas import tpu as pltpu


# Off-center tap positions of a 3x3 kernel, in a fixed order shared by the
# wrapper (weight packing) and the kernel (patch/weight pairing).
_OFF_TAPS = tuple((ky, kx) for ky in range(3) for kx in range(3) if (ky, kx) != (1, 1))


def _round_up(v, m):
    return ((v + m - 1) // m) * m


def _make_aspp_kernel(H, W, W_pad, TH, CC, Cout, dilations,
                      PADR, PADWL, Hp, Wp, slice_weights):
    """Build the kernel body for fixed static sizes."""
    F4 = 4 * Cout          # fused width: branches 2,3,4,5
    M = TH * W_pad         # flattened rows per tile (W_pad is a multiple of 8)

    def kernel(x_ref, wc_ref, woff_ref, f1_ref, sb_ref, o_ref, xs_ref, acc_ref):
        r = pl.program_id(1)
        kc = pl.program_id(2)
        last_kc = pl.num_programs(2) - 1
        row0 = r * TH

        # ---- init: zero ONLY the pad frame of the scratch (the interior is fully
        # overwritten by the staging copy below).  Done at every (n, r) start so it
        # stays correct under megacore sharding of the parallel grid axes.
        @pl.when(kc == 0)
        def _():
            z = lambda s: jnp.zeros(s, xs_ref.dtype)
            xs_ref[0:PADR, :, :] = z((PADR, Wp, CC))                            # top
            xs_ref[PADR + H:Hp, :, :] = z((Hp - PADR - H, Wp, CC))              # bottom
            xs_ref[PADR:PADR + H, 0:PADWL, :] = z((H, PADWL, CC))               # left
            xs_ref[PADR:PADR + H, PADWL + W:Wp, :] = z((H, Wp - PADWL - W, CC))  # right

        # ---- stage this (H, W, CC) channel chunk into the zero-framed interior.
        xs_ref[PADR:PADR + H, PADWL:PADWL + W, :] = x_ref[0]

        # ---- weight chunk for this kc step (VMEM-resident weights are sliced
        # in-kernel; chunked weights already arrive as the right block).
        if slice_weights:
            ck0 = pl.multiple_of(kc * CC, CC)
            wc_blk = wc_ref[pl.ds(ck0, CC), :]

            def woff_blk(b, t):
                return woff_ref[b, t, pl.ds(ck0, CC), :]
        else:
            wc_blk = wc_ref[...]

            def woff_blk(b, t):
                return woff_ref[b, t]

        def slab(dy, dx):
            # W_pad % 8 == 0, so the (TH, W_pad, CC) -> (M, CC) flatten is a pure
            # layout-preserving view (no relayout copy per tap).
            rows = xs_ref[pl.ds(PADR + row0 + dy, TH),
                          PADWL + dx:PADWL + dx + W_pad, :]
            return rows.reshape(M, CC)

        # ---- center tap: one wide MXU dot fused across branches 2,3,4,5.
        center = jnp.dot(slab(0, 0), wc_blk, preferred_element_type=jnp.float32)

        # ---- off-center taps of the dilated 3x3 branches, kept in registers so the
        # accumulator sees at most one RMW per contiguous branch group.
        parts = []
        for b, d in enumerate(dilations):
            part = None
            for t, (ky, kx) in enumerate(_OFF_TAPS):
                dy, dx = d * (ky - 1), d * (kx - 1)
                if abs(dy) >= H or abs(dx) >= W:
                    continue                      # tap reads only zero padding
                v = jnp.dot(slab(dy, dx), woff_blk(b, t),
                            preferred_element_type=jnp.float32)
                part = v if part is None else part + v
            parts.append(part)

        @pl.when(kc == 0)
        def _():
            acc_ref[...] = center

        @pl.when(kc != 0)
        def _():
            acc_ref[...] += center

        # one RMW per contiguous run of branches that actually have in-bounds taps
        b = 0
        nb = len(parts)
        while b < nb:
            if parts[b] is None:
                b += 1
                continue
            e = b
            while e + 1 < nb and parts[e + 1] is not None:
                e += 1
            blk = parts[b] if e == b else jnp.concatenate(parts[b:e + 1], axis=-1)
            acc_ref[:, (1 + b) * Cout:(2 + e) * Cout] += blk
            b = e + 1

        # ---- finalize: folded BN + ReLU, direct per-branch stores (no concat).
        @pl.when(kc == last_kc)
        def _():
            sb = sb_ref[...]                                       # (2, 4*Cout) f32
            y = jnp.maximum(acc_ref[...] * sb[0:1, :] + sb[1:2, :], 0.0)
            y = y.reshape(TH, W_pad, F4)
            if W_pad != W:
                y = y[:, :W, :]
            o_ref[0, :, :, Cout:] = y.astype(o_ref.dtype)
            # branch 1: precomputed global-pool vector, broadcast over the tile
            f1 = jnp.broadcast_to(f1_ref[...], (TH, W, Cout))
            o_ref[0, :, :, :Cout] = f1.astype(o_ref.dtype)

    return kernel


def aspp_forward(x_nchw, params, dilations=(12, 24, 36), *, tile_h=None, tile_c=None,
                 weights_resident=None, out_dtype=jnp.float32, return_nhwc=False):
    """ASPP forward. x_nchw: (N, Cin, H, W) float32. Returns (N, 5*Cout, H, W)."""
    w1, w2, w3, w4, w5, scale, bias = params
    N, Cin, H, W = x_nchw.shape
    Cout = w1.shape[1]
    pad = max(dilations)

    # Scratch geometry: 8-aligned row halo; column halo wide enough that every
    # W_pad-wide shifted slab (dx up to +pad) stays inside the frame.
    PADR = _round_up(pad, 8)
    W_pad = _round_up(W, 8)
    PADWL = _round_up(pad, 8)
    PADWR = _round_up(pad + (W_pad - W), 8)
    Hp = H + 2 * PADR
    Wp = W + PADWL + PADWR

    # ---- VMEM budget: 75% of capacity (96 MiB on v5e/v6e, ~48 MiB on v7x).
    try:
        cap = getattr(pltpu.get_tpu_info(), "vmem_capacity_bytes", None) or (128 << 20)
    except Exception:
        cap = 128 << 20
    budget = int(cap) * 3 // 4

    out_isz = jnp.dtype(out_dtype).itemsize

    def vmem_need(th, cc, resident):
        wci = Cin if resident else cc
        return (2 * H * W * cc * 2                       # x block (2 buffers, bf16)
                + 2 * (28 * wci * Cout) * 2              # wc + woff (2 buffers, bf16)
                + 2 * th * W * 5 * Cout * out_isz        # output block (2 buffers)
                + Hp * Wp * cc * 2                       # zero-framed scratch (bf16)
                + th * W_pad * 4 * Cout * 4              # f32 accumulator
                + 4 * 9 * Cout)                          # f1 + sb (tiny)

    # ---- tile / residency selection ------------------------------------------------
    if tile_c is not None and Cin % tile_c == 0 and (tile_c == Cin or tile_c % 128 == 0):
        cc_cands = [tile_c]
    else:
        cc_cands = [Cin] + [c for c in (512, 384, 256, 128) if c < Cin and Cin % c == 0]

    if tile_h is not None and H % tile_h == 0:
        th_cands = [tile_h]
    else:
        divs = [t for t in range(H, 0, -1) if H % t == 0]
        th_cands = ([H]
                    + [t for t in divs if t != H and t % 8 == 0]
                    + [t for t in divs if t != H and t % 8 != 0])
        if N == 1 and len(th_cands) > 1:
            # keep >= 2 units of parallel grid work for 2-TensorCore chips (v7x)
            th_cands = th_cands[1:] + th_cands[:1]

    res_cands = (True, False) if weights_resident is None else (bool(weights_resident),)

    chosen = None
    for th in th_cands:
        for cc in cc_cands:
            for res in res_cands:
                if vmem_need(th, cc, res) <= budget:
                    chosen = (th, cc, res)
                    break
            if chosen:
                break
        if chosen:
            break
    if chosen is None:                      # nothing fits: smallest config, best effort
        chosen = (th_cands[-1], cc_cands[-1], res_cands[-1])
    TH, CC, RESIDENT = chosen
    R, KC = H // TH, Cin // CC
    slice_weights = RESIDENT and KC > 1

    # ---- host-side prep (single pass; no intermediate f32 NHWC copy) ---------------
    x_bf = jnp.transpose(x_nchw, (0, 2, 3, 1)).astype(jnp.bfloat16)       # NHWC bf16

    # Branch 1 hoisted out of the kernel: global avg pool -> 1x1 conv -> BN -> ReLU.
    # The align_corners bilinear upsample of a 1x1 map is a pure broadcast.
    pooled = jnp.mean(x_nchw.astype(jnp.float32), axis=(2, 3))            # (N, Cin)
    f1 = jnp.maximum(jnp.dot(pooled, w1) * scale[0] + bias[0], 0.0)
    f1 = f1[:, None, :].astype(jnp.float32)                               # (N, 1, Cout)

    # Fused center-tap weights: branches 2..5 share the un-shifted patch.
    wc = jnp.concatenate([w2, w3[1, 1], w4[1, 1], w5[1, 1]],
                         axis=-1).astype(jnp.bfloat16)                    # (Cin, 4*Cout)

    def _off(w):  # (3,3,Cin,Cout) -> (8,Cin,Cout): contiguous per-tap weight tiles
        return jnp.stack([w[ky, kx] for ky, kx in _OFF_TAPS], axis=0)

    woff = jnp.stack([_off(w3), _off(w4), _off(w5)],
                     axis=0).astype(jnp.bfloat16)                         # (3,8,Cin,Cout)

    # Folded BN scale/bias for branches 2..5 (branch 1 handled above).
    sb = jnp.stack([jnp.concatenate([scale[1], scale[2], scale[3], scale[4]]),
                    jnp.concatenate([bias[1], bias[2], bias[3], bias[4]])]
                   ).astype(jnp.float32)                                  # (2, 4*Cout)

    kernel = _make_aspp_kernel(H, W, W_pad, TH, CC, Cout, dilations,
                               PADR, PADWL, Hp, Wp, slice_weights)

    if RESIDENT:
        # constant index maps -> weights DMA'd once and kept VMEM-resident
        wc_spec = pl.BlockSpec((Cin, 4 * Cout), lambda n, r, kc: (0, 0))
        woff_spec = pl.BlockSpec((3, 8, Cin, Cout), lambda n, r, kc: (0, 0, 0, 0))
    else:
        wc_spec = pl.BlockSpec((CC, 4 * Cout), lambda n, r, kc: (kc, 0))
        woff_spec = pl.BlockSpec((3, 8, CC, Cout), lambda n, r, kc: (0, 0, kc, 0))

    need = vmem_need(TH, CC, RESIDENT)
    vmem_limit = int(min(budget, max(need * 3 // 2, 32 << 20)))

    grid_spec = pltpu.PrefetchScalarGridSpec(
        num_scalar_prefetch=0,
        grid=(N, R, KC),
        in_specs=[
            pl.BlockSpec((1, H, W, CC), lambda n, r, kc: (n, 0, 0, kc)),    # x
            wc_spec,                                                        # wc
            woff_spec,                                                      # woff
            pl.BlockSpec((1, 1, Cout), lambda n, r, kc: (n, 0, 0)),         # f1
            pl.BlockSpec((2, 4 * Cout), lambda n, r, kc: (0, 0)),           # sb
        ],
        out_specs=pl.BlockSpec((1, TH, W, 5 * Cout), lambda n, r, kc: (n, r, 0, 0)),
        scratch_shapes=[
            pltpu.VMEM((Hp, Wp, CC), jnp.bfloat16),           # zero-framed input stage
            pltpu.VMEM((TH * W_pad, 4 * Cout), jnp.float32),  # branch 2..5 accumulator
        ],
    )

    out = pl.pallas_call(
        kernel,
        out_shape=jax.ShapeDtypeStruct((N, H, W, 5 * Cout), out_dtype),
        grid_spec=grid_spec,
        compiler_params=pltpu.CompilerParams(
            dimension_semantics=("parallel", "parallel", "arbitrary"),
            vmem_limit_bytes=vmem_limit),
    )(x_bf, wc, woff, f1, sb)

    if return_nhwc:
        return out
    return jnp.transpose(out, (0, 3, 1, 2))                  # NCHW to match PyTorch


def aspp_reference(x_nchw, params, dilations):
    """Pure-JAX (f32) reference with identical semantics, for verification."""
    w1, w2, w3, w4, w5, scale, bias = params
    x = jnp.transpose(x_nchw, (0, 2, 3, 1)).astype(jnp.float32)
    N, H, W, Cin = x.shape
    Cout = w1.shape[1]

    def bn_relu(y, i):
        return jnp.maximum(y * scale[i] + bias[i], 0.0)

    pooled = jnp.mean(x, axis=(1, 2), keepdims=True)
    f1 = jnp.einsum('nhwc,co->nhwo', pooled, w1)
    f1 = jnp.broadcast_to(bn_relu(f1, 0), (N, H, W, Cout))
    f2 = bn_relu(jnp.einsum('nhwc,co->nhwo', x, w2), 1)

    def dil(w, d, i):
        y = lax.conv_general_dilated(
            x, w, window_strides=(1, 1),
            padding=[(d, d), (d, d)], rhs_dilation=(d, d),
            dimension_numbers=('NHWC', 'HWIO', 'NHWC'))
        return bn_relu(y, i)

    f3 = dil(w3, dilations[0], 2)
    f4 = dil(w4, dilations[1], 3)
    f5 = dil(w5, dilations[2], 4)
    out = jnp.concatenate([f1, f2, f3, f4, f5], axis=-1)
    return jnp.transpose(out, (0, 3, 1, 2))


if __name__ == "__main__":
    dilations = (12, 24, 36)

    def make_inputs(key, N, Cin, H, W, Cout):
        keys = jax.random.split(key, 10)
        w1 = 0.1 * jax.random.normal(keys[0], (Cin, Cout), jnp.float32)
        w2 = 0.1 * jax.random.normal(keys[1], (Cin, Cout), jnp.float32)
        w3 = 0.1 * jax.random.normal(keys[2], (3, 3, Cin, Cout), jnp.float32)
        w4 = 0.1 * jax.random.normal(keys[3], (3, 3, Cin, Cout), jnp.float32)
        w5 = 0.1 * jax.random.normal(keys[4], (3, 3, Cin, Cout), jnp.float32)
        # Inference-mode BatchNorm params, folded to per-branch scale/bias.
        gamma = 1.0 + 0.1 * jax.random.normal(keys[5], (5, Cout), jnp.float32)
        beta = 0.1 * jax.random.normal(keys[6], (5, Cout), jnp.float32)
        run_mean = 0.1 * jax.random.normal(keys[7], (5, Cout), jnp.float32)
        run_var = jnp.abs(jax.random.normal(keys[8], (5, Cout), jnp.float32)) + 0.5
        eps = 1e-5
        scale = gamma / jnp.sqrt(run_var + eps)
        bias = beta - run_mean * scale
        x = jax.random.normal(keys[9], (N, Cin, H, W), jnp.float32)
        return x, (w1, w2, w3, w4, w5, scale, bias)

    key = jax.random.PRNGKey(0)
    k1, k2 = jax.random.split(key)

    # Case A: tiny Cin; default tiling (TH=H, resident weights) and explicit row tiling.
    x, params = make_inputs(k1, 2, 4, 16, 16, 32)
    ref = aspp_reference(x, params, dilations)
    for kw in ({}, {"tile_h": 8}):
        out = jax.block_until_ready(aspp_forward(x, params, dilations, **kw))
        assert out.shape == ref.shape, (out.shape, ref.shape)
        err = float(jnp.max(jnp.abs(out - ref)))
        assert jnp.allclose(out, ref, atol=2e-2, rtol=2e-2), (kw, err)

    # Case B: Cin split into two channel chunks; resident-sliced and kc-chunked weights.
    x, params = make_inputs(k2, 2, 256, 16, 16, 32)
    ref = aspp_reference(x, params, dilations)
    for kw in ({"tile_c": 128}, {"tile_c": 128, "weights_resident": False}):
        out = jax.block_until_ready(aspp_forward(x, params, dilations, **kw))
        assert out.shape == ref.shape, (out.shape, ref.shape)
        err = float(jnp.max(jnp.abs(out - ref)))
        assert jnp.allclose(out, ref, atol=8e-2, rtol=4e-2), (kw, err)

    print("KERNEL_OK")
</pallas_src>

<mosaic_0001>
module attributes {stable_mosaic.version = 11 : i64} {
  func.func @kernel(%arg0: i32, %arg1: i32, %arg2: i32, %arg3: memref<1x16x16x4xbf16, #tpu.memory_space<vmem>>, %arg4: memref<4x128xbf16, #tpu.memory_space<vmem>>, %arg5: memref<3x8x4x32xbf16, #tpu.memory_space<vmem>>, %arg6: memref<1x1x32xf32, #tpu.memory_space<vmem>>, %arg7: memref<2x128xf32, #tpu.memory_space<vmem>>, %arg8: memref<1x16x16x160xf32, #tpu.memory_space<vmem>>, %arg9: memref<96x96x4xbf16, #tpu.memory_space<vmem>>, %arg10: memref<256x128xf32, #tpu.memory_space<vmem>>) attributes {dimension_semantics = [#tpu.dimension_semantics<parallel>, #tpu.dimension_semantics<parallel>, #tpu.dimension_semantics<arbitrary>], iteration_bounds = array<i64: 2, 1, 1>, scalar_prefetch = 0 : i64, scratch_operands = 2 : i64, tpu.core_type = #tpu.core_type<tc>, window_params = [{transform_indices = @transform_0, window_bounds = array<i64: 1, 16, 16, 4>}, {pipeline_mode = #tpu.pipeline_mode<synchronous>, transform_indices = @transform_1, window_bounds = array<i64: 4, 128>}, {pipeline_mode = #tpu.pipeline_mode<synchronous>, transform_indices = @transform_2, window_bounds = array<i64: 3, 8, 4, 32>}, {transform_indices = @transform_3, window_bounds = array<i64: 1, 1, 32>}, {pipeline_mode = #tpu.pipeline_mode<synchronous>, transform_indices = @transform_4, window_bounds = array<i64: 2, 128>}, {transform_indices = @transform_5, window_bounds = array<i64: 1, 16, 16, 160>}]} {
    %c16_i32 = arith.constant 16 : i32
    %0 = arith.muli %arg1, %c16_i32 : i32
    %c0_i32 = arith.constant 0 : i32
    %1 = arith.cmpi eq, %arg2, %c0_i32 : i32
    %2 = arith.extui %1 : i1 to i32
    %c0_i32_0 = arith.constant 0 : i32
    %3 = arith.cmpi ne, %2, %c0_i32_0 : i32
    scf.if %3 {
      %cst_81 = arith.constant 0.000000e+00 : bf16
      %97 = vector.broadcast %cst_81 : bf16 to vector<40x96x4xbf16>
      %c0_82 = arith.constant 0 : index
      %c0_83 = arith.constant 0 : index
      %c0_84 = arith.constant 0 : index
      %98 = vector.load %arg9[%c0_82, %c0_83, %c0_84] : memref<96x96x4xbf16, #tpu.memory_space<vmem>>, vector<40x96x4xbf16>
      tpu.vector_store %arg9[%c0_82, %c0_83, %c0_84], %97 {strides = array<i32>} : memref<96x96x4xbf16, #tpu.memory_space<vmem>>, vector<40x96x4xbf16>,
      %cst_85 = arith.constant 0.000000e+00 : bf16
      %99 = vector.broadcast %cst_85 : bf16 to vector<40x96x4xbf16>
      %c56 = arith.constant 56 : index
      %c0_86 = arith.constant 0 : index
      %c0_87 = arith.constant 0 : index
      %100 = vector.load %arg9[%c56, %c0_86, %c0_87] : memref<96x96x4xbf16, #tpu.memory_space<vmem>>, vector<40x96x4xbf16>
      tpu.vector_store %arg9[%c56, %c0_86, %c0_87], %99 {strides = array<i32>} : memref<96x96x4xbf16, #tpu.memory_space<vmem>>, vector<40x96x4xbf16>,
      %cst_88 = arith.constant 0.000000e+00 : bf16
      %101 = vector.broadcast %cst_88 : bf16 to vector<16x40x4xbf16>
      %c40_89 = arith.constant 40 : index
      %c0_90 = arith.constant 0 : index
      %c0_91 = arith.constant 0 : index
      %102 = vector.load %arg9[%c40_89, %c0_90, %c0_91] : memref<96x96x4xbf16, #tpu.memory_space<vmem>>, vector<16x40x4xbf16>
      tpu.vector_store %arg9[%c40_89, %c0_90, %c0_91], %101 {strides = array<i32>} : memref<96x96x4xbf16, #tpu.memory_space<vmem>>, vector<16x40x4xbf16>,
      %cst_92 = arith.constant 0.000000e+00 : bf16
      %103 = vector.broadcast %cst_92 : bf16 to vector<16x40x4xbf16>
      %c40_93 = arith.constant 40 : index
      %c56_94 = arith.constant 56 : index
      %c0_95 = arith.constant 0 : index
      %104 = vector.load %arg9[%c40_93, %c56_94, %c0_95] : memref<96x96x4xbf16, #tpu.memory_space<vmem>>, vector<16x40x4xbf16>
      tpu.vector_store %arg9[%c40_93, %c56_94, %c0_95], %103 {strides = array<i32>} : memref<96x96x4xbf16, #tpu.memory_space<vmem>>, vector<16x40x4xbf16>,
    } else {
    }
    %c0 = arith.constant 0 : index
    %c0_1 = arith.constant 0 : index
    %c0_2 = arith.constant 0 : index
    %c0_3 = arith.constant 0 : index
    %4 = vector.load %arg3[%c0, %c0_1, %c0_2, %c0_3] : memref<1x16x16x4xbf16, #tpu.memory_space<vmem>>, vector<1x16x16x4xbf16>
    %5 = vector.shape_cast %4 : vector<1x16x16x4xbf16> to vector<16x16x4xbf16>
    %c40 = arith.constant 40 : index
    %c40_4 = arith.constant 40 : index
    %c0_5 = arith.constant 0 : index
    %6 = vector.load %arg9[%c40, %c40_4, %c0_5] : memref<96x96x4xbf16, #tpu.memory_space<vmem>>, vector<16x16x4xbf16>
    tpu.vector_store %arg9[%c40, %c40_4, %c0_5], %5 {strides = array<i32>} : memref<96x96x4xbf16, #tpu.memory_space<vmem>>, vector<16x16x4xbf16>,
    %c0_6 = arith.constant 0 : index
    %c0_7 = arith.constant 0 : index
    %7 = vector.load %arg4[%c0_6, %c0_7] : memref<4x128xbf16, #tpu.memory_space<vmem>>, vector<4x128xbf16>
    %c40_i32 = arith.constant 40 : i32
    %8 = arith.addi %c40_i32, %0 : i32
    %c0_i32_8 = arith.constant 0 : i32
    %9 = arith.addi %8, %c0_i32_8 : i32
    %10 = arith.index_cast %9 : i32 to index
    %c40_9 = arith.constant 40 : index
    %c0_10 = arith.constant 0 : index
    %11 = vector.load %arg9[%10, %c40_9, %c0_10] : memref<96x96x4xbf16, #tpu.memory_space<vmem>>, vector<16x16x4xbf16>
    %12 = vector.shape_cast %11 : vector<16x16x4xbf16> to vector<256x4xbf16>
    %cst = arith.constant dense<0.000000e+00> : vector<256x128xf32>
    %13 = tpu.matmul %12, %7, %cst {dimension_numbers = #tpu.dot_dimension_numbers<[1], [0], [0], [1], [0, 0, 1, 1], [], []>} : vector<256x4xbf16>, vector<4x128xbf16>, vector<256x128xf32> -> vector<256x128xf32>
    %c40_i32_11 = arith.constant 40 : i32
    %14 = arith.addi %c40_i32_11, %0 : i32
    %c-12_i32 = arith.constant -12 : i32
    %15 = arith.addi %14, %c-12_i32 : i32
    %16 = arith.index_cast %15 : i32 to index
    %c28 = arith.constant 28 : index
    %c0_12 = arith.constant 0 : index
    %17 = vector.load %arg9[%16, %c28, %c0_12] : memref<96x96x4xbf16, #tpu.memory_space<vmem>>, vector<16x16x4xbf16>
    %18 = vector.shape_cast %17 : vector<16x16x4xbf16> to vector<256x4xbf16>
    %c0_13 = arith.constant 0 : index
    %c0_14 = arith.constant 0 : index
    %c0_15 = arith.constant 0 : index
    %c0_16 = arith.constant 0 : index
    %19 = vector.load %arg5[%c0_13, %c0_14, %c0_15, %c0_16] : memref<3x8x4x32xbf16, #tpu.memory_space<vmem>>, vector<1x1x4x32xbf16>
    %20 = vector.shape_cast %19 : vector<1x1x4x32xbf16> to vector<4x32xbf16>
    %cst_17 = arith.constant dense<0.000000e+00> : vector<256x32xf32>
    %21 = tpu.matmul %18, %20, %cst_17 {dimension_numbers = #tpu.dot_dimension_numbers<[1], [0], [0], [1], [0, 0, 1, 1], [], []>} : vector<256x4xbf16>, vector<4x32xbf16>, vector<256x32xf32> -> vector<256x32xf32>
    %c40_i32_18 = arith.constant 40 : i32
    %22 = arith.addi %c40_i32_18, %0 : i32
    %c-12_i32_19 = arith.constant -12 : i32
    %23 = arith.addi %22, %c-12_i32_19 : i32
    %24 = arith.index_cast %23 : i32 to index
    %c40_20 = arith.constant 40 : index
    %c0_21 = arith.constant 0 : index
    %25 = vector.load %arg9[%24, %c40_20, %c0_21] : memref<96x96x4xbf16, #tpu.memory_space<vmem>>, vector<16x16x4xbf16>
    %26 = vector.shape_cast %25 : vector<16x16x4xbf16> to vector<256x4xbf16>
    %c0_22 = arith.constant 0 : index
    %c1 = arith.constant 1 : index
    %c0_23 = arith.constant 0 : index
    %c0_24 = arith.constant 0 : index
    %27 = vector.load %arg5[%c0_22, %c1, %c0_23, %c0_24] : memref<3x8x4x32xbf16, #tpu.memory_space<vmem>>, vector<1x1x4x32xbf16>
    %28 = vector.shape_cast %27 : vector<1x1x4x32xbf16> to vector<4x32xbf16>
    %cst_25 = arith.constant dense<0.000000e+00> : vector<256x32xf32>
    %29 = tpu.matmul %26, %28, %cst_25 {dimension_numbers = #tpu.dot_dimension_numbers<[1], [0], [0], [1], [0, 0, 1, 1], [], []>} : vector<256x4xbf16>, vector<4x32xbf16>, vector<256x32xf32> -> vector<256x32xf32>
    %30 = arith.addf %21, %29 : vector<256x32xf32>
    %c40_i32_26 = arith.constant 40 : i32
    %31 = arith.addi %c40_i32_26, %0 : i32
    %c-12_i32_27 = arith.constant -12 : i32
    %32 = arith.addi %31, %c-12_i32_27 : i32
    %33 = arith.index_cast %32 : i32 to index
    %c52 = arith.constant 52 : index
    %c0_28 = arith.constant 0 : index
    %34 = vector.load %arg9[%33, %c52, %c0_28] : memref<96x96x4xbf16, #tpu.memory_space<vmem>>, vector<16x16x4xbf16>
    %35 = vector.shape_cast %34 : vector<16x16x4xbf16> to vector<256x4xbf16>
    %c0_29 = arith.constant 0 : index
    %c2 = arith.constant 2 : index
    %c0_30 = arith.constant 0 : index
    %c0_31 = arith.constant 0 : index
    %36 = vector.load %arg5[%c0_29, %c2, %c0_30, %c0_31] : memref<3x8x4x32xbf16, #tpu.memory_space<vmem>>, vector<1x1x4x32xbf16>
    %37 = vector.shape_cast %36 : vector<1x1x4x32xbf16> to vector<4x32xbf16>
    %cst_32 = arith.constant dense<0.000000e+00> : vector<256x32xf32>
    %38 = tpu.matmul %35, %37, %cst_32 {dimension_numbers = #tpu.dot_dimension_numbers<[1], [0], [0], [1], [0, 0, 1, 1], [], []>} : vector<256x4xbf16>, vector<4x32xbf16>, vector<256x32xf32> -> vector<256x32xf32>
    %39 = arith.addf %30, %38 : vector<256x32xf32>
    %c40_i32_33 = arith.constant 40 : i32
    %40 = arith.addi %c40_i32_33, %0 : i32
    %c0_i32_34 = arith.constant 0 : i32
    %41 = arith.addi %40, %c0_i32_34 : i32
    %42 = arith.index_cast %41 : i32 to index
    %c28_35 = arith.constant 28 : index
    %c0_36 = arith.constant 0 : index
    %43 = vector.load %arg9[%42, %c28_35, %c0_36] : memref<96x96x4xbf16, #tpu.memory_space<vmem>>, vector<16x16x4xbf16>
    %44 = vector.shape_cast %43 : vector<16x16x4xbf16> to vector<256x4xbf16>
    %c0_37 = arith.constant 0 : index
    %c3 = arith.constant 3 : index
    %c0_38 = arith.constant 0 : index
    %c0_39 = arith.constant 0 : index
    %45 = vector.load %arg5[%c0_37, %c3, %c0_38, %c0_39] : memref<3x8x4x32xbf16, #tpu.memory_space<vmem>>, vector<1x1x4x32xbf16>
    %46 = vector.shape_cast %45 : vector<1x1x4x32xbf16> to vector<4x32xbf16>
    %cst_40 = arith.constant dense<0.000000e+00> : vector<256x32xf32>
    %47 = tpu.matmul %44, %46, %cst_40 {dimension_numbers = #tpu.dot_dimension_numbers<[1], [0], [0], [1], [0, 0, 1, 1], [], []>} : vector<256x4xbf16>, vector<4x32xbf16>, vector<256x32xf32> -> vector<256x32xf32>
    %48 = arith.addf %39, %47 : vector<256x32xf32>
    %c40_i32_41 = arith.constant 40 : i32
    %49 = arith.addi %c40_i32_41, %0 : i32
    %c0_i32_42 = arith.constant 0 : i32
    %50 = arith.addi %49, %c0_i32_42 : i32
    %51 = arith.index_cast %50 : i32 to index
    %c52_43 = arith.constant 52 : index
    %c0_44 = arith.constant 0 : index
    %52 = vector.load %arg9[%51, %c52_43, %c0_44] : memref<96x96x4xbf16, #tpu.memory_space<vmem>>, vector<16x16x4xbf16>
    %53 = vector.shape_cast %52 : vector<16x16x4xbf16> to vector<256x4xbf16>
    %c0_45 = arith.constant 0 : index
    %c4 = arith.constant 4 : index
    %c0_46 = arith.constant 0 : index
    %c0_47 = arith.constant 0 : index
    %54 = vector.load %arg5[%c0_45, %c4, %c0_46, %c0_47] : memref<3x8x4x32xbf16, #tpu.memory_space<vmem>>, vector<1x1x4x32xbf16>
    %55 = vector.shape_cast %54 : vector<1x1x4x32xbf16> to vector<4x32xbf16>
    %cst_48 = arith.constant dense<0.000000e+00> : vector<256x32xf32>
    %56 = tpu.matmul %53, %55, %cst_48 {dimension_numbers = #tpu.dot_dimension_numbers<[1], [0], [0], [1], [0, 0, 1, 1], [], []>} : vector<256x4xbf16>, vector<4x32xbf16>, vector<256x32xf32> -> vector<256x32xf32>
    %57 = arith.addf %48, %56 : vector<256x32xf32>
    %c40_i32_49 = arith.constant 40 : i32
    %58 = arith.addi %c40_i32_49, %0 : i32
    %c12_i32 = arith.constant 12 : i32
    %59 = arith.addi %58, %c12_i32 : i32
    %60 = arith.index_cast %59 : i32 to index
    %c28_50 = arith.constant 28 : index
    %c0_51 = arith.constant 0 : index
    %61 = vector.load %arg9[%60, %c28_50, %c0_51] : memref<96x96x4xbf16, #tpu.memory_space<vmem>>, vector<16x16x4xbf16>
    %62 = vector.shape_cast %61 : vector<16x16x4xbf16> to vector<256x4xbf16>
    %c0_52 = arith.constant 0 : index
    %c5 = arith.constant 5 : index
    %c0_53 = arith.constant 0 : index
    %c0_54 = arith.constant 0 : index
    %63 = vector.load %arg5[%c0_52, %c5, %c0_53, %c0_54] : memref<3x8x4x32xbf16, #tpu.memory_space<vmem>>, vector<1x1x4x32xbf16>
    %64 = vector.shape_cast %63 : vector<1x1x4x32xbf16> to vector<4x32xbf16>
    %cst_55 = arith.constant dense<0.000000e+00> : vector<256x32xf32>
    %65 = tpu.matmul %62, %64, %cst_55 {dimension_numbers = #tpu.dot_dimension_numbers<[1], [0], [0], [1], [0, 0, 1, 1], [], []>} : vector<256x4xbf16>, vector<4x32xbf16>, vector<256x32xf32> -> vector<256x32xf32>
    %66 = arith.addf %57, %65 : vector<256x32xf32>
    %c40_i32_56 = arith.constant 40 : i32
    %67 = arith.addi %c40_i32_56, %0 : i32
    %c12_i32_57 = arith.constant 12 : i32
    %68 = arith.addi %67, %c12_i32_57 : i32
    %69 = arith.index_cast %68 : i32 to index
    %c40_58 = arith.constant 40 : index
    %c0_59 = arith.constant 0 : index
    %70 = vector.load %arg9[%69, %c40_58, %c0_59] : memref<96x96x4xbf16, #tpu.memory_space<vmem>>, vector<16x16x4xbf16>
    %71 = vector.shape_cast %70 : vector<16x16x4xbf16> to vector<256x4xbf16>
    %c0_60 = arith.constant 0 : index
    %c6 = arith.constant 6 : index
    %c0_61 = arith.constant 0 : index
    %c0_62 = arith.constant 0 : index
    %72 = vector.load %arg5[%c0_60, %c6, %c0_61, %c0_62] : memref<3x8x4x32xbf16, #tpu.memory_space<vmem>>, vector<1x1x4x32xbf16>
    %73 = vector.shape_cast %72 : vector<1x1x4x32xbf16> to vector<4x32xbf16>
    %cst_63 = arith.constant dense<0.000000e+00> : vector<256x32xf32>
    %74 = tpu.matmul %71, %73, %cst_63 {dimension_numbers = #tpu.dot_dimension_numbers<[1], [0], [0], [1], [0, 0, 1, 1], [], []>} : vector<256x4xbf16>, vector<4x32xbf16>, vector<256x32xf32> -> vector<256x32xf32>
    %75 = arith.addf %66, %74 : vector<256x32xf32>
    %c40_i32_64 = arith.constant 40 : i32
    %76 = arith.addi %c40_i32_64, %0 : i32
    %c12_i32_65 = arith.constant 12 : i32
    %77 = arith.addi %76, %c12_i32_65 : i32
    %78 = arith.index_cast %77 : i32 to index
    %c52_66 = arith.constant 52 : index
    %c0_67 = arith.constant 0 : index
    %79 = vector.load %arg9[%78, %c52_66, %c0_67] : memref<96x96x4xbf16, #tpu.memory_space<vmem>>, vector<16x16x4xbf16>
    %80 = vector.shape_cast %79 : vector<16x16x4xbf16> to vector<256x4xbf16>
    %c0_68 = arith.constant 0 : index
    %c7 = arith.constant 7 : index
    %c0_69 = arith.constant 0 : index
    %c0_70 = arith.constant 0 : index
    %81 = vector.load %arg5[%c0_68, %c7, %c0_69, %c0_70] : memref<3x8x4x32xbf16, #tpu.memory_space<vmem>>, vector<1x1x4x32xbf16>
    %82 = vector.shape_cast %81 : vector<1x1x4x32xbf16> to vector<4x32xbf16>
    %cst_71 = arith.constant dense<0.000000e+00> : vector<256x32xf32>
    %83 = tpu.matmul %80, %82, %cst_71 {dimension_numbers = #tpu.dot_dimension_numbers<[1], [0], [0], [1], [0, 0, 1, 1], [], []>} : vector<256x4xbf16>, vector<4x32xbf16>, vector<256x32xf32> -> vector<256x32xf32>
    %84 = arith.addf %75, %83 : vector<256x32xf32>
    %c0_i32_72 = arith.constant 0 : i32
    %85 = arith.cmpi eq, %arg2, %c0_i32_72 : i32
    %86 = arith.extui %85 : i1 to i32
    %c0_i32_73 = arith.constant 0 : i32
    %87 = arith.cmpi ne, %86, %c0_i32_73 : i32
    scf.if %87 {
      %c0_81 = arith.constant 0 : index
      %c0_82 = arith.constant 0 : index
      %97 = vector.load %arg10[%c0_81, %c0_82] : memref<256x128xf32, #tpu.memory_space<vmem>>, vector<256x128xf32>
      tpu.vector_store %arg10[%c0_81, %c0_82], %13 {strides = array<i32>} : memref<256x128xf32, #tpu.memory_space<vmem>>, vector<256x128xf32>,
    } else {
    }
    %c0_i32_74 = arith.constant 0 : i32
    %88 = arith.cmpi ne, %arg2, %c0_i32_74 : i32
    %89 = arith.extui %88 : i1 to i32
    %c0_i32_75 = arith.constant 0 : i32
    %90 = arith.cmpi ne, %89, %c0_i32_75 : i32
    scf.if %90 {
      %c0_81 = arith.constant 0 : index
      %c0_82 = arith.constant 0 : index
      %97 = vector.load %arg10[%c0_81, %c0_82] : memref<256x128xf32, #tpu.memory_space<vmem>>, vector<256x128xf32>
      %98 = arith.addf %97, %13 : vector<256x128xf32>
      %c0_83 = arith.constant 0 : index
      %c0_84 = arith.constant 0 : index
      %99 = vector.load %arg10[%c0_83, %c0_84] : memref<256x128xf32, #tpu.memory_space<vmem>>, vector<256x128xf32>
      tpu.vector_store %arg10[%c0_83, %c0_84], %98 {strides = array<i32>} : memref<256x128xf32, #tpu.memory_space<vmem>>, vector<256x128xf32>,
    } else {
    }
    %c0_76 = arith.constant 0 : index
    %c32 = arith.constant 32 : index
    %91 = vector.load %arg10[%c0_76, %c32] : memref<256x128xf32, #tpu.memory_space<vmem>>, vector<256x32xf32>
    %92 = arith.addf %91, %84 : vector<256x32xf32>
    %c0_77 = arith.constant 0 : index
    %c32_78 = arith.constant 32 : index
    %93 = vector.load %arg10[%c0_77, %c32_78] : memref<256x128xf32, #tpu.memory_space<vmem>>, vector<256x32xf32>
    tpu.vector_store %arg10[%c0_77, %c32_78], %92 {strides = array<i32>} : memref<256x128xf32, #tpu.memory_space<vmem>>, vector<256x32xf32>,
    %c0_i32_79 = arith.constant 0 : i32
    %94 = arith.cmpi eq, %arg2, %c0_i32_79 : i32
    %95 = arith.extui %94 : i1 to i32
    %c0_i32_80 = arith.constant 0 : i32
    %96 = arith.cmpi ne, %95, %c0_i32_80 : i32
    scf.if %96 {
      %c0_81 = arith.constant 0 : index
      %c0_82 = arith.constant 0 : index
      %97 = vector.load %arg7[%c0_81, %c0_82] : memref<2x128xf32, #tpu.memory_space<vmem>>, vector<2x128xf32>
      %c0_83 = arith.constant 0 : index
      %c0_84 = arith.constant 0 : index
      %98 = vector.load %arg10[%c0_83, %c0_84] : memref<256x128xf32, #tpu.memory_space<vmem>>, vector<256x128xf32>
      %99 = vector.extract_strided_slice %97 {offsets = [0, 0], sizes = [1, 128], strides = [1, 1]} : vector<2x128xf32> to vector<1x128xf32>
      %100 = vector.broadcast %99 : vector<1x128xf32> to vector<256x128xf32>
      %101 = arith.mulf %98, %100 : vector<256x128xf32>
      %102 = vector.extract_strided_slice %97 {offsets = [1, 0], sizes = [1, 128], strides = [1, 1]} : vector<2x128xf32> to vector<1x128xf32>
      %103 = vector.broadcast %102 : vector<1x128xf32> to vector<256x128xf32>
      %104 = arith.addf %101, %103 : vector<256x128xf32>
      %cst_85 = arith.constant 0.000000e+00 : f32
      %105 = vector.broadcast %cst_85 : f32 to vector<256x128xf32>
      %106 = arith.maximumf %104, %105 : vector<256x128xf32>
      %107 = vector.shape_cast %106 : vector<256x128xf32> to vector<16x16x128xf32>
      %c0_86 = arith.constant 0 : index
      %c0_87 = arith.constant 0 : index
      %c0_88 = arith.constant 0 : index
      %c32_89 = arith.constant 32 : index
      %108 = vector.load %arg8[%c0_86, %c0_87, %c0_88, %c32_89] : memref<1x16x16x160xf32, #tpu.memory_space<vmem>>, vector<1x16x16x128xf32>
      %109 = vector.shape_cast %108 : vector<1x16x16x128xf32> to vector<16x16x128xf32>
      %110 = vector.shape_cast %107 : vector<16x16x128xf32> to vector<1x16x16x128xf32>
      tpu.vector_store %arg8[%c0_86, %c0_87, %c0_88, %c32_89], %110 {strides = array<i32>} : memref<1x16x16x160xf32, #tpu.memory_space<vmem>>, vector<1x16x16x128xf32>,
      %c0_90 = arith.constant 0 : index
      %c0_91 = arith.constant 0 : index
      %c0_92 = arith.constant 0 : index
      %111 = vector.load %arg6[%c0_90, %c0_91, %c0_92] : memref<1x1x32xf32, #tpu.memory_space<vmem>>, vector<1x1x32xf32>
      %112 = vector.shape_cast %111 : vector<1x1x32xf32> to vector<1x1x32xf32>
      %113 = vector.broadcast %112 : vector<1x1x32xf32> to vector<16x16x32xf32>
      %c0_93 = arith.constant 0 : index
      %c0_94 = arith.constant 0 : index
      %c0_95 = arith.constant 0 : index
      %c0_96 = arith.constant 0 : index
      %114 = vector.load %arg8[%c0_93, %c0_94, %c0_95, %c0_96] : memref<1x16x16x160xf32, #tpu.memory_space<vmem>>, vector<1x16x16x32xf32>
      %115 = vector.shape_cast %114 : vector<1x16x16x32xf32> to vector<16x16x32xf32>
      %116 = vector.shape_cast %113 : vector<16x16x32xf32> to vector<1x16x16x32xf32>
      tpu.vector_store %arg8[%c0_93, %c0_94, %c0_95, %c0_96], %116 {strides = array<i32>} : memref<1x16x16x160xf32, #tpu.memory_space<vmem>>, vector<1x16x16x32xf32>,
    } else {
    }
    return
  }
  func.func @transform_0(%arg0: i32, %arg1: i32, %arg2: i32) -> (i32, i32, i32, i32) {
    %c0_i32 = arith.constant 0 : i32
    %c0_i32_0 = arith.constant 0 : i32
    %c0_i32_1 = arith.constant 0 : i32
    return %arg0, %c0_i32, %c0_i32_0, %arg2 : i32, i32, i32, i32
  }
  func.func @transform_1(%arg0: i32, %arg1: i32, %arg2: i32) -> (i32, i32) {
    %c0_i32 = arith.constant 0 : i32
    %c0_i32_0 = arith.constant 0 : i32
    %c0_i32_1 = arith.constant 0 : i32
    return %c0_i32, %c0_i32_0 : i32, i32
  }
  func.func @transform_2(%arg0: i32, %arg1: i32, %arg2: i32) -> (i32, i32, i32, i32) {
    %c0_i32 = arith.constant 0 : i32
    %c0_i32_0 = arith.constant 0 : i32
    %c0_i32_1 = arith.constant 0 : i32
    %c0_i32_2 = arith.constant 0 : i32
    %c0_i32_3 = arith.constant 0 : i32
    return %c0_i32, %c0_i32_0, %c0_i32_1, %c0_i32_2 : i32, i32, i32, i32
  }
  func.func @transform_3(%arg0: i32, %arg1: i32, %arg2: i32) -> (i32, i32, i32) {
    %c0_i32 = arith.constant 0 : i32
    %c0_i32_0 = arith.constant 0 : i32
    %c0_i32_1 = arith.constant 0 : i32
    return %arg0, %c0_i32, %c0_i32_0 : i32, i32, i32
  }
  func.func @transform_4(%arg0: i32, %arg1: i32, %arg2: i32) -> (i32, i32) {
    %c0_i32 = arith.constant 0 : i32
    %c0_i32_0 = arith.constant 0 : i32
    %c0_i32_1 = arith.constant 0 : i32
    return %c0_i32, %c0_i32_0 : i32, i32
  }
  func.func @transform_5(%arg0: i32, %arg1: i32, %arg2: i32) -> (i32, i32, i32, i32) {
    %c0_i32 = arith.constant 0 : i32
    %c0_i32_0 = arith.constant 0 : i32
    %c0_i32_1 = arith.constant 0 : i32
    return %arg0, %arg1, %c0_i32, %c0_i32_0 : i32, i32, i32, i32
  }
}

</mosaic_0001>

<llo_original>
// kernel: tpu_custom_call.1
$region0: #{tpu_custom_call.1}
  #allocation0 [shape = 'u32[]', space=smem, size = 0x4, offset = 0x4, fixed_abs, tag = 'smem constant byte address 0x4 - core index']
  #allocation1 [shape = 'u32[144,128]{1,0:T(1,128)}', space=vmem, size = 0x12000, scoped, tag = 'internal scratch']
  #allocation2 [shape = 'bf16[96,96,4]{2,1,0:T(16,128)(2,1)}', space=vmem, size = 0x240000, scoped, tag = 'scratch operand']
  #allocation3 [shape = 'f32[256,128]{1,0:T(8,128)}', space=vmem, size = 0x20000, scoped, tag = 'scratch operand']
  %s0 = inlined_call_operand.vmem [shape: bf16[2,16,16,4], index: 0, kind: input, shape index: {}]
  %s1 = inlined_call_operand.vmem [shape: bf16[4,128], index: 1, kind: input, shape index: {}]
  %s2 = inlined_call_operand.vmem [shape: bf16[3,8,4,32], index: 2, kind: input, shape index: {}]
  %s3 = inlined_call_operand.vmem [shape: f32[2,1,32], index: 3, kind: input, shape index: {}]
  %s4 = inlined_call_operand.vmem [shape: f32[2,128], index: 4, kind: input, shape index: {}]
  %s5 = inlined_call_operand.hbm [shape: f32[2,16,16,160], index: 5, kind: output, shape index: {}]
  %s6 = sld [smem:[#allocation0]]
  $region69: #{tpu_custom_call.1} parent=0
    _
  %s8 = ssub.s32 1, %s6
  %s9 = scalar_select 0, %s8, %s6
  $region1: #{tpu_custom_call.1} parent=0
    #allocation4 [shape = 'u8[524288]{0}', space=vmem, size = 0x80000, scoped, tag = 'output window, operand 0']
    #allocation5 [shape = 's32[2]{0}', space=sflag, size = 0x8, scoped, tag = 'scoped memory for tpu_custom_call.1']
    %10 = vsyncpa [#allocation5], 0
    %s11 = scalar_lea.sflag [#allocation5], 1
    %12 = vsyncpa %s11, 0
    loop: start=0, step=1, limit=4
    $region2: #{tpu_custom_call.1} parent=1 // loop_pre_header
      _
    $region3: #{tpu_custom_call.1} parent=1 // loop_header
      %s14 = sphi 0, %s18
      %p15 = scmp.ge.s32.totalorder %s14, 4
      %s21 = sphi 0, %s40
      %s22 = sphi 0, %s36
      %s23 = sphi 0, %s32
      %s24 = sphi 0, %s21
      %s25 = sphi 0, %s22
      %s26 = sphi 0, %s23
      %s27 = sphi 0, %s24
      %s28 = sphi 0, %s25
      %s29 = sphi 0, %s26
      %s45 = sphi 0, %s47
      %s48 = sphi 0, %s45
      %s49 = sphi 0, %s48
      %s65 = sphi 0, %s49
      %s69 = sphi 0, %s69
      %s71 = sphi 0, %s69
      %s72 = sphi 0, %s71
      %s86 = sphi 0, %s72
      %s90 = sphi 0, %s90
      %s92 = sphi 0, %s90
      %s93 = sphi 0, %s92
      %s107 = sphi 0, %s93
      %s113 = sphi 0, %s115
      %s116 = sphi 0, %s113
      %s117 = sphi 0, %s116
      %s133 = sphi 0, %s117
      %s137 = sphi 0, %s137
      %s139 = sphi 0, %s137
      %s140 = sphi 0, %s139
      %s154 = sphi 0, %s140
      %s162 = sphi 0, %s164
      %s165 = sphi 0, %s162
      %s166 = sphi 0, %s165
      %s182 = sphi 0, %s166
    $region4: #{tpu_custom_call.1} parent=1 // loop_header_branch
      %17 = sbr.rel (%p15) target = $region8
    $region5: #{tpu_custom_call.1} parent=1 // loop_body
      %s19 = ssub.s32 %s14, 1
      %s20 = ssub.s32 %s14, 2
      %s30 = sadd.s32 1, %s23
      %p31 = scmp.ge.s32.totalorder %s30, 1
      %s32 = scalar_select %p31, 0, %s30
      %s33 = sadd.s32 1, %s22
      %s34 = scalar_select %p31, %s33, %s22
      %p35 = scmp.ge.s32.totalorder %s34, 1
      %s36 = scalar_select %p35, 0, %s34
      %s37 = sadd.s32 1, %s21
      %s38 = scalar_select %p35, %s37, %s21
      %p39 = scmp.ge.s32.totalorder %s38, 2
      %s40 = scalar_select %p39, 0, %s38
      %s41 = ssub.s32 %s21, %s40
      %s42 = ssub.s32 %s23, %s32
      %s43 = sor.u32 %s41, %s42
      %p44 = scmp.eq.s32.totalorder %s43, 0
      %s46 = sadd.s32 %s45, 1
      %s47 = scalar_select %p44, %s45, %s46
      %p50 = pneg %p44
      %p51 = scmp.eq.s32.totalorder %s14, 1
      %p52 = por %p50, %p51
      %p53 = scmp.ne.s32.totalorder %s45, %s48
      %p54 = scmp.eq.s32.totalorder %s14, 0
      %p55 = por %p53, %p54
      %p56 = scmp.ne.s32.totalorder %s45, %s48
      %p57 = scmp.eq.s32.totalorder %s19, 1
      %p58 = por %p56, %p57
      %p59 = scmp.ne.s32.totalorder %s48, %s49
      %p60 = scmp.eq.s32.totalorder %s19, 0
      %p61 = por %p59, %p60
      %p62 = scmp.ne.s32.totalorder %s48, %s49
      %p63 = scmp.eq.s32.totalorder %s20, 1
      %p64 = por %p62, %p63
      %p66 = scmp.ne.s32.totalorder %s49, %s65
      %p67 = scmp.eq.s32.totalorder %s20, 0
      %p68 = por %p66, %p67
      %s70 = sadd.s32 %s69, 1
      %p73 = scmp.eq.s32.totalorder %s14, 1
      %p74 = scmp.ne.s32.totalorder %s69, %s71
      %p75 = scmp.eq.s32.totalorder %s14, 0
      %p76 = por %p74, %p75
      %p77 = scmp.ne.s32.totalorder %s69, %s71
      %p78 = scmp.eq.s32.totalorder %s19, 1
      %p79 = por %p77, %p78
      %p80 = scmp.ne.s32.totalorder %s71, %s72
      %p81 = scmp.eq.s32.totalorder %s19, 0
      %p82 = por %p80, %p81
      %p83 = scmp.ne.s32.totalorder %s71, %s72
      %p84 = scmp.eq.s32.totalorder %s20, 1
      %p85 = por %p83, %p84
      %p87 = scmp.ne.s32.totalorder %s72, %s86
      %p88 = scmp.eq.s32.totalorder %s20, 0
      %p89 = por %p87, %p88
      %s91 = sadd.s32 %s90, 1
      %p94 = scmp.eq.s32.totalorder %s14, 1
      %p95 = scmp.ne.s32.totalorder %s90, %s92
      %p96 = scmp.eq.s32.totalorder %s14, 0
      %p97 = por %p95, %p96
      %p98 = scmp.ne.s32.totalorder %s90, %s92
      %p99 = scmp.eq.s32.totalorder %s19, 1
      %p100 = por %p98, %p99
      %p101 = scmp.ne.s32.totalorder %s92, %s93
      %p102 = scmp.eq.s32.totalorder %s19, 0
      %p103 = por %p101, %p102
      %p104 = scmp.ne.s32.totalorder %s92, %s93
      %p105 = scmp.eq.s32.totalorder %s20, 1
      %p106 = por %p104, %p105
      %p108 = scmp.ne.s32.totalorder %s93, %s107
      %p109 = scmp.eq.s32.totalorder %s20, 0
      %p110 = por %p108, %p109
      %s111 = ssub.s32 %s21, %s40
      %p112 = scmp.eq.s32.totalorder %s111, 0
      %s114 = sadd.s32 %s113, 1
      %s115 = scalar_select %p112, %s113, %s114
      %p118 = pneg %p112
      %p119 = scmp.eq.s32.totalorder %s14, 1
      %p120 = por %p118, %p119
      %p121 = scmp.ne.s32.totalorder %s113, %s116
      %p122 = scmp.eq.s32.totalorder %s14, 0
      %p123 = por %p121, %p122
      %p124 = scmp.ne.s32.totalorder %s113, %s116
      %p125 = scmp.eq.s32.totalorder %s19, 1
      %p126 = por %p124, %p125
      %p127 = scmp.ne.s32.totalorder %s116, %s117
      %p128 = scmp.eq.s32.totalorder %s19, 0
      %p129 = por %p127, %p128
      %p130 = scmp.ne.s32.totalorder %s116, %s117
      %p131 = scmp.eq.s32.totalorder %s20, 1
      %p132 = por %p130, %p131
      %p134 = scmp.ne.s32.totalorder %s117, %s133
      %p135 = scmp.eq.s32.totalorder %s20, 0
      %p136 = por %p134, %p135
      %s138 = sadd.s32 %s137, 1
      %p141 = scmp.eq.s32.totalorder %s14, 1
      %p142 = scmp.ne.s32.totalorder %s137, %s139
      %p143 = scmp.eq.s32.totalorder %s14, 0
      %p144 = por %p142, %p143
      %p145 = scmp.ne.s32.totalorder %s137, %s139
      %p146 = scmp.eq.s32.totalorder %s19, 1
      %p147 = por %p145, %p146
      %p148 = scmp.ne.s32.totalorder %s139, %s140
      %p149 = scmp.eq.s32.totalorder %s19, 0
      %p150 = por %p148, %p149
      %p151 = scmp.ne.s32.totalorder %s139, %s140
      %p152 = scmp.eq.s32.totalorder %s20, 1
      %p153 = por %p151, %p152
      %p155 = scmp.ne.s32.totalorder %s140, %s154
      %p156 = scmp.eq.s32.totalorder %s20, 0
      %p157 = por %p155, %p156
      %s158 = ssub.s32 %s21, %s40
      %s159 = ssub.s32 %s22, %s36
      %s160 = sor.u32 %s158, %s159
      %p161 = scmp.eq.s32.totalorder %s160, 0
      %s163 = sadd.s32 %s162, 1
      %s164 = scalar_select %p161, %s162, %s163
      %p167 = pneg %p161
      %p168 = scmp.eq.s32.totalorder %s14, 1
      %p169 = por %p167, %p168
      %p170 = scmp.ne.s32.totalorder %s162, %s165
      %p171 = scmp.eq.s32.totalorder %s14, 0
      %p172 = por %p170, %p171
      %p173 = scmp.ne.s32.totalorder %s162, %s165
      %p174 = scmp.eq.s32.totalorder %s19, 1
      %p175 = por %p173, %p174
      %p176 = scmp.ne.s32.totalorder %s165, %s166
      %p177 = scmp.eq.s32.totalorder %s19, 0
      %p178 = por %p176, %p177
      %p179 = scmp.ne.s32.totalorder %s165, %s166
      %p180 = scmp.eq.s32.totalorder %s20, 1
      %p181 = por %p179, %p180
      %p183 = scmp.ne.s32.totalorder %s166, %s182
      %p184 = scmp.eq.s32.totalorder %s20, 0
      %p185 = por %p183, %p184
      %p186 = scmp.le.s32.totalorder 1, %s14
      %p187 = scmp.lt.s32.totalorder %s14, 3
      %p188 = pnand %p186, %p187
      %p189 = pneg %p188
      // Predicated region
      $region9: #{tpu_custom_call.1} parent=5 // pred_check
        _
      $region10: #{tpu_custom_call.1} parent=5 // pred_check_branch
        %191 = sbr.rel (%p188) target = $region12
      $region11: #{tpu_custom_call.1} parent=5 // pred_region
        %s192 = ssub.s32 %s14, 1
        // Predicated region
        $region13: #{tpu_custom_call.1} parent=11 // pred_check
          %p193 = pneg %p82
        $region14: #{tpu_custom_call.1} parent=11 // pred_check_branch
          %195 = sbr.rel (%p193) target = $region16
        $region15: #{tpu_custom_call.1} parent=11 // pred_region
          _
        $region16: #{tpu_custom_call.1} parent=11 // pred_fallthru
          _
        // Predicated region
        $region17: #{tpu_custom_call.1} parent=11 // pred_check
          %p196 = pneg %p103
        $region18: #{tpu_custom_call.1} parent=11 // pred_check_branch
          %198 = sbr.rel (%p196) target = $region20
        $region19: #{tpu_custom_call.1} parent=11 // pred_region
          _
        $region20: #{tpu_custom_call.1} parent=11 // pred_fallthru
          _
        // Predicated region
        $region21: #{tpu_custom_call.1} parent=11 // pred_check
          %p199 = pneg %p150
        $region22: #{tpu_custom_call.1} parent=11 // pred_check_branch
          %201 = sbr.rel (%p199) target = $region24
        $region23: #{tpu_custom_call.1} parent=11 // pred_region
          _
        $region24: #{tpu_custom_call.1} parent=11 // pred_fallthru
          _
      $region12: #{tpu_custom_call.1} parent=5 // pred_fallthru
        _
      %p202 = scmp.lt.s32.totalorder %s14, 2
      // Predicated region
      $region25: #{tpu_custom_call.1} parent=5 // pred_check
        %p203 = pneg %p202
      $region26: #{tpu_custom_call.1} parent=5 // pred_check_branch
        %205 = sbr.rel (%p203) target = $region28
      $region27: #{tpu_custom_call.1} parent=5 // pred_region
        // Predicated region
        $region29: #{tpu_custom_call.1} parent=27 // pred_check
          %p206 = pneg %p55
        $region30: #{tpu_custom_call.1} parent=27 // pred_check_branch
          %208 = sbr.rel (%p206) target = $region32
        $region31: #{tpu_custom_call.1} parent=27 // pred_region
          %p209 = scmp.lt.s32.totalorder %s21, 1
          %s210 = scalar_select %p209, %s21, 1
          %p211 = scmp.lt.s32.totalorder %s23, 0
          %s212 = scalar_select %p211, %s23, 0
          %s213 = smul.addr %s210, 32
          %s214 = sadd.s32 %s212, %s213
          %s215 = smul.addr %s214, 4
          %s216 = scalar_lea.vmem %s0, %s215
        $region32: #{tpu_custom_call.1} parent=27 // pred_fallthru
          _
        // Predicated region
        $region33: #{tpu_custom_call.1} parent=27 // pred_check
          %p217 = pneg %p123
        $region34: #{tpu_custom_call.1} parent=27 // pred_check_branch
          %219 = sbr.rel (%p217) target = $region36
        $region35: #{tpu_custom_call.1} parent=27 // pred_region
          %p220 = scmp.lt.s32.totalorder %s21, 1
          %s221 = scalar_select %p220, %s21, 1
          %s222 = scalar_lea.vmem %s3, %s221
        $region36: #{tpu_custom_call.1} parent=27 // pred_fallthru
          _
      $region28: #{tpu_custom_call.1} parent=5 // pred_fallthru
        _
      %p223 = scmp.le.s32.totalorder 1, %s14
      %p224 = scmp.lt.s32.totalorder %s14, 3
      %p225 = pnand %p223, %p224
      %p226 = pneg %p225
      // Predicated region
      $region37: #{tpu_custom_call.1} parent=5 // pred_check
        _
      $region38: #{tpu_custom_call.1} parent=5 // pred_check_branch
        %228 = sbr.rel (%p225) target = $region40
      $region39: #{tpu_custom_call.1} parent=5 // pred_region
        %s229 = ssub.s32 %s14, 1
        %p230 = scmp.lt.s32.totalorder %s24, 1
        %s231 = scalar_select %p230, %s24, 1
        %p232 = scmp.lt.s32.totalorder %s26, 0
        %s233 = scalar_select %p232, %s26, 0
        %s234 = smul.addr %s231, 32
        %s235 = sadd.s32 %s233, %s234
        %s236 = smul.addr %s235, 4
        %s237 = scalar_lea.vmem %s0, %s236
        %p238 = pneg %p61
        %p239 = pneg %p58
        %p240 = pneg %p82
        %p241 = pneg %p79
        %p242 = pneg %p103
        %p243 = pneg %p100
        %p244 = scmp.lt.s32.totalorder %s24, 1
        %s245 = scalar_select %p244, %s24, 1
        %s246 = scalar_lea.vmem %s3, %s245
        %p247 = pneg %p129
        %p248 = pneg %p126
        %p249 = pneg %p150
        %p250 = pneg %p147
        %p251 = pneg %p178
        %p252 = pneg %p175
        %s253 = sand.u32 %s165, 1
        %s254 = scalar_lea.sflag [#allocation5], %s253
        %s255 = sand.u32 %s165, 1
        %s256 = smul.addr %s255, 512
        %s257 = scalar_lea.vmem [#allocation4], %s256
        %p258 = scmp.lt.s32.totalorder %s24, 1
        %s259 = scalar_select %p258, %s24, 1
        %p260 = scmp.lt.s32.totalorder %s26, 0
        %s261 = scalar_select %p260, %s26, 0
        %s262 = smul.addr %s259, 32
        %s263 = sadd.s32 %s261, %s262
        %s264 = smul.addr %s263, 4
        %s265 = scalar_lea.vmem %s0, %s264
        %p266 = scmp.lt.s32.totalorder %s24, 1
        %s267 = scalar_select %p266, %s24, 1
        %s268 = scalar_lea.vmem %s3, %s267
        %s269 = smul.u32 16, %s25
        %s271 = smul.u32 %s25, 16
        %p272 = scmp.eq.s32.totalorder %s26, 0
        // Predicated region
        $region41: #{tpu_custom_call.1} parent=39 // pred_check
          %p273 = pneg %p272
        $region42: #{tpu_custom_call.1} parent=39 // pred_check_branch
          %275 = sbr.rel (%p273) target = $region44
        $region43: #{tpu_custom_call.1} parent=39 // pred_region
          %vm276 = vcmask 31744
          %277 = vst.msk [vmem:[#allocation2] sm:$0xff] %vm276, 0
          %278 = vst.msk [vmem:[#allocation2 + $0x8] sm:$0xff] %vm276, 0
          %279 = vst.msk [vmem:[#allocation2 + $0x10] sm:$0xff] %vm276, 0
          %280 = vst.msk [vmem:[#allocation2 + $0x18] sm:$0xff] %vm276, 0
          %281 = vst.msk [vmem:[#allocation2 + $0x20] sm:$0xff] %vm276, 0
          %282 = vst.msk [vmem:[#allocation2 + $0x28] sm:$0xff] %vm276, 0
          %283 = vst.msk [vmem:[#allocation2 + $0x30] sm:$0xff] %vm276, 0
          %284 = vst.msk [vmem:[#allocation2 + $0x38] sm:$0xff] %vm276, 0
          %285 = vst.msk [vmem:[#allocation2 + $0x40] sm:$0xff] %vm276, 0
          %286 = vst.msk [vmem:[#allocation2 + $0x48] sm:$0xff] %vm276, 0
          %287 = vst.msk [vmem:[#allocation2 + $0x50] sm:$0xff] %vm276, 0
          %288 = vst.msk [vmem:[#allocation2 + $0x58] sm:$0xff] %vm276, 0
          %289 = vst.msk [vmem:[#allocation2 + $0x60] sm:$0xff] %vm276, 0
          %290 = vst.msk [vmem:[#allocation2 + $0x68] sm:$0xff] %vm276, 0
          %291 = vst.msk [vmem:[#allocation2 + $0x70] sm:$0xff] %vm276, 0
          %292 = vst.msk [vmem:[#allocation2 + $0x78] sm:$0xff] %vm276, 0
          %293 = vst.msk [vmem:[#allocation2 + $0x80] sm:$0xff] %vm276, 0
          %294 = vst.msk [vmem:[#allocation2 + $0x88] sm:$0xff] %vm276, 0
          %295 = vst.msk [vmem:[#allocation2 + $0x90] sm:$0xff] %vm276, 0
          %296 = vst.msk [vmem:[#allocation2 + $0x98] sm:$0xff] %vm276, 0
          %297 = vst.msk [vmem:[#allocation2 + $0xa0] sm:$0xff] %vm276, 0
          %298 = vst.msk [vmem:[#allocation2 + $0xa8] sm:$0xff] %vm276, 0
          %299 = vst.msk [vmem:[#allocation2 + $0xb0] sm:$0xff] %vm276, 0
          %300 = vst.msk [vmem:[#allocation2 + $0xb8] sm:$0xff] %vm276, 0
          %301 = vst.msk [vmem:[#allocation2 + $0xc0] sm:$0xff] %vm276, 0
          %302 = vst.msk [vmem:[#allocation2 + $0xc8] sm:$0xff] %vm276, 0
          %303 = vst.msk [vmem:[#allocation2 + $0xd0] sm:$0xff] %vm276, 0
          %304 = vst.msk [vmem:[#allocation2 + $0xd8] sm:$0xff] %vm276, 0
          %305 = vst.msk [vmem:[#allocation2 + $0xe0] sm:$0xff] %vm276, 0
          %306 = vst.msk [vmem:[#allocation2 + $0xe8] sm:$0xff] %vm276, 0
          %307 = vst.msk [vmem:[#allocation2 + $0xf0] sm:$0xff] %vm276, 0
          %308 = vst.msk [vmem:[#allocation2 + $0xf8] sm:$0xff] %vm276, 0
          %309 = vst.msk [vmem:[#allocation2 + $0x100] sm:$0xff] %vm276, 0
          %310 = vst.msk [vmem:[#allocation2 + $0x108] sm:$0xff] %vm276, 0
          %311 = vst.msk [vmem:[#allocation2 + $0x110] sm:$0xff] %vm276, 0
          %312 = vst.msk [vmem:[#allocation2 + $0x118] sm:$0xff] %vm276, 0
          %313 = vst.msk [vmem:[#allocation2 + $0x120] sm:$0xff] %vm276, 0
          %314 = vst.msk [vmem:[#allocation2 + $0x128] sm:$0xff] %vm276, 0
          %315 = vst.msk [vmem:[#allocation2 + $0x130] sm:$0xff] %vm276, 0
          %316 = vst.msk [vmem:[#allocation2 + $0x138] sm:$0xff] %vm276, 0
          %317 = vst.msk [vmem:[#allocation2 + $0x140] sm:$0xff] %vm276, 0
          %318 = vst.msk [vmem:[#allocation2 + $0x148] sm:$0xff] %vm276, 0
          %319 = vst.msk [vmem:[#allocation2 + $0x150] sm:$0xff] %vm276, 0
          %320 = vst.msk [vmem:[#allocation2 + $0x158] sm:$0xff] %vm276, 0
          %321 = vst.msk [vmem:[#allocation2 + $0x160] sm:$0xff] %vm276, 0
          %322 = vst.msk [vmem:[#allocation2 + $0x168] sm:$0xff] %vm276, 0
          %323 = vst.msk [vmem:[#allocation2 + $0x170] sm:$0xff] %vm276, 0
          %324 = vst.msk [vmem:[#allocation2 + $0x178] sm:$0xff] %vm276, 0
          %325 = vst.msk [vmem:[#allocation2 + $0x180] sm:$0xff] %vm276, 0
          %326 = vst.msk [vmem:[#allocation2 + $0x188] sm:$0xff] %vm276, 0
          %327 = vst.msk [vmem:[#allocation2 + $0x190] sm:$0xff] %vm276, 0
          %328 = vst.msk [vmem:[#allocation2 + $0x198] sm:$0xff] %vm276, 0
          %329 = vst.msk [vmem:[#allocation2 + $0x1a0] sm:$0xff] %vm276, 0
          %330 = vst.msk [vmem:[#allocation2 + $0x1a8] sm:$0xff] %vm276, 0
          %331 = vst.msk [vmem:[#allocation2 + $0x1b0] sm:$0xff] %vm276, 0
          %332 = vst.msk [vmem:[#allocation2 + $0x1b8] sm:$0xff] %vm276, 0
          %333 = vst.msk [vmem:[#allocation2 + $0x1c0] sm:$0xff] %vm276, 0
          %334 = vst.msk [vmem:[#allocation2 + $0x1c8] sm:$0xff] %vm276, 0
          %335 = vst.msk [vmem:[#allocation2 + $0x1d0] sm:$0xff] %vm276, 0
          %336 = vst.msk [vmem:[#allocation2 + $0x1d8] sm:$0xff] %vm276, 0
          %337 = vst.msk [vmem:[#allocation2 + $0x1e0] sm:$0xff] %vm276, 0
          %338 = vst.msk [vmem:[#allocation2 + $0x1e8] sm:$0xff] %vm276, 0
          %339 = vst.msk [vmem:[#allocation2 + $0x1f0] sm:$0xff] %vm276, 0
          %340 = vst.msk [vmem:[#allocation2 + $0x1f8] sm:$0xff] %vm276, 0
          %341 = vst.msk [vmem:[#allocation2 + $0x200] sm:$0xff] %vm276, 0
          %342 = vst.msk [vmem:[#allocation2 + $0x208] sm:$0xff] %vm276, 0
          %343 = vst.msk [vmem:[#allocation2 + $0x210] sm:$0xff] %vm276, 0
          %344 = vst.msk [vmem:[#allocation2 + $0x218] sm:$0xff] %vm276, 0
          %345 = vst.msk [vmem:[#allocation2 + $0x220] sm:$0xff] %vm276, 0
          %346 = vst.msk [vmem:[#allocation2 + $0x228] sm:$0xff] %vm276, 0
          %347 = vst.msk [vmem:[#allocation2 + $0x230] sm:$0xff] %vm276, 0
          %348 = vst.msk [vmem:[#allocation2 + $0x238] sm:$0xff] %vm276, 0
          %349 = vst.msk [vmem:[#allocation2 + $0x240] sm:$0xff] %vm276, 0
          %350 = vst.msk [vmem:[#allocation2 + $0x248] sm:$0xff] %vm276, 0
          %351 = vst.msk [vmem:[#allocation2 + $0x250] sm:$0xff] %vm276, 0
          %352 = vst.msk [vmem:[#allocation2 + $0x258] sm:$0xff] %vm276, 0
          %353 = vst.msk [vmem:[#allocation2 + $0x260] sm:$0xff] %vm276, 0
          %354 = vst.msk [vmem:[#allocation2 + $0x268] sm:$0xff] %vm276, 0
          %355 = vst.msk [vmem:[#allocation2 + $0x270] sm:$0xff] %vm276, 0
          %356 = vst.msk [vmem:[#allocation2 + $0x278] sm:$0xff] %vm276, 0
          %357 = vst.msk [vmem:[#allocation2 + $0x280] sm:$0xff] %vm276, 0
          %358 = vst.msk [vmem:[#allocation2 + $0x288] sm:$0xff] %vm276, 0
          %359 = vst.msk [vmem:[#allocation2 + $0x290] sm:$0xff] %vm276, 0
          %360 = vst.msk [vmem:[#allocation2 + $0x298] sm:$0xff] %vm276, 0
          %361 = vst.msk [vmem:[#allocation2 + $0x2a0] sm:$0xff] %vm276, 0
          %362 = vst.msk [vmem:[#allocation2 + $0x2a8] sm:$0xff] %vm276, 0
          %363 = vst.msk [vmem:[#allocation2 + $0x2b0] sm:$0xff] %vm276, 0
          %364 = vst.msk [vmem:[#allocation2 + $0x2b8] sm:$0xff] %vm276, 0
          %365 = vst.msk [vmem:[#allocation2 + $0x2c0] sm:$0xff] %vm276, 0
          %366 = vst.msk [vmem:[#allocation2 + $0x2c8] sm:$0xff] %vm276, 0
          %367 = vst.msk [vmem:[#allocation2 + $0x2d0] sm:$0xff] %vm276, 0
          %368 = vst.msk [vmem:[#allocation2 + $0x2d8] sm:$0xff] %vm276, 0
          %369 = vst.msk [vmem:[#allocation2 + $0x2e0] sm:$0xff] %vm276, 0
          %370 = vst.msk [vmem:[#allocation2 + $0x2e8] sm:$0xff] %vm276, 0
          %371 = vst.msk [vmem:[#allocation2 + $0x2f0] sm:$0xff] %vm276, 0
          %372 = vst.msk [vmem:[#allocation2 + $0x2f8] sm:$0xff] %vm276, 0
          %373 = vst.msk [vmem:[#allocation2 + $0x300] sm:$0xff] %vm276, 0
          %374 = vst.msk [vmem:[#allocation2 + $0x308] sm:$0xff] %vm276, 0
          %375 = vst.msk [vmem:[#allocation2 + $0x310] sm:$0xff] %vm276, 0
          %376 = vst.msk [vmem:[#allocation2 + $0x318] sm:$0xff] %vm276, 0
          %377 = vst.msk [vmem:[#allocation2 + $0x320] sm:$0xff] %vm276, 0
          %378 = vst.msk [vmem:[#allocation2 + $0x328] sm:$0xff] %vm276, 0
          %379 = vst.msk [vmem:[#allocation2 + $0x330] sm:$0xff] %vm276, 0
          %380 = vst.msk [vmem:[#allocation2 + $0x338] sm:$0xff] %vm276, 0
          %381 = vst.msk [vmem:[#allocation2 + $0x340] sm:$0xff] %vm276, 0
          %382 = vst.msk [vmem:[#allocation2 + $0x348] sm:$0xff] %vm276, 0
          %383 = vst.msk [vmem:[#allocation2 + $0x350] sm:$0xff] %vm276, 0
          %384 = vst.msk [vmem:[#allocation2 + $0x358] sm:$0xff] %vm276, 0
          %385 = vst.msk [vmem:[#allocation2 + $0x360] sm:$0xff] %vm276, 0
          %386 = vst.msk [vmem:[#allocation2 + $0x368] sm:$0xff] %vm276, 0
          %387 = vst.msk [vmem:[#allocation2 + $0x370] sm:$0xff] %vm276, 0
          %388 = vst.msk [vmem:[#allocation2 + $0x378] sm:$0xff] %vm276, 0
          %389 = vst.msk [vmem:[#allocation2 + $0x380] sm:$0xff] %vm276, 0
          %390 = vst.msk [vmem:[#allocation2 + $0x388] sm:$0xff] %vm276, 0
          %391 = vst.msk [vmem:[#allocation2 + $0x390] sm:$0xff] %vm276, 0
          %392 = vst.msk [vmem:[#allocation2 + $0x398] sm:$0xff] %vm276, 0
          %393 = vst.msk [vmem:[#allocation2 + $0x3a0] sm:$0xff] %vm276, 0
          %394 = vst.msk [vmem:[#allocation2 + $0x3a8] sm:$0xff] %vm276, 0
          %395 = vst.msk [vmem:[#allocation2 + $0x3b0] sm:$0xff] %vm276, 0
          %396 = vst.msk [vmem:[#allocation2 + $0x3b8] sm:$0xff] %vm276, 0
          %397 = vst.msk [vmem:[#allocation2 + $0x3c0] sm:$0xff] %vm276, 0
          %398 = vst.msk [vmem:[#allocation2 + $0x3c8] sm:$0xff] %vm276, 0
          %399 = vst.msk [vmem:[#allocation2 + $0x3d0] sm:$0xff] %vm276, 0
          %400 = vst.msk [vmem:[#allocation2 + $0x3d8] sm:$0xff] %vm276, 0
          %401 = vst.msk [vmem:[#allocation2 + $0x3e0] sm:$0xff] %vm276, 0
          %402 = vst.msk [vmem:[#allocation2 + $0x3e8] sm:$0xff] %vm276, 0
          %403 = vst.msk [vmem:[#allocation2 + $0x3f0] sm:$0xff] %vm276, 0
          %404 = vst.msk [vmem:[#allocation2 + $0x3f8] sm:$0xff] %vm276, 0
          %405 = vst.msk [vmem:[#allocation2 + $0x400] sm:$0xff] %vm276, 0
          %406 = vst.msk [vmem:[#allocation2 + $0x408] sm:$0xff] %vm276, 0
          %407 = vst.msk [vmem:[#allocation2 + $0x410] sm:$0xff] %vm276, 0
          %408 = vst.msk [vmem:[#allocation2 + $0x418] sm:$0xff] %vm276, 0
          %409 = vst.msk [vmem:[#allocation2 + $0x420] sm:$0xff] %vm276, 0
          %410 = vst.msk [vmem:[#allocation2 + $0x428] sm:$0xff] %vm276, 0
          %411 = vst.msk [vmem:[#allocation2 + $0x430] sm:$0xff] %vm276, 0
          %412 = vst.msk [vmem:[#allocation2 + $0x438] sm:$0xff] %vm276, 0
          %413 = vst.msk [vmem:[#allocation2 + $0x440] sm:$0xff] %vm276, 0
          %414 = vst.msk [vmem:[#allocation2 + $0x448] sm:$0xff] %vm276, 0
          %415 = vst.msk [vmem:[#allocation2 + $0x450] sm:$0xff] %vm276, 0
          %416 = vst.msk [vmem:[#allocation2 + $0x458] sm:$0xff] %vm276, 0
          %417 = vst.msk [vmem:[#allocation2 + $0x460] sm:$0xff] %vm276, 0
          %418 = vst.msk [vmem:[#allocation2 + $0x468] sm:$0xff] %vm276, 0
          %419 = vst.msk [vmem:[#allocation2 + $0x470] sm:$0xff] %vm276, 0
          %420 = vst.msk [vmem:[#allocation2 + $0x478] sm:$0xff] %vm276, 0
          %421 = vst.msk [vmem:[#allocation2 + $0x480] sm:$0xff] %vm276, 0
          %422 = vst.msk [vmem:[#allocation2 + $0x488] sm:$0xff] %vm276, 0
          %423 = vst.msk [vmem:[#allocation2 + $0x490] sm:$0xff] %vm276, 0
          %424 = vst.msk [vmem:[#allocation2 + $0x498] sm:$0xff] %vm276, 0
          %425 = vst.msk [vmem:[#allocation2 + $0x4a0] sm:$0xff] %vm276, 0
          %426 = vst.msk [vmem:[#allocation2 + $0x4a8] sm:$0xff] %vm276, 0
          %427 = vst.msk [vmem:[#allocation2 + $0x4b0] sm:$0xff] %vm276, 0
          %428 = vst.msk [vmem:[#allocation2 + $0x4b8] sm:$0xff] %vm276, 0
          %429 = vst.msk [vmem:[#allocation2 + $0x4c0] sm:$0xff] %vm276, 0
          %430 = vst.msk [vmem:[#allocation2 + $0x4c8] sm:$0xff] %vm276, 0
          %431 = vst.msk [vmem:[#allocation2 + $0x4d0] sm:$0xff] %vm276, 0
          %432 = vst.msk [vmem:[#allocation2 + $0x4d8] sm:$0xff] %vm276, 0
          %433 = vst.msk [vmem:[#allocation2 + $0x4e0] sm:$0xff] %vm276, 0
          %434 = vst.msk [vmem:[#allocation2 + $0x4e8] sm:$0xff] %vm276, 0
          %435 = vst.msk [vmem:[#allocation2 + $0x4f0] sm:$0xff] %vm276, 0
          %436 = vst.msk [vmem:[#allocation2 + $0x4f8] sm:$0xff] %vm276, 0
          %437 = vst.msk [vmem:[#allocation2 + $0x500] sm:$0xff] %vm276, 0
          %438 = vst.msk [vmem:[#allocation2 + $0x508] sm:$0xff] %vm276, 0
          %439 = vst.msk [vmem:[#allocation2 + $0x510] sm:$0xff] %vm276, 0
          %440 = vst.msk [vmem:[#allocation2 + $0x518] sm:$0xff] %vm276, 0
          %441 = vst.msk [vmem:[#allocation2 + $0x520] sm:$0xff] %vm276, 0
          %442 = vst.msk [vmem:[#allocation2 + $0x528] sm:$0xff] %vm276, 0
          %443 = vst.msk [vmem:[#allocation2 + $0x530] sm:$0xff] %vm276, 0
          %444 = vst.msk [vmem:[#allocation2 + $0x538] sm:$0xff] %vm276, 0
          %445 = vst.msk [vmem:[#allocation2 + $0x540] sm:$0xff] %vm276, 0
          %446 = vst.msk [vmem:[#allocation2 + $0x548] sm:$0xff] %vm276, 0
          %447 = vst.msk [vmem:[#allocation2 + $0x550] sm:$0xff] %vm276, 0
          %448 = vst.msk [vmem:[#allocation2 + $0x558] sm:$0xff] %vm276, 0
          %449 = vst.msk [vmem:[#allocation2 + $0x560] sm:$0xff] %vm276, 0
          %450 = vst.msk [vmem:[#allocation2 + $0x568] sm:$0xff] %vm276, 0
          %451 = vst.msk [vmem:[#allocation2 + $0x570] sm:$0xff] %vm276, 0
          %452 = vst.msk [vmem:[#allocation2 + $0x578] sm:$0xff] %vm276, 0
          %453 = vst.msk [vmem:[#allocation2 + $0x580] sm:$0xff] %vm276, 0
          %454 = vst.msk [vmem:[#allocation2 + $0x588] sm:$0xff] %vm276, 0
          %455 = vst.msk [vmem:[#allocation2 + $0x590] sm:$0xff] %vm276, 0
          %456 = vst.msk [vmem:[#allocation2 + $0x598] sm:$0xff] %vm276, 0
          %457 = vst.msk [vmem:[#allocation2 + $0x5a0] sm:$0xff] %vm276, 0
          %458 = vst.msk [vmem:[#allocation2 + $0x5a8] sm:$0xff] %vm276, 0
          %459 = vst.msk [vmem:[#allocation2 + $0x5b0] sm:$0xff] %vm276, 0
          %460 = vst.msk [vmem:[#allocation2 + $0x5b8] sm:$0xff] %vm276, 0
          %461 = vst.msk [vmem:[#allocation2 + $0x5c0] sm:$0xff] %vm276, 0
          %462 = vst.msk [vmem:[#allocation2 + $0x5c8] sm:$0xff] %vm276, 0
          %463 = vst.msk [vmem:[#allocation2 + $0x5d0] sm:$0xff] %vm276, 0
          %464 = vst.msk [vmem:[#allocation2 + $0x5d8] sm:$0xff] %vm276, 0
          %465 = vst.msk [vmem:[#allocation2 + $0x5e0] sm:$0xff] %vm276, 0
          %466 = vst.msk [vmem:[#allocation2 + $0x5e8] sm:$0xff] %vm276, 0
          %467 = vst.msk [vmem:[#allocation2 + $0x5f0] sm:$0xff] %vm276, 0
          %468 = vst.msk [vmem:[#allocation2 + $0x5f8] sm:$0xff] %vm276, 0
          %469 = vst.msk [vmem:[#allocation2 + $0x600] sm:$0xff] %vm276, 0
          %470 = vst.msk [vmem:[#allocation2 + $0x608] sm:$0xff] %vm276, 0
          %471 = vst.msk [vmem:[#allocation2 + $0x610] sm:$0xff] %vm276, 0
          %472 = vst.msk [vmem:[#allocation2 + $0x618] sm:$0xff] %vm276, 0
          %473 = vst.msk [vmem:[#allocation2 + $0x620] sm:$0xff] %vm276, 0
          %474 = vst.msk [vmem:[#allocation2 + $0x628] sm:$0xff] %vm276, 0
          %475 = vst.msk [vmem:[#allocation2 + $0x630] sm:$0xff] %vm276, 0
          %476 = vst.msk [vmem:[#allocation2 + $0x638] sm:$0xff] %vm276, 0
          %477 = vst.msk [vmem:[#allocation2 + $0x640] sm:$0xff] %vm276, 0
          %478 = vst.msk [vmem:[#allocation2 + $0x648] sm:$0xff] %vm276, 0
          %479 = vst.msk [vmem:[#allocation2 + $0x650] sm:$0xff] %vm276, 0
          %480 = vst.msk [vmem:[#allocation2 + $0x658] sm:$0xff] %vm276, 0
          %481 = vst.msk [vmem:[#allocation2 + $0x660] sm:$0xff] %vm276, 0
          %482 = vst.msk [vmem:[#allocation2 + $0x668] sm:$0xff] %vm276, 0
          %483 = vst.msk [vmem:[#allocation2 + $0x670] sm:$0xff] %vm276, 0
          %484 = vst.msk [vmem:[#allocation2 + $0x678] sm:$0xff] %vm276, 0
          %485 = vst.msk [vmem:[#allocation2 + $0x680] sm:$0xff] %vm276, 0
          %486 = vst.msk [vmem:[#allocation2 + $0x688] sm:$0xff] %vm276, 0
          %487 = vst.msk [vmem:[#allocation2 + $0x690] sm:$0xff] %vm276, 0
          %488 = vst.msk [vmem:[#allocation2 + $0x698] sm:$0xff] %vm276, 0
          %489 = vst.msk [vmem:[#allocation2 + $0x6a0] sm:$0xff] %vm276, 0
          %490 = vst.msk [vmem:[#allocation2 + $0x6a8] sm:$0xff] %vm276, 0
          %491 = vst.msk [vmem:[#allocation2 + $0x6b0] sm:$0xff] %vm276, 0
          %492 = vst.msk [vmem:[#allocation2 + $0x6b8] sm:$0xff] %vm276, 0
          %493 = vst.msk [vmem:[#allocation2 + $0x6c0] sm:$0xff] %vm276, 0
          %494 = vst.msk [vmem:[#allocation2 + $0x6c8] sm:$0xff] %vm276, 0
          %495 = vst.msk [vmem:[#allocation2 + $0x6d0] sm:$0xff] %vm276, 0
          %496 = vst.msk [vmem:[#allocation2 + $0x6d8] sm:$0xff] %vm276, 0
          %497 = vst.msk [vmem:[#allocation2 + $0x6e0] sm:$0xff] %vm276, 0
          %498 = vst.msk [vmem:[#allocation2 + $0x6e8] sm:$0xff] %vm276, 0
          %499 = vst.msk [vmem:[#allocation2 + $0x6f0] sm:$0xff] %vm276, 0
          %500 = vst.msk [vmem:[#allocation2 + $0x6f8] sm:$0xff] %vm276, 0
          %501 = vst.msk [vmem:[#allocation2 + $0x700] sm:$0xff] %vm276, 0
          %502 = vst.msk [vmem:[#allocation2 + $0x708] sm:$0xff] %vm276, 0
          %503 = vst.msk [vmem:[#allocation2 + $0x710] sm:$0xff] %vm276, 0
          %504 = vst.msk [vmem:[#allocation2 + $0x718] sm:$0xff] %vm276, 0
          %505 = vst.msk [vmem:[#allocation2 + $0x720] sm:$0xff] %vm276, 0
          %506 = vst.msk [vmem:[#allocation2 + $0x728] sm:$0xff] %vm276, 0
          %507 = vst.msk [vmem:[#allocation2 + $0x730] sm:$0xff] %vm276, 0
          %508 = vst.msk [vmem:[#allocation2 + $0x738] sm:$0xff] %vm276, 0
          %509 = vst.msk [vmem:[#allocation2 + $0x740] sm:$0xff] %vm276, 0
          %510 = vst.msk [vmem:[#allocation2 + $0x748] sm:$0xff] %vm276, 0
          %511 = vst.msk [vmem:[#allocation2 + $0x750] sm:$0xff] %vm276, 0
          %512 = vst.msk [vmem:[#allocation2 + $0x758] sm:$0xff] %vm276, 0
          %513 = vst.msk [vmem:[#allocation2 + $0x760] sm:$0xff] %vm276, 0
          %514 = vst.msk [vmem:[#allocation2 + $0x768] sm:$0xff] %vm276, 0
          %515 = vst.msk [vmem:[#allocation2 + $0x770] sm:$0xff] %vm276, 0
          %516 = vst.msk [vmem:[#allocation2 + $0x778] sm:$0xff] %vm276, 0
          %s517 = scalar_lea.vmem [#allocation2], 2688
          %518 = vst.msk [vmem:[%s517] sm:$0xff] %vm276, 0
          %519 = vst.msk [vmem:[%s517 + $0x8] sm:$0xff] %vm276, 0
          %520 = vst.msk [vmem:[%s517 + $0x10] sm:$0xff] %vm276, 0
          %521 = vst.msk [vmem:[%s517 + $0x18] sm:$0xff] %vm276, 0
          %522 = vst.msk [vmem:[%s517 + $0x20] sm:$0xff] %vm276, 0
          %523 = vst.msk [vmem:[%s517 + $0x28] sm:$0xff] %vm276, 0
          %524 = vst.msk [vmem:[%s517 + $0x30] sm:$0xff] %vm276, 0
          %525 = vst.msk [vmem:[%s517 + $0x38] sm:$0xff] %vm276, 0
          %526 = vst.msk [vmem:[%s517 + $0x40] sm:$0xff] %vm276, 0
          %527 = vst.msk [vmem:[%s517 + $0x48] sm:$0xff] %vm276, 0
          %528 = vst.msk [vmem:[%s517 + $0x50] sm:$0xff] %vm276, 0
          %529 = vst.msk [vmem:[%s517 + $0x58] sm:$0xff] %vm276, 0
          %530 = vst.msk [vmem:[%s517 + $0x60] sm:$0xff] %vm276, 0
          %531 = vst.msk [vmem:[%s517 + $0x68] sm:$0xff] %vm276, 0
          %532 = vst.msk [vmem:[%s517 + $0x70] sm:$0xff] %vm276, 0
          %533 = vst.msk [vmem:[%s517 + $0x78] sm:$0xff] %vm276, 0
          %534 = vst.msk [vmem:[%s517 + $0x80] sm:$0xff] %vm276, 0
          %535 = vst.msk [vmem:[%s517 + $0x88] sm:$0xff] %vm276, 0
          %536 = vst.msk [vmem:[%s517 + $0x90] sm:$0xff] %vm276, 0
          %537 = vst.msk [vmem:[%s517 + $0x98] sm:$0xff] %vm276, 0
          %538 = vst.msk [vmem:[%s517 + $0xa0] sm:$0xff] %vm276, 0
          %539 = vst.msk [vmem:[%s517 + $0xa8] sm:$0xff] %vm276, 0
          %540 = vst.msk [vmem:[%s517 + $0xb0] sm:$0xff] %vm276, 0
          %541 = vst.msk [vmem:[%s517 + $0xb8] sm:$0xff] %vm276, 0
          %542 = vst.msk [vmem:[%s517 + $0xc0] sm:$0xff] %vm276, 0
          %543 = vst.msk [vmem:[%s517 + $0xc8] sm:$0xff] %vm276, 0
          %544 = vst.msk [vmem:[%s517 + $0xd0] sm:$0xff] %vm276, 0
          %545 = vst.msk [vmem:[%s517 + $0xd8] sm:$0xff] %vm276, 0
          %546 = vst.msk [vmem:[%s517 + $0xe0] sm:$0xff] %vm276, 0
          %547 = vst.msk [vmem:[%s517 + $0xe8] sm:$0xff] %vm276, 0
          %548 = vst.msk [vmem:[%s517 + $0xf0] sm:$0xff] %vm276, 0
          %549 = vst.msk [vmem:[%s517 + $0xf8] sm:$0xff] %vm276, 0
          %550 = vst.msk [vmem:[%s517 + $0x100] sm:$0xff] %vm276, 0
          %551 = vst.msk [vmem:[%s517 + $0x108] sm:$0xff] %vm276, 0
          %552 = vst.msk [vmem:[%s517 + $0x110] sm:$0xff] %vm276, 0
          %553 = vst.msk [vmem:[%s517 + $0x118] sm:$0xff] %vm276, 0
          %554 = vst.msk [vmem:[%s517 + $0x120] sm:$0xff] %vm276, 0
          %555 = vst.msk [vmem:[%s517 + $0x128] sm:$0xff] %vm276, 0
          %556 = vst.msk [vmem:[%s517 + $0x130] sm:$0xff] %vm276, 0
          %557 = vst.msk [vmem:[%s517 + $0x138] sm:$0xff] %vm276, 0
          %558 = vst.msk [vmem:[%s517 + $0x140] sm:$0xff] %vm276, 0
          %559 = vst.msk [vmem:[%s517 + $0x148] sm:$0xff] %vm276, 0
          %560 = vst.msk [vmem:[%s517 + $0x150] sm:$0xff] %vm276, 0
          %561 = vst.msk [vmem:[%s517 + $0x158] sm:$0xff] %vm276, 0
          %562 = vst.msk [vmem:[%s517 + $0x160] sm:$0xff] %vm276, 0
          %563 = vst.msk [vmem:[%s517 + $0x168] sm:$0xff] %vm276, 0
          %564 = vst.msk [vmem:[%s517 + $0x170] sm:$0xff] %vm276, 0
          %565 = vst.msk [vmem:[%s517 + $0x178] sm:$0xff] %vm276, 0
          %566 = vst.msk [vmem:[%s517 + $0x180] sm:$0xff] %vm276, 0
          %567 = vst.msk [vmem:[%s517 + $0x188] sm:$0xff] %vm276, 0
          %568 = vst.msk [vmem:[%s517 + $0x190] sm:$0xff] %vm276, 0
          %569 = vst.msk [vmem:[%s517 + $0x198] sm:$0xff] %vm276, 0
          %570 = vst.msk [vmem:[%s517 + $0x1a0] sm:$0xff] %vm276, 0
          %571 = vst.msk [vmem:[%s517 + $0x1a8] sm:$0xff] %vm276, 0
          %572 = vst.msk [vmem:[%s517 + $0x1b0] sm:$0xff] %vm276, 0
          %573 = vst.msk [vmem:[%s517 + $0x1b8] sm:$0xff] %vm276, 0
          %574 = vst.msk [vmem:[%s517 + $0x1c0] sm:$0xff] %vm276, 0
          %575 = vst.msk [vmem:[%s517 + $0x1c8] sm:$0xff] %vm276, 0
          %576 = vst.msk [vmem:[%s517 + $0x1d0] sm:$0xff] %vm276, 0
          %577 = vst.msk [vmem:[%s517 + $0x1d8] sm:$0xff] %vm276, 0
          %578 = vst.msk [vmem:[%s517 + $0x1e0] sm:$0xff] %vm276, 0
          %579 = vst.msk [vmem:[%s517 + $0x1e8] sm:$0xff] %vm276, 0
          %580 = vst.msk [vmem:[%s517 + $0x1f0] sm:$0xff] %vm276, 0
          %581 = vst.msk [vmem:[%s517 + $0x1f8] sm:$0xff] %vm276, 0
          %582 = vst.msk [vmem:[%s517 + $0x200] sm:$0xff] %vm276, 0
          %583 = vst.msk [vmem:[%s517 + $0x208] sm:$0xff] %vm276, 0
          %584 = vst.msk [vmem:[%s517 + $0x210] sm:$0xff] %vm276, 0
          %585 = vst.msk [vmem:[%s517 + $0x218] sm:$0xff] %vm276, 0
          %586 = vst.msk [vmem:[%s517 + $0x220] sm:$0xff] %vm276, 0
          %587 = vst.msk [vmem:[%s517 + $0x228] sm:$0xff] %vm276, 0
          %588 = vst.msk [vmem:[%s517 + $0x230] sm:$0xff] %vm276, 0
          %589 = vst.msk [vmem:[%s517 + $0x238] sm:$0xff] %vm276, 0
          %590 = vst.msk [vmem:[%s517 + $0x240] sm:$0xff] %vm276, 0
          %591 = vst.msk [vmem:[%s517 + $0x248] sm:$0xff] %vm276, 0
          %592 = vst.msk [vmem:[%s517 + $0x250] sm:$0xff] %vm276, 0
          %593 = vst.msk [vmem:[%s517 + $0x258] sm:$0xff] %vm276, 0
          %594 = vst.msk [vmem:[%s517 + $0x260] sm:$0xff] %vm276, 0
          %595 = vst.msk [vmem:[%s517 + $0x268] sm:$0xff] %vm276, 0
          %596 = vst.msk [vmem:[%s517 + $0x270] sm:$0xff] %vm276, 0
          %597 = vst.msk [vmem:[%s517 + $0x278] sm:$0xff] %vm276, 0
          %598 = vst.msk [vmem:[%s517 + $0x280] sm:$0xff] %vm276, 0
          %599 = vst.msk [vmem:[%s517 + $0x288] sm:$0xff] %vm276, 0
          %600 = vst.msk [vmem:[%s517 + $0x290] sm:$0xff] %vm276, 0
          %601 = vst.msk [vmem:[%s517 + $0x298] sm:$0xff] %vm276, 0
          %602 = vst.msk [vmem:[%s517 + $0x2a0] sm:$0xff] %vm276, 0
          %603 = vst.msk [vmem:[%s517 + $0x2a8] sm:$0xff] %vm276, 0
          %604 = vst.msk [vmem:[%s517 + $0x2b0] sm:$0xff] %vm276, 0
          %605 = vst.msk [vmem:[%s517 + $0x2b8] sm:$0xff] %vm276, 0
          %606 = vst.msk [vmem:[%s517 + $0x2c0] sm:$0xff] %vm276, 0
          %607 = vst.msk [vmem:[%s517 + $0x2c8] sm:$0xff] %vm276, 0
          %608 = vst.msk [vmem:[%s517 + $0x2d0] sm:$0xff] %vm276, 0
          %609 = vst.msk [vmem:[%s517 + $0x2d8] sm:$0xff] %vm276, 0
          %610 = vst.msk [vmem:[%s517 + $0x2e0] sm:$0xff] %vm276, 0
          %611 = vst.msk [vmem:[%s517 + $0x2e8] sm:$0xff] %vm276, 0
          %612 = vst.msk [vmem:[%s517 + $0x2f0] sm:$0xff] %vm276, 0
          %613 = vst.msk [vmem:[%s517 + $0x2f8] sm:$0xff] %vm276, 0
          %614 = vst.msk [vmem:[%s517 + $0x300] sm:$0xff] %vm276, 0
          %615 = vst.msk [vmem:[%s517 + $0x308] sm:$0xff] %vm276, 0
          %616 = vst.msk [vmem:[%s517 + $0x310] sm:$0xff] %vm276, 0
          %617 = vst.msk [vmem:[%s517 + $0x318] sm:$0xff] %vm276, 0
          %618 = vst.msk [vmem:[%s517 + $0x320] sm:$0xff] %vm276, 0
          %619 = vst.msk [vmem:[%s517 + $0x328] sm:$0xff] %vm276, 0
          %620 = vst.msk [vmem:[%s517 + $0x330] sm:$0xff] %vm276, 0
          %621 = vst.msk [vmem:[%s517 + $0x338] sm:$0xff] %vm276, 0
          %622 = vst.msk [vmem:[%s517 + $0x340] sm:$0xff] %vm276, 0
          %623 = vst.msk [vmem:[%s517 + $0x348] sm:$0xff] %vm276, 0
          %624 = vst.msk [vmem:[%s517 + $0x350] sm:$0xff] %vm276, 0
          %625 = vst.msk [vmem:[%s517 + $0x358] sm:$0xff] %vm276, 0
          %626 = vst.msk [vmem:[%s517 + $0x360] sm:$0xff] %vm276, 0
          %627 = vst.msk [vmem:[%s517 + $0x368] sm:$0xff] %vm276, 0
          %628 = vst.msk [vmem:[%s517 + $0x370] sm:$0xff] %vm276, 0
          %629 = vst.msk [vmem:[%s517 + $0x378] sm:$0xff] %vm276, 0
          %630 = vst.msk [vmem:[%s517 + $0x380] sm:$0xff] %vm276, 0
          %631 = vst.msk [vmem:[%s517 + $0x388] sm:$0xff] %vm276, 0
          %632 = vst.msk [vmem:[%s517 + $0x390] sm:$0xff] %vm276, 0
          %633 = vst.msk [vmem:[%s517 + $0x398] sm:$0xff] %vm276, 0
          %634 = vst.msk [vmem:[%s517 + $0x3a0] sm:$0xff] %vm276, 0
          %635 = vst.msk [vmem:[%s517 + $0x3a8] sm:$0xff] %vm276, 0
          %636 = vst.msk [vmem:[%s517 + $0x3b0] sm:$0xff] %vm276, 0
          %637 = vst.msk [vmem:[%s517 + $0x3b8] sm:$0xff] %vm276, 0
          %638 = vst.msk [vmem:[%s517 + $0x3c0] sm:$0xff] %vm276, 0
          %639 = vst.msk [vmem:[%s517 + $0x3c8] sm:$0xff] %vm276, 0
          %640 = vst.msk [vmem:[%s517 + $0x3d0] sm:$0xff] %vm276, 0
          %641 = vst.msk [vmem:[%s517 + $0x3d8] sm:$0xff] %vm276, 0
          %642 = vst.msk [vmem:[%s517 + $0x3e0] sm:$0xff] %vm276, 0
          %643 = vst.msk [vmem:[%s517 + $0x3e8] sm:$0xff] %vm276, 0
          %644 = vst.msk [vmem:[%s517 + $0x3f0] sm:$0xff] %vm276, 0
          %645 = vst.msk [vmem:[%s517 + $0x3f8] sm:$0xff] %vm276, 0
          %646 = vst.msk [vmem:[%s517 + $0x400] sm:$0xff] %vm276, 0
          %647 = vst.msk [vmem:[%s517 + $0x408] sm:$0xff] %vm276, 0
          %648 = vst.msk [vmem:[%s517 + $0x410] sm:$0xff] %vm276, 0
          %649 = vst.msk [vmem:[%s517 + $0x418] sm:$0xff] %vm276, 0
          %650 = vst.msk [vmem:[%s517 + $0x420] sm:$0xff] %vm276, 0
          %651 = vst.msk [vmem:[%s517 + $0x428] sm:$0xff] %vm276, 0
          %652 = vst.msk [vmem:[%s517 + $0x430] sm:$0xff] %vm276, 0
          %653 = vst.msk [vmem:[%s517 + $0x438] sm:$0xff] %vm276, 0
          %654 = vst.msk [vmem:[%s517 + $0x440] sm:$0xff] %vm276, 0
          %655 = vst.msk [vmem:[%s517 + $0x448] sm:$0xff] %vm276, 0
          %656 = vst.msk [vmem:[%s517 + $0x450] sm:$0xff] %vm276, 0
          %657 = vst.msk [vmem:[%s517 + $0x458] sm:$0xff] %vm276, 0
          %658 = vst.msk [vmem:[%s517 + $0x460] sm:$0xff] %vm276, 0
          %659 = vst.msk [vmem:[%s517 + $0x468] sm:$0xff] %vm276, 0
          %660 = vst.msk [vmem:[%s517 + $0x470] sm:$0xff] %vm276, 0
          %661 = vst.msk [vmem:[%s517 + $0x478] sm:$0xff] %vm276, 0
          %662 = vst.msk [vmem:[%s517 + $0x480] sm:$0xff] %vm276, 0
          %663 = vst.msk [vmem:[%s517 + $0x488] sm:$0xff] %vm276, 0
          %664 = vst.msk [vmem:[%s517 + $0x490] sm:$0xff] %vm276, 0
          %665 = vst.msk [vmem:[%s517 + $0x498] sm:$0xff] %vm276, 0
          %666 = vst.msk [vmem:[%s517 + $0x4a0] sm:$0xff] %vm276, 0
          %667 = vst.msk [vmem:[%s517 + $0x4a8] sm:$0xff] %vm276, 0
          %668 = vst.msk [vmem:[%s517 + $0x4b0] sm:$0xff] %vm276, 0
          %669 = vst.msk [vmem:[%s517 + $0x4b8] sm:$0xff] %vm276, 0
          %670 = vst.msk [vmem:[%s517 + $0x4c0] sm:$0xff] %vm276, 0
          %671 = vst.msk [vmem:[%s517 + $0x4c8] sm:$0xff] %vm276, 0
          %672 = vst.msk [vmem:[%s517 + $0x4d0] sm:$0xff] %vm276, 0
          %673 = vst.msk [vmem:[%s517 + $0x4d8] sm:$0xff] %vm276, 0
          %674 = vst.msk [vmem:[%s517 + $0x4e0] sm:$0xff] %vm276, 0
          %675 = vst.msk [vmem:[%s517 + $0x4e8] sm:$0xff] %vm276, 0
          %676 = vst.msk [vmem:[%s517 + $0x4f0] sm:$0xff] %vm276, 0
          %677 = vst.msk [vmem:[%s517 + $0x4f8] sm:$0xff] %vm276, 0
          %678 = vst.msk [vmem:[%s517 + $0x500] sm:$0xff] %vm276, 0
          %679 = vst.msk [vmem:[%s517 + $0x508] sm:$0xff] %vm276, 0
          %680 = vst.msk [vmem:[%s517 + $0x510] sm:$0xff] %vm276, 0
          %681 = vst.msk [vmem:[%s517 + $0x518] sm:$0xff] %vm276, 0
          %682 = vst.msk [vmem:[%s517 + $0x520] sm:$0xff] %vm276, 0
          %683 = vst.msk [vmem:[%s517 + $0x528] sm:$0xff] %vm276, 0
          %684 = vst.msk [vmem:[%s517 + $0x530] sm:$0xff] %vm276, 0
          %685 = vst.msk [vmem:[%s517 + $0x538] sm:$0xff] %vm276, 0
          %686 = vst.msk [vmem:[%s517 + $0x540] sm:$0xff] %vm276, 0
          %687 = vst.msk [vmem:[%s517 + $0x548] sm:$0xff] %vm276, 0
          %688 = vst.msk [vmem:[%s517 + $0x550] sm:$0xff] %vm276, 0
          %689 = vst.msk [vmem:[%s517 + $0x558] sm:$0xff] %vm276, 0
          %690 = vst.msk [vmem:[%s517 + $0x560] sm:$0xff] %vm276, 0
          %691 = vst.msk [vmem:[%s517 + $0x568] sm:$0xff] %vm276, 0
          %692 = vst.msk [vmem:[%s517 + $0x570] sm:$0xff] %vm276, 0
          %693 = vst.msk [vmem:[%s517 + $0x578] sm:$0xff] %vm276, 0
          %694 = vst.msk [vmem:[%s517 + $0x580] sm:$0xff] %vm276, 0
          %695 = vst.msk [vmem:[%s517 + $0x588] sm:$0xff] %vm276, 0
          %696 = vst.msk [vmem:[%s517 + $0x590] sm:$0xff] %vm276, 0
          %697 = vst.msk [vmem:[%s517 + $0x598] sm:$0xff] %vm276, 0
          %698 = vst.msk [vmem:[%s517 + $0x5a0] sm:$0xff] %vm276, 0
          %699 = vst.msk [vmem:[%s517 + $0x5a8] sm:$0xff] %vm276, 0
          %700 = vst.msk [vmem:[%s517 + $0x5b0] sm:$0xff] %vm276, 0
          %701 = vst.msk [vmem:[%s517 + $0x5b8] sm:$0xff] %vm276, 0
          %702 = vst.msk [vmem:[%s517 + $0x5c0] sm:$0xff] %vm276, 0
          %703 = vst.msk [vmem:[%s517 + $0x5c8] sm:$0xff] %vm276, 0
          %704 = vst.msk [vmem:[%s517 + $0x5d0] sm:$0xff] %vm276, 0
          %705 = vst.msk [vmem:[%s517 + $0x5d8] sm:$0xff] %vm276, 0
          %706 = vst.msk [vmem:[%s517 + $0x5e0] sm:$0xff] %vm276, 0
          %707 = vst.msk [vmem:[%s517 + $0x5e8] sm:$0xff] %vm276, 0
          %708 = vst.msk [vmem:[%s517 + $0x5f0] sm:$0xff] %vm276, 0
          %709 = vst.msk [vmem:[%s517 + $0x5f8] sm:$0xff] %vm276, 0
          %710 = vst.msk [vmem:[%s517 + $0x600] sm:$0xff] %vm276, 0
          %711 = vst.msk [vmem:[%s517 + $0x608] sm:$0xff] %vm276, 0
          %712 = vst.msk [vmem:[%s517 + $0x610] sm:$0xff] %vm276, 0
          %713 = vst.msk [vmem:[%s517 + $0x618] sm:$0xff] %vm276, 0
          %714 = vst.msk [vmem:[%s517 + $0x620] sm:$0xff] %vm276, 0
          %715 = vst.msk [vmem:[%s517 + $0x628] sm:$0xff] %vm276, 0
          %716 = vst.msk [vmem:[%s517 + $0x630] sm:$0xff] %vm276, 0
          %717 = vst.msk [vmem:[%s517 + $0x638] sm:$0xff] %vm276, 0
          %718 = vst.msk [vmem:[%s517 + $0x640] sm:$0xff] %vm276, 0
          %719 = vst.msk [vmem:[%s517 + $0x648] sm:$0xff] %vm276, 0
          %720 = vst.msk [vmem:[%s517 + $0x650] sm:$0xff] %vm276, 0
          %721 = vst.msk [vmem:[%s517 + $0x658] sm:$0xff] %vm276, 0
          %722 = vst.msk [vmem:[%s517 + $0x660] sm:$0xff] %vm276, 0
          %723 = vst.msk [vmem:[%s517 + $0x668] sm:$0xff] %vm276, 0
          %724 = vst.msk [vmem:[%s517 + $0x670] sm:$0xff] %vm276, 0
          %725 = vst.msk [vmem:[%s517 + $0x678] sm:$0xff] %vm276, 0
          %726 = vst.msk [vmem:[%s517 + $0x680] sm:$0xff] %vm276, 0
          %727 = vst.msk [vmem:[%s517 + $0x688] sm:$0xff] %vm276, 0
          %728 = vst.msk [vmem:[%s517 + $0x690] sm:$0xff] %vm276, 0
          %729 = vst.msk [vmem:[%s517 + $0x698] sm:$0xff] %vm276, 0
          %730 = vst.msk [vmem:[%s517 + $0x6a0] sm:$0xff] %vm276, 0
          %731 = vst.msk [vmem:[%s517 + $0x6a8] sm:$0xff] %vm276, 0
          %732 = vst.msk [vmem:[%s517 + $0x6b0] sm:$0xff] %vm276, 0
          %733 = vst.msk [vmem:[%s517 + $0x6b8] sm:$0xff] %vm276, 0
          %734 = vst.msk [vmem:[%s517 + $0x6c0] sm:$0xff] %vm276, 0
          %735 = vst.msk [vmem:[%s517 + $0x6c8] sm:$0xff] %vm276, 0
          %736 = vst.msk [vmem:[%s517 + $0x6d0] sm:$0xff] %vm276, 0
          %737 = vst.msk [vmem:[%s517 + $0x6d8] sm:$0xff] %vm276, 0
          %738 = vst.msk [vmem:[%s517 + $0x6e0] sm:$0xff] %vm276, 0
          %739 = vst.msk [vmem:[%s517 + $0x6e8] sm:$0xff] %vm276, 0
          %740 = vst.msk [vmem:[%s517 + $0x6f0] sm:$0xff] %vm276, 0
          %741 = vst.msk [vmem:[%s517 + $0x6f8] sm:$0xff] %vm276, 0
          %742 = vst.msk [vmem:[%s517 + $0x700] sm:$0xff] %vm276, 0
          %743 = vst.msk [vmem:[%s517 + $0x708] sm:$0xff] %vm276, 0
          %744 = vst.msk [vmem:[%s517 + $0x710] sm:$0xff] %vm276, 0
          %745 = vst.msk [vmem:[%s517 + $0x718] sm:$0xff] %vm276, 0
          %746 = vst.msk [vmem:[%s517 + $0x720] sm:$0xff] %vm276, 0
          %747 = vst.msk [vmem:[%s517 + $0x728] sm:$0xff] %vm276, 0
          %748 = vst.msk [vmem:[%s517 + $0x730] sm:$0xff] %vm276, 0
          %749 = vst.msk [vmem:[%s517 + $0x738] sm:$0xff] %vm276, 0
          %750 = vst.msk [vmem:[%s517 + $0x740] sm:$0xff] %vm276, 0
          %751 = vst.msk [vmem:[%s517 + $0x748] sm:$0xff] %vm276, 0
          %752 = vst.msk [vmem:[%s517 + $0x750] sm:$0xff] %vm276, 0
          %753 = vst.msk [vmem:[%s517 + $0x758] sm:$0xff] %vm276, 0
          %754 = vst.msk [vmem:[%s517 + $0x760] sm:$0xff] %vm276, 0
          %755 = vst.msk [vmem:[%s517 + $0x768] sm:$0xff] %vm276, 0
          %756 = vst.msk [vmem:[%s517 + $0x770] sm:$0xff] %vm276, 0
          %757 = vst.msk [vmem:[%s517 + $0x778] sm:$0xff] %vm276, 0
          %s758 = scalar_lea.vmem [#allocation2], 1920
          %759 = vst.msk [vmem:[%s758] sm:$0xff] %vm276, 0
          %760 = vst.msk [vmem:[%s758 + $0x8] sm:$0xff] %vm276, 0
          %vm761 = vcmask 27648
          %762 = vst.msk [vmem:[%s758 + $0x10] sm:$0xf] %vm761, 0
          %763 = vst.msk [vmem:[%s758 + $0x30] sm:$0xff] %vm276, 0
          %764 = vst.msk [vmem:[%s758 + $0x38] sm:$0xff] %vm276, 0
          %765 = vst.msk [vmem:[%s758 + $0x40] sm:$0xf] %vm761, 0
          %766 = vst.msk [vmem:[%s758 + $0x60] sm:$0xff] %vm276, 0
          %767 = vst.msk [vmem:[%s758 + $0x68] sm:$0xff] %vm276, 0
          %768 = vst.msk [vmem:[%s758 + $0x70] sm:$0xf] %vm761, 0
          %769 = vst.msk [vmem:[%s758 + $0x90] sm:$0xff] %vm276, 0
          %770 = vst.msk [vmem:[%s758 + $0x98] sm:$0xff] %vm276, 0
          %771 = vst.msk [vmem:[%s758 + $0xa0] sm:$0xf] %vm761, 0
          %772 = vst.msk [vmem:[%s758 + $0xc0] sm:$0xff] %vm276, 0
          %773 = vst.msk [vmem:[%s758 + $0xc8] sm:$0xff] %vm276, 0
          %774 = vst.msk [vmem:[%s758 + $0xd0] sm:$0xf] %vm761, 0
          %775 = vst.msk [vmem:[%s758 + $0xf0] sm:$0xff] %vm276, 0
          %776 = vst.msk [vmem:[%s758 + $0xf8] sm:$0xff] %vm276, 0
          %777 = vst.msk [vmem:[%s758 + $0x100] sm:$0xf] %vm761, 0
          %778 = vst.msk [vmem:[%s758 + $0x120] sm:$0xff] %vm276, 0
          %779 = vst.msk [vmem:[%s758 + $0x128] sm:$0xff] %vm276, 0
          %780 = vst.msk [vmem:[%s758 + $0x130] sm:$0xf] %vm761, 0
          %781 = vst.msk [vmem:[%s758 + $0x150] sm:$0xff] %vm276, 0
          %782 = vst.msk [vmem:[%s758 + $0x158] sm:$0xff] %vm276, 0
          %783 = vst.msk [vmem:[%s758 + $0x160] sm:$0xf] %vm761, 0
          %784 = vst.msk [vmem:[%s758 + $0x180] sm:$0xff] %vm276, 0
          %785 = vst.msk [vmem:[%s758 + $0x188] sm:$0xff] %vm276, 0
          %786 = vst.msk [vmem:[%s758 + $0x190] sm:$0xf] %vm761, 0
          %787 = vst.msk [vmem:[%s758 + $0x1b0] sm:$0xff] %vm276, 0
          %788 = vst.msk [vmem:[%s758 + $0x1b8] sm:$0xff] %vm276, 0
          %789 = vst.msk [vmem:[%s758 + $0x1c0] sm:$0xf] %vm761, 0
          %790 = vst.msk [vmem:[%s758 + $0x1e0] sm:$0xff] %vm276, 0
          %791 = vst.msk [vmem:[%s758 + $0x1e8] sm:$0xff] %vm276, 0
          %792 = vst.msk [vmem:[%s758 + $0x1f0] sm:$0xf] %vm761, 0
          %793 = vst.msk [vmem:[%s758 + $0x210] sm:$0xff] %vm276, 0
          %794 = vst.msk [vmem:[%s758 + $0x218] sm:$0xff] %vm276, 0
          %795 = vst.msk [vmem:[%s758 + $0x220] sm:$0xf] %vm761, 0
          %796 = vst.msk [vmem:[%s758 + $0x240] sm:$0xff] %vm276, 0
          %797 = vst.msk [vmem:[%s758 + $0x248] sm:$0xff] %vm276, 0
          %798 = vst.msk [vmem:[%s758 + $0x250] sm:$0xf] %vm761, 0
          %799 = vst.msk [vmem:[%s758 + $0x270] sm:$0xff] %vm276, 0
          %800 = vst.msk [vmem:[%s758 + $0x278] sm:$0xff] %vm276, 0
          %801 = vst.msk [vmem:[%s758 + $0x280] sm:$0xf] %vm761, 0
          %802 = vst.msk [vmem:[%s758 + $0x2a0] sm:$0xff] %vm276, 0
          %803 = vst.msk [vmem:[%s758 + $0x2a8] sm:$0xff] %vm276, 0
          %804 = vst.msk [vmem:[%s758 + $0x2b0] sm:$0xf] %vm761, 0
          %805 = vst.msk [vmem:[%s758 + $0x2d0] sm:$0xff] %vm276, 0
          %806 = vst.msk [vmem:[%s758 + $0x2d8] sm:$0xff] %vm276, 0
          %807 = vst.msk [vmem:[%s758 + $0x2e0] sm:$0xf] %vm761, 0
          %vm808 = vcmask 31748
          %809 = vst.msk [vmem:[%s758 + $0x18] sm:$0xf0] %vm808, 0
          %810 = vst.msk [vmem:[%s758 + $0x20] sm:$0xff] %vm276, 0
          %811 = vst.msk [vmem:[%s758 + $0x28] sm:$0xff] %vm276, 0
          %812 = vst.msk [vmem:[%s758 + $0x48] sm:$0xf0] %vm808, 0
          %813 = vst.msk [vmem:[%s758 + $0x50] sm:$0xff] %vm276, 0
          %814 = vst.msk [vmem:[%s758 + $0x58] sm:$0xff] %vm276, 0
          %815 = vst.msk [vmem:[%s758 + $0x78] sm:$0xf0] %vm808, 0
          %816 = vst.msk [vmem:[%s758 + $0x80] sm:$0xff] %vm276, 0
          %817 = vst.msk [vmem:[%s758 + $0x88] sm:$0xff] %vm276, 0
          %818 = vst.msk [vmem:[%s758 + $0xa8] sm:$0xf0] %vm808, 0
          %819 = vst.msk [vmem:[%s758 + $0xb0] sm:$0xff] %vm276, 0
          %820 = vst.msk [vmem:[%s758 + $0xb8] sm:$0xff] %vm276, 0
          %821 = vst.msk [vmem:[%s758 + $0xd8] sm:$0xf0] %vm808, 0
          %822 = vst.msk [vmem:[%s758 + $0xe0] sm:$0xff] %vm276, 0
          %823 = vst.msk [vmem:[%s758 + $0xe8] sm:$0xff] %vm276, 0
          %824 = vst.msk [vmem:[%s758 + $0x108] sm:$0xf0] %vm808, 0
          %825 = vst.msk [vmem:[%s758 + $0x110] sm:$0xff] %vm276, 0
          %826 = vst.msk [vmem:[%s758 + $0x118] sm:$0xff] %vm276, 0
          %827 = vst.msk [vmem:[%s758 + $0x138] sm:$0xf0] %vm808, 0
          %828 = vst.msk [vmem:[%s758 + $0x140] sm:$0xff] %vm276, 0
          %829 = vst.msk [vmem:[%s758 + $0x148] sm:$0xff] %vm276, 0
          %830 = vst.msk [vmem:[%s758 + $0x168] sm:$0xf0] %vm808, 0
          %831 = vst.msk [vmem:[%s758 + $0x170] sm:$0xff] %vm276, 0
          %832 = vst.msk [vmem:[%s758 + $0x178] sm:$0xff] %vm276, 0
          %833 = vst.msk [vmem:[%s758 + $0x198] sm:$0xf0] %vm808, 0
          %834 = vst.msk [vmem:[%s758 + $0x1a0] sm:$0xff] %vm276, 0
          %835 = vst.msk [vmem:[%s758 + $0x1a8] sm:$0xff] %vm276, 0
          %836 = vst.msk [vmem:[%s758 + $0x1c8] sm:$0xf0] %vm808, 0
          %837 = vst.msk [vmem:[%s758 + $0x1d0] sm:$0xff] %vm276, 0
          %838 = vst.msk [vmem:[%s758 + $0x1d8] sm:$0xff] %vm276, 0
          %839 = vst.msk [vmem:[%s758 + $0x1f8] sm:$0xf0] %vm808, 0
          %840 = vst.msk [vmem:[%s758 + $0x200] sm:$0xff] %vm276, 0
          %841 = vst.msk [vmem:[%s758 + $0x208] sm:$0xff] %vm276, 0
          %842 = vst.msk [vmem:[%s758 + $0x228] sm:$0xf0] %vm808, 0
          %843 = vst.msk [vmem:[%s758 + $0x230] sm:$0xff] %vm276, 0
          %844 = vst.msk [vmem:[%s758 + $0x238] sm:$0xff] %vm276, 0
          %845 = vst.msk [vmem:[%s758 + $0x258] sm:$0xf0] %vm808, 0
          %846 = vst.msk [vmem:[%s758 + $0x260] sm:$0xff] %vm276, 0
          %847 = vst.msk [vmem:[%s758 + $0x268] sm:$0xff] %vm276, 0
          %848 = vst.msk [vmem:[%s758 + $0x288] sm:$0xf0] %vm808, 0
          %849 = vst.msk [vmem:[%s758 + $0x290] sm:$0xff] %vm276, 0
          %850 = vst.msk [vmem:[%s758 + $0x298] sm:$0xff] %vm276, 0
          %851 = vst.msk [vmem:[%s758 + $0x2b8] sm:$0xf0] %vm808, 0
          %852 = vst.msk [vmem:[%s758 + $0x2c0] sm:$0xff] %vm276, 0
          %853 = vst.msk [vmem:[%s758 + $0x2c8] sm:$0xff] %vm276, 0
          %854 = vst.msk [vmem:[%s758 + $0x2e8] sm:$0xf0] %vm808, 0
          %855 = vst.msk [vmem:[%s758 + $0x2f0] sm:$0xff] %vm276, 0
          %856 = vst.msk [vmem:[%s758 + $0x2f8] sm:$0xff] %vm276, 0
        $region44: #{tpu_custom_call.1} parent=39 // pred_fallthru
          _
        %v857 = vld [vmem:[%s265] sm:$0xf]
        %v858 = vld [vmem:[%s265 + $0x4] sm:$0xf]
        %v859 = vld [vmem:[%s265 + $0x8] sm:$0xf]
        %v860 = vld [vmem:[%s265 + $0xc] sm:$0xf]
        %v861 = vld [vmem:[%s265 + $0x10] sm:$0xf]
        %v862 = vld [vmem:[%s265 + $0x14] sm:$0xf]
        %v863 = vld [vmem:[%s265 + $0x18] sm:$0xf]
        %v864 = vld [vmem:[%s265 + $0x1c] sm:$0xf]
        %v865 = vld [vmem:[%s265 + $0x20] sm:$0xf]
        %v866 = vld [vmem:[%s265 + $0x24] sm:$0xf]
        %v867 = vld [vmem:[%s265 + $0x28] sm:$0xf]
        %v868 = vld [vmem:[%s265 + $0x2c] sm:$0xf]
        %v869 = vld [vmem:[%s265 + $0x30] sm:$0xf]
        %v870 = vld [vmem:[%s265 + $0x34] sm:$0xf]
        %v871 = vld [vmem:[%s265 + $0x38] sm:$0xf]
        %v872 = vld [vmem:[%s265 + $0x3c] sm:$0xf]
        %v873 = vld [vmem:[%s265 + $0x40] sm:$0xf]
        %v874 = vld [vmem:[%s265 + $0x44] sm:$0xf]
        %v875 = vld [vmem:[%s265 + $0x48] sm:$0xf]
        %v876 = vld [vmem:[%s265 + $0x4c] sm:$0xf]
        %v877 = vld [vmem:[%s265 + $0x50] sm:$0xf]
        %v878 = vld [vmem:[%s265 + $0x54] sm:$0xf]
        %v879 = vld [vmem:[%s265 + $0x58] sm:$0xf]
        %v880 = vld [vmem:[%s265 + $0x5c] sm:$0xf]
        %v881 = vld [vmem:[%s265 + $0x60] sm:$0xf]
        %v882 = vld [vmem:[%s265 + $0x64] sm:$0xf]
        %v883 = vld [vmem:[%s265 + $0x68] sm:$0xf]
        %v884 = vld [vmem:[%s265 + $0x6c] sm:$0xf]
        %v885 = vld [vmem:[%s265 + $0x70] sm:$0xf]
        %v886 = vld [vmem:[%s265 + $0x74] sm:$0xf]
        %v887 = vld [vmem:[%s265 + $0x78] sm:$0xf]
        %v888 = vld [vmem:[%s265 + $0x7c] sm:$0xf]
        %v921 = vunpack.c.l.b16 %v857
        %v922 = vunpack.c.l.b16 %v858
        %v923 = vunpack.c.l.b16 %v859
        %v924 = vunpack.c.l.b16 %v860
        %v925 = vunpack.c.l.b16 %v861
        %v926 = vunpack.c.l.b16 %v862
        %v927 = vunpack.c.l.b16 %v863
        %v928 = vunpack.c.l.b16 %v864
        %v929 = vunpack.c.l.b16 %v865
        %v930 = vunpack.c.l.b16 %v866
        %v931 = vunpack.c.l.b16 %v867
        %v932 = vunpack.c.l.b16 %v868
        %v933 = vunpack.c.l.b16 %v869
        %v934 = vunpack.c.l.b16 %v870
        %v935 = vunpack.c.l.b16 %v871
        %v936 = vunpack.c.l.b16 %v872
        %v937 = vunpack.c.l.b16 %v873
        %v938 = vunpack.c.l.b16 %v874
        %v939 = vunpack.c.l.b16 %v875
        %v940 = vunpack.c.l.b16 %v876
        %v941 = vunpack.c.l.b16 %v877
        %v942 = vunpack.c.l.b16 %v878
        %v943 = vunpack.c.l.b16 %v879
        %v944 = vunpack.c.l.b16 %v880
        %v945 = vunpack.c.l.b16 %v881
        %v946 = vunpack.c.l.b16 %v882
        %v947 = vunpack.c.l.b16 %v883
        %v948 = vunpack.c.l.b16 %v884
        %v949 = vunpack.c.l.b16 %v885
        %v950 = vunpack.c.l.b16 %v886
        %v951 = vunpack.c.l.b16 %v887
        %v952 = vunpack.c.l.b16 %v888
        %v953 = vpack.c.b16 %v921, %v921
        %v954 = vpack.c.b16 %v922, %v922
        %v955 = vpack.c.b16 %v923, %v923
        %v956 = vpack.c.b16 %v924, %v924
        %v957 = vpack.c.b16 %v925, %v925
        %v958 = vpack.c.b16 %v926, %v926
        %v959 = vpack.c.b16 %v927, %v927
        %v960 = vpack.c.b16 %v928, %v928
        %v961 = vpack.c.b16 %v929, %v929
        %v962 = vpack.c.b16 %v930, %v930
        %v963 = vpack.c.b16 %v931, %v931
        %v964 = vpack.c.b16 %v932, %v932
        %v965 = vpack.c.b16 %v933, %v933
        %v966 = vpack.c.b16 %v934, %v934
        %v967 = vpack.c.b16 %v935, %v935
        %v968 = vpack.c.b16 %v936, %v936
        %v969 = vpack.c.b16 %v937, %v937
        %v970 = vpack.c.b16 %v938, %v938
        %v971 = vpack.c.b16 %v939, %v939
        %v972 = vpack.c.b16 %v940, %v940
        %v973 = vpack.c.b16 %v941, %v941
        %v974 = vpack.c.b16 %v942, %v942
        %v975 = vpack.c.b16 %v943, %v943
        %v976 = vpack.c.b16 %v944, %v944
        %v977 = vpack.c.b16 %v945, %v945
        %v978 = vpack.c.b16 %v946, %v946
        %v979 = vpack.c.b16 %v947, %v947
        %v980 = vpack.c.b16 %v948, %v948
        %v981 = vpack.c.b16 %v949, %v949
        %v982 = vpack.c.b16 %v950, %v950
        %v983 = vpack.c.b16 %v951, %v951
        %v984 = vpack.c.b16 %v952, %v952
        %s1017 = scalar_lea.vmem [#allocation2], 1920
        %vm1018 = vcmask 31748
        %1019 = vst.msk [vmem:[%s1017 + $0x10] sm:$0xf0] %vm1018, %v953
        %vm1020 = vcmask 27648
        %1021 = vst.msk [vmem:[%s1017 + $0x18] sm:$0xf] %vm1020, %v954
        %1022 = vst.msk [vmem:[%s1017 + $0x40] sm:$0xf0] %vm1018, %v955
        %1023 = vst.msk [vmem:[%s1017 + $0x48] sm:$0xf] %vm1020, %v956
        %1024 = vst.msk [vmem:[%s1017 + $0x70] sm:$0xf0] %vm1018, %v957
        %1025 = vst.msk [vmem:[%s1017 + $0x78] sm:$0xf] %vm1020, %v958
        %1026 = vst.msk [vmem:[%s1017 + $0xa0] sm:$0xf0] %vm1018, %v959
        %1027 = vst.msk [vmem:[%s1017 + $0xa8] sm:$0xf] %vm1020, %v960
        %1028 = vst.msk [vmem:[%s1017 + $0xd0] sm:$0xf0] %vm1018, %v961
        %1029 = vst.msk [vmem:[%s1017 + $0xd8] sm:$0xf] %vm1020, %v962
        %1030 = vst.msk [vmem:[%s1017 + $0x100] sm:$0xf0] %vm1018, %v963
        %1031 = vst.msk [vmem:[%s1017 + $0x108] sm:$0xf] %vm1020, %v964
        %1032 = vst.msk [vmem:[%s1017 + $0x130] sm:$0xf0] %vm1018, %v965
        %1033 = vst.msk [vmem:[%s1017 + $0x138] sm:$0xf] %vm1020, %v966
        %1034 = vst.msk [vmem:[%s1017 + $0x160] sm:$0xf0] %vm1018, %v967
        %1035 = vst.msk [vmem:[%s1017 + $0x168] sm:$0xf] %vm1020, %v968
        %1036 = vst.msk [vmem:[%s1017 + $0x190] sm:$0xf0] %vm1018, %v969
        %1037 = vst.msk [vmem:[%s1017 + $0x198] sm:$0xf] %vm1020, %v970
        %1038 = vst.msk [vmem:[%s1017 + $0x1c0] sm:$0xf0] %vm1018, %v971
        %1039 = vst.msk [vmem:[%s1017 + $0x1c8] sm:$0xf] %vm1020, %v972
        %1040 = vst.msk [vmem:[%s1017 + $0x1f0] sm:$0xf0] %vm1018, %v973
        %1041 = vst.msk [vmem:[%s1017 + $0x1f8] sm:$0xf] %vm1020, %v974
        %1042 = vst.msk [vmem:[%s1017 + $0x220] sm:$0xf0] %vm1018, %v975
        %1043 = vst.msk [vmem:[%s1017 + $0x228] sm:$0xf] %vm1020, %v976
        %1044 = vst.msk [vmem:[%s1017 + $0x250] sm:$0xf0] %vm1018, %v977
        %1045 = vst.msk [vmem:[%s1017 + $0x258] sm:$0xf] %vm1020, %v978
        %1046 = vst.msk [vmem:[%s1017 + $0x280] sm:$0xf0] %vm1018, %v979
        %1047 = vst.msk [vmem:[%s1017 + $0x288] sm:$0xf] %vm1020, %v980
        %1048 = vst.msk [vmem:[%s1017 + $0x2b0] sm:$0xf0] %vm1018, %v981
        %1049 = vst.msk [vmem:[%s1017 + $0x2b8] sm:$0xf] %vm1020, %v982
        %1050 = vst.msk [vmem:[%s1017 + $0x2e0] sm:$0xf0] %vm1018, %v983
        %1051 = vst.msk [vmem:[%s1017 + $0x2e8] sm:$0xf] %vm1020, %v984
        %v1052 = vld [vmem:[%s1] sm:$0x3]
        %s1053 = sadd.s32 %s271, 40
        %s1054 = smul.u32 %s1053, 6
        %s1055 = smul.addr %s1054, 8
        %s1056 = scalar_lea.vmem [#allocation2], %s1055
        %v1057 = vld [vmem:[%s1056 + $0x10] sm:$0xf0]
        %v1058 = vld [vmem:[%s1056 + $0x18] sm:$0xf]
        %v1059 = vld [vmem:[%s1056 + $0x40] sm:$0xf0]
        %v1060 = vld [vmem:[%s1056 + $0x48] sm:$0xf]
        %v1061 = vld [vmem:[%s1056 + $0x70] sm:$0xf0]
        %v1062 = vld [vmem:[%s1056 + $0x78] sm:$0xf]
        %v1063 = vld [vmem:[%s1056 + $0xa0] sm:$0xf0]
        %v1064 = vld [vmem:[%s1056 + $0xa8] sm:$0xf]
        %v1065 = vld [vmem:[%s1056 + $0xd0] sm:$0xf0]
        %v1066 = vld [vmem:[%s1056 + $0xd8] sm:$0xf]
        %v1067 = vld [vmem:[%s1056 + $0x100] sm:$0xf0]
        %v1068 = vld [vmem:[%s1056 + $0x108] sm:$0xf]
        %v1069 = vld [vmem:[%s1056 + $0x130] sm:$0xf0]
        %v1070 = vld [vmem:[%s1056 + $0x138] sm:$0xf]
        %v1071 = vld [vmem:[%s1056 + $0x160] sm:$0xf0]
        %v1072 = vld [vmem:[%s1056 + $0x168] sm:$0xf]
        %v1073 = vld [vmem:[%s1056 + $0x190] sm:$0xf0]
        %v1074 = vld [vmem:[%s1056 + $0x198] sm:$0xf]
        %v1075 = vld [vmem:[%s1056 + $0x1c0] sm:$0xf0]
        %v1076 = vld [vmem:[%s1056 + $0x1c8] sm:$0xf]
        %v1077 = vld [vmem:[%s1056 + $0x1f0] sm:$0xf0]
        %v1078 = vld [vmem:[%s1056 + $0x1f8] sm:$0xf]
        %v1079 = vld [vmem:[%s1056 + $0x220] sm:$0xf0]
        %v1080 = vld [vmem:[%s1056 + $0x228] sm:$0xf]
        %v1081 = vld [vmem:[%s1056 + $0x250] sm:$0xf0]
        %v1082 = vld [vmem:[%s1056 + $0x258] sm:$0xf]
        %v1083 = vld [vmem:[%s1056 + $0x280] sm:$0xf0]
        %v1084 = vld [vmem:[%s1056 + $0x288] sm:$0xf]
        %v1085 = vld [vmem:[%s1056 + $0x2b0] sm:$0xf0]
        %v1086 = vld [vmem:[%s1056 + $0x2b8] sm:$0xf]
        %v1087 = vld [vmem:[%s1056 + $0x2e0] sm:$0xf0]
        %v1088 = vld [vmem:[%s1056 + $0x2e8] sm:$0xf]
        %vm1121 = vcmask 1043456
        %v1122 = vrot.slane %v1057, 4
        %v1123 = vrot.slane %v1058, 4
        %v1124 = vsel %vm1121, %v1122, %v1123
        %v1125 = vrot.slane %v1059, 4
        %v1126 = vrot.slane %v1060, 4
        %v1127 = vsel %vm1121, %v1125, %v1126
        %v1128 = vrot.slane %v1061, 4
        %v1129 = vrot.slane %v1062, 4
        %v1130 = vsel %vm1121, %v1128, %v1129
        %v1131 = vrot.slane %v1063, 4
        %v1132 = vrot.slane %v1064, 4
        %v1133 = vsel %vm1121, %v1131, %v1132
        %v1134 = vrot.slane %v1065, 4
        %v1135 = vrot.slane %v1066, 4
        %v1136 = vsel %vm1121, %v1134, %v1135
        %v1137 = vrot.slane %v1067, 4
        %v1138 = vrot.slane %v1068, 4
        %v1139 = vsel %vm1121, %v1137, %v1138
        %v1140 = vrot.slane %v1069, 4
        %v1141 = vrot.slane %v1070, 4
        %v1142 = vsel %vm1121, %v1140, %v1141
        %v1143 = vrot.slane %v1071, 4
        %v1144 = vrot.slane %v1072, 4
        %v1145 = vsel %vm1121, %v1143, %v1144
        %v1146 = vrot.slane %v1073, 4
        %v1147 = vrot.slane %v1074, 4
        %v1148 = vsel %vm1121, %v1146, %v1147
        %v1149 = vrot.slane %v1075, 4
        %v1150 = vrot.slane %v1076, 4
        %v1151 = vsel %vm1121, %v1149, %v1150
        %v1152 = vrot.slane %v1077, 4
        %v1153 = vrot.slane %v1078, 4
        %v1154 = vsel %vm1121, %v1152, %v1153
        %v1155 = vrot.slane %v1079, 4
        %v1156 = vrot.slane %v1080, 4
        %v1157 = vsel %vm1121, %v1155, %v1156
        %v1158 = vrot.slane %v1081, 4
        %v1159 = vrot.slane %v1082, 4
        %v1160 = vsel %vm1121, %v1158, %v1159
        %v1161 = vrot.slane %v1083, 4
        %v1162 = vrot.slane %v1084, 4
        %v1163 = vsel %vm1121, %v1161, %v1162
        %v1164 = vrot.slane %v1085, 4
        %v1165 = vrot.slane %v1086, 4
        %v1166 = vsel %vm1121, %v1164, %v1165
        %v1167 = vrot.slane %v1087, 4
        %v1168 = vrot.slane %v1088, 4
        %v1169 = vsel %vm1121, %v1167, %v1168
        %vm1170 = vcmask 31744
        %v1172 = vsel %vm1170, %v1124, 0
        %v1175 = vsel %vm1170, %v1127, 0
        %v1178 = vsel %vm1170, %v1130, 0
        %v1181 = vsel %vm1170, %v1133, 0
        %v1184 = vsel %vm1170, %v1136, 0
        %v1187 = vsel %vm1170, %v1139, 0
        %v1190 = vsel %vm1170, %v1142, 0
        %v1193 = vsel %vm1170, %v1145, 0
        %v1196 = vsel %vm1170, %v1148, 0
        %v1199 = vsel %vm1170, %v1151, 0
        %v1202 = vsel %vm1170, %v1154, 0
        %v1205 = vsel %vm1170, %v1157, 0
        %v1208 = vsel %vm1170, %v1160, 0
        %v1211 = vsel %vm1170, %v1163, 0
        %v1214 = vsel %vm1170, %v1166, 0
        %v1217 = vsel %vm1170, %v1169, 0
        %vm1219 = vcmask 1041408
        %v1221 = vsel %vm1219, %v1052, 0
        %1223 = vmatprep.subr.bf16.mxu0 0
        %1224 = vmatpush1.bf16.msra.mxu0 %v1221
        %1225 = vmatprep.subr.bf16.mxu0 0
        %1226 = vmatpush1.bf16.msra.mxu0 0
        %1227 = vmatprep.subr.bf16.mxu0 0
        %1228 = vmatpush1.bf16.msra.mxu0 0
        %1229 = vmatprep.subr.bf16.mxu0 0
        %1230 = vmatpush1.bf16.msra.mxu0 0
        %1231 = vmatprep.subr.bf16.mxu0 0
        %1232 = vmatpush1.bf16.msra.mxu0 0
        %1233 = vmatprep.subr.bf16.mxu0 0
        %1234 = vmatpush1.bf16.msra.mxu0 0
        %1235 = vmatprep.subr.bf16.mxu0 0
        %1236 = vmatpush1.bf16.msra.mxu0 0
        %1237 = vmatprep.subr.bf16.mxu0 0
        %1238 = vmatpush1.bf16.msra.mxu0 0
        %1239 = vmatprep.subr.bf16.mxu0 0
        %1240 = vmatpush1.bf16.msra.mxu0 0
        %1241 = vmatprep.subr.bf16.mxu0 0
        %1242 = vmatpush1.bf16.msra.mxu0 0
        %1243 = vmatprep.subr.bf16.mxu0 0
        %1244 = vmatpush1.bf16.msra.mxu0 0
        %1245 = vmatprep.subr.bf16.mxu0 0
        %1246 = vmatpush1.bf16.msra.mxu0 0
        %1247 = vmatprep.subr.bf16.mxu0 0
        %1248 = vmatpush1.bf16.msra.mxu0 0
        %1249 = vmatprep.subr.bf16.mxu0 0
        %1250 = vmatpush1.bf16.msra.mxu0 0
        %1251 = vmatprep.subr.bf16.mxu0 0
        %1252 = vmatpush1.bf16.msra.mxu0 0
        %1253 = vmatprep.subr.bf16.mxu0 0
        %1254 = vmatpush1.bf16.msra.mxu0 0
        %1255 = vmatprep.mubr.bf16.mxu0 0
        %1256 = vmatmul.mubr.bf16.gmra.mrb[0].mxu0 %v1172
        %v1257 = vpop.f32.mrb[0].mxu0
        %v1258 = vadd.f32 0.0, %v1257
        %v1259 = vpop.f32.mrb[0].mxu0
        %v1260 = vpop.f32.mrb[0].mxu0
        %v1261 = vadd.f32 0.0, %v1260
        %v1262 = vpop.f32.mrb[0].mxu0
        %1263 = vmatprep.mubr.bf16.mxu0 0
        %1264 = vmatmul.mubr.bf16.gmra.mrb[0].mxu0 %v1175
        %v1265 = vpop.f32.mrb[0].mxu0
        %v1266 = vadd.f32 0.0, %v1265
        %v1267 = vpop.f32.mrb[0].mxu0
        %v1268 = vpop.f32.mrb[0].mxu0
        %v1269 = vadd.f32 0.0, %v1268
        %v1270 = vpop.f32.mrb[0].mxu0
        %1271 = vmatprep.mubr.bf16.mxu0 0
        %1272 = vmatmul.mubr.bf16.gmra.mrb[0].mxu0 %v1178
        %v1273 = vpop.f32.mrb[0].mxu0
        %v1274 = vadd.f32 0.0, %v1273
        %v1275 = vpop.f32.mrb[0].mxu0
        %v1276 = vpop.f32.mrb[0].mxu0
        %v1277 = vadd.f32 0.0, %v1276
        %v1278 = vpop.f32.mrb[0].mxu0
        %1279 = vmatprep.mubr.bf16.mxu0 0
        %1280 = vmatmul.mubr.bf16.gmra.mrb[0].mxu0 %v1181
        %v1281 = vpop.f32.mrb[0].mxu0
        %v1282 = vadd.f32 0.0, %v1281
        %v1283 = vpop.f32.mrb[0].mxu0
        %v1284 = vpop.f32.mrb[0].mxu0
        %v1285 = vadd.f32 0.0, %v1284
        %v1286 = vpop.f32.mrb[0].mxu0
        %1287 = vmatprep.mubr.bf16.mxu0 0
        %1288 = vmatmul.mubr.bf16.gmra.mrb[0].mxu0 %v1184
        %v1289 = vpop.f32.mrb[0].mxu0
        %v1290 = vadd.f32 0.0, %v1289
        %v1291 = vpop.f32.mrb[0].mxu0
        %v1292 = vpop.f32.mrb[0].mxu0
        %v1293 = vadd.f32 0.0, %v1292
        %v1294 = vpop.f32.mrb[0].mxu0
        %1295 = vmatprep.mubr.bf16.mxu0 0
        %1296 = vmatmul.mubr.bf16.gmra.mrb[0].mxu0 %v1187
        %v1297 = vpop.f32.mrb[0].mxu0
        %v1298 = vadd.f32 0.0, %v1297
        %v1299 = vpop.f32.mrb[0].mxu0
        %v1300 = vpop.f32.mrb[0].mxu0
        %v1301 = vadd.f32 0.0, %v1300
        %v1302 = vpop.f32.mrb[0].mxu0
        %1303 = vmatprep.mubr.bf16.mxu0 0
        %1304 = vmatmul.mubr.bf16.gmra.mrb[0].mxu0 %v1190
        %v1305 = vpop.f32.mrb[0].mxu0
        %v1306 = vadd.f32 0.0, %v1305
        %v1307 = vpop.f32.mrb[0].mxu0
        %v1308 = vpop.f32.mrb[0].mxu0
        %v1309 = vadd.f32 0.0, %v1308
        %v1310 = vpop.f32.mrb[0].mxu0
        %1311 = vmatprep.mubr.bf16.mxu0 0
        %1312 = vmatmul.mubr.bf16.gmra.mrb[0].mxu0 %v1193
        %v1313 = vpop.f32.mrb[0].mxu0
        %v1314 = vadd.f32 0.0, %v1313
        %v1315 = vpop.f32.mrb[0].mxu0
        %v1316 = vpop.f32.mrb[0].mxu0
        %v1317 = vadd.f32 0.0, %v1316
        %v1318 = vpop.f32.mrb[0].mxu0
        %1319 = vmatprep.mubr.bf16.mxu0 0
        %1320 = vmatmul.mubr.bf16.gmra.mrb[0].mxu0 %v1196
        %v1321 = vpop.f32.mrb[0].mxu0
        %v1322 = vadd.f32 0.0, %v1321
        %v1323 = vpop.f32.mrb[0].mxu0
        %v1324 = vpop.f32.mrb[0].mxu0
        %v1325 = vadd.f32 0.0, %v1324
        %v1326 = vpop.f32.mrb[0].mxu0
        %1327 = vmatprep.mubr.bf16.mxu0 0
        %1328 = vmatmul.mubr.bf16.gmra.mrb[0].mxu0 %v1199
        %v1329 = vpop.f32.mrb[0].mxu0
        %v1330 = vadd.f32 0.0, %v1329
        %v1331 = vpop.f32.mrb[0].mxu0
        %v1332 = vpop.f32.mrb[0].mxu0
        %v1333 = vadd.f32 0.0, %v1332
        %v1334 = vpop.f32.mrb[0].mxu0
        %1335 = vmatprep.mubr.bf16.mxu0 0
        %1336 = vmatmul.mubr.bf16.gmra.mrb[0].mxu0 %v1202
        %v1337 = vpop.f32.mrb[0].mxu0
        %v1338 = vadd.f32 0.0, %v1337
        %v1339 = vpop.f32.mrb[0].mxu0
        %v1340 = vpop.f32.mrb[0].mxu0
        %v1341 = vadd.f32 0.0, %v1340
        %v1342 = vpop.f32.mrb[0].mxu0
        %1343 = vmatprep.mubr.bf16.mxu0 0
        %1344 = vmatmul.mubr.bf16.gmra.mrb[0].mxu0 %v1205
        %v1345 = vpop.f32.mrb[0].mxu0
        %v1346 = vadd.f32 0.0, %v1345
        %v1347 = vpop.f32.mrb[0].mxu0
        %v1348 = vpop.f32.mrb[0].mxu0
        %v1349 = vadd.f32 0.0, %v1348
        %v1350 = vpop.f32.mrb[0].mxu0
        %1351 = vmatprep.mubr.bf16.mxu0 0
        %1352 = vmatmul.mubr.bf16.gmra.mrb[0].mxu0 %v1208
        %v1353 = vpop.f32.mrb[0].mxu0
        %v1354 = vadd.f32 0.0, %v1353
        %v1355 = vpop.f32.mrb[0].mxu0
        %v1356 = vpop.f32.mrb[0].mxu0
        %v1357 = vadd.f32 0.0, %v1356
        %v1358 = vpop.f32.mrb[0].mxu0
        %1359 = vmatprep.mubr.bf16.mxu0 0
        %1360 = vmatmul.mubr.bf16.gmra.mrb[0].mxu0 %v1211
        %v1361 = vpop.f32.mrb[0].mxu0
        %v1362 = vadd.f32 0.0, %v1361
        %v1363 = vpop.f32.mrb[0].mxu0
        %v1364 = vpop.f32.mrb[0].mxu0
        %v1365 = vadd.f32 0.0, %v1364
        %v1366 = vpop.f32.mrb[0].mxu0
        %1367 = vmatprep.mubr.bf16.mxu0 0
        %1368 = vmatmul.mubr.bf16.gmra.mrb[0].mxu0 %v1214
        %v1369 = vpop.f32.mrb[0].mxu0
        %v1370 = vadd.f32 0.0, %v1369
        %v1371 = vpop.f32.mrb[0].mxu0
        %v1372 = vpop.f32.mrb[0].mxu0
        %v1373 = vadd.f32 0.0, %v1372
        %v1374 = vpop.f32.mrb[0].mxu0
        %1375 = vmatprep.mubr.bf16.mxu0 0
        %1376 = vmatmul.mubr.bf16.gmra.mrb[0].mxu0 %v1217
        %v1377 = vpop.f32.mrb[0].mxu0
        %v1378 = vadd.f32 0.0, %v1377
        %v1379 = vpop.f32.mrb[0].mxu0
        %v1380 = vpop.f32.mrb[0].mxu0
        %v1381 = vadd.f32 0.0, %v1380
        %v1382 = vpop.f32.mrb[0].mxu0
        %1383 = vdwg.mxu0
        %s1384 = sadd.s32 %s271, 28
        %s1385 = smul.u32 %s1384, 6
        %s1386 = smul.addr %s1385, 8
        %s1387 = scalar_lea.vmem [#allocation2], %s1386
        %v1388 = vld [vmem:[%s1387 + $0x8] sm:$0xc0]
        %v1389 = vld [vmem:[%s1387 + $0x10] sm:$0x3f]
        %v1390 = vld [vmem:[%s1387 + $0x38] sm:$0xc0]
        %v1391 = vld [vmem:[%s1387 + $0x40] sm:$0x3f]
        %v1392 = vld [vmem:[%s1387 + $0x68] sm:$0xc0]
        %v1393 = vld [vmem:[%s1387 + $0x70] sm:$0x3f]
        %v1394 = vld [vmem:[%s1387 + $0x98] sm:$0xc0]
        %v1395 = vld [vmem:[%s1387 + $0xa0] sm:$0x3f]
        %v1396 = vld [vmem:[%s1387 + $0xc8] sm:$0xc0]
        %v1397 = vld [vmem:[%s1387 + $0xd0] sm:$0x3f]
        %v1398 = vld [vmem:[%s1387 + $0xf8] sm:$0xc0]
        %v1399 = vld [vmem:[%s1387 + $0x100] sm:$0x3f]
        %v1400 = vld [vmem:[%s1387 + $0x128] sm:$0xc0]
        %v1401 = vld [vmem:[%s1387 + $0x130] sm:$0x3f]
        %v1402 = vld [vmem:[%s1387 + $0x158] sm:$0xc0]
        %v1403 = vld [vmem:[%s1387 + $0x160] sm:$0x3f]
        %v1404 = vld [vmem:[%s1387 + $0x188] sm:$0xc0]
        %v1405 = vld [vmem:[%s1387 + $0x190] sm:$0x3f]
        %v1406 = vld [vmem:[%s1387 + $0x1b8] sm:$0xc0]
        %v1407 = vld [vmem:[%s1387 + $0x1c0] sm:$0x3f]
        %v1408 = vld [vmem:[%s1387 + $0x1e8] sm:$0xc0]
        %v1409 = vld [vmem:[%s1387 + $0x1f0] sm:$0x3f]
        %v1410 = vld [vmem:[%s1387 + $0x218] sm:$0xc0]
        %v1411 = vld [vmem:[%s1387 + $0x220] sm:$0x3f]
        %v1412 = vld [vmem:[%s1387 + $0x248] sm:$0xc0]
        %v1413 = vld [vmem:[%s1387 + $0x250] sm:$0x3f]
        %v1414 = vld [vmem:[%s1387 + $0x278] sm:$0xc0]
        %v1415 = vld [vmem:[%s1387 + $0x280] sm:$0x3f]
        %v1416 = vld [vmem:[%s1387 + $0x2a8] sm:$0xc0]
        %v1417 = vld [vmem:[%s1387 + $0x2b0] sm:$0x3f]
        %v1418 = vld [vmem:[%s1387 + $0x2d8] sm:$0xc0]
        %v1419 = vld [vmem:[%s1387 + $0x2e0] sm:$0x3f]
        %vm1452 = vcmask 1041408
        %v1453 = vrot.slane %v1388, 6
        %v1454 = vrot.slane %v1389, 6
        %v1455 = vsel %vm1452, %v1453, %v1454
        %v1456 = vrot.slane %v1390, 6
        %v1457 = vrot.slane %v1391, 6
        %v1458 = vsel %vm1452, %v1456, %v1457
        %v1459 = vrot.slane %v1392, 6
        %v1460 = vrot.slane %v1393, 6
        %v1461 = vsel %vm1452, %v1459, %v1460
        %v1462 = vrot.slane %v1394, 6
        %v1463 = vrot.slane %v1395, 6
        %v1464 = vsel %vm1452, %v1462, %v1463
        %v1465 = vrot.slane %v1396, 6
        %v1466 = vrot.slane %v1397, 6
        %v1467 = vsel %vm1452, %v1465, %v1466
        %v1468 = vrot.slane %v1398, 6
        %v1469 = vrot.slane %v1399, 6
        %v1470 = vsel %vm1452, %v1468, %v1469
        %v1471 = vrot.slane %v1400, 6
        %v1472 = vrot.slane %v1401, 6
        %v1473 = vsel %vm1452, %v1471, %v1472
        %v1474 = vrot.slane %v1402, 6
        %v1475 = vrot.slane %v1403, 6
        %v1476 = vsel %vm1452, %v1474, %v1475
        %v1477 = vrot.slane %v1404, 6
        %v1478 = vrot.slane %v1405, 6
        %v1479 = vsel %vm1452, %v1477, %v1478
        %v1480 = vrot.slane %v1406, 6
        %v1481 = vrot.slane %v1407, 6
        %v1482 = vsel %vm1452, %v1480, %v1481
        %v1483 = vrot.slane %v1408, 6
        %v1484 = vrot.slane %v1409, 6
        %v1485 = vsel %vm1452, %v1483, %v1484
        %v1486 = vrot.slane %v1410, 6
        %v1487 = vrot.slane %v1411, 6
        %v1488 = vsel %vm1452, %v1486, %v1487
        %v1489 = vrot.slane %v1412, 6
        %v1490 = vrot.slane %v1413, 6
        %v1491 = vsel %vm1452, %v1489, %v1490
        %v1492 = vrot.slane %v1414, 6
        %v1493 = vrot.slane %v1415, 6
        %v1494 = vsel %vm1452, %v1492, %v1493
        %v1495 = vrot.slane %v1416, 6
        %v1496 = vrot.slane %v1417, 6
        %v1497 = vsel %vm1452, %v1495, %v1496
        %v1498 = vrot.slane %v1418, 6
        %v1499 = vrot.slane %v1419, 6
        %v1500 = vsel %vm1452, %v1498, %v1499
        %v1501 = vld [vmem:[%s2] sm:$0x3]
        %v1502 = vld [vmem:[%s1387 + $0x10] sm:$0xf0]
        %v1503 = vld [vmem:[%s1387 + $0x18] sm:$0xf]
        %v1504 = vld [vmem:[%s1387 + $0x40] sm:$0xf0]
        %v1505 = vld [vmem:[%s1387 + $0x48] sm:$0xf]
        %v1506 = vld [vmem:[%s1387 + $0x70] sm:$0xf0]
        %v1507 = vld [vmem:[%s1387 + $0x78] sm:$0xf]
        %v1508 = vld [vmem:[%s1387 + $0xa0] sm:$0xf0]
        %v1509 = vld [vmem:[%s1387 + $0xa8] sm:$0xf]
        %v1510 = vld [vmem:[%s1387 + $0xd0] sm:$0xf0]
        %v1511 = vld [vmem:[%s1387 + $0xd8] sm:$0xf]
        %v1512 = vld [vmem:[%s1387 + $0x100] sm:$0xf0]
        %v1513 = vld [vmem:[%s1387 + $0x108] sm:$0xf]
        %v1514 = vld [vmem:[%s1387 + $0x130] sm:$0xf0]
        %v1515 = vld [vmem:[%s1387 + $0x138] sm:$0xf]
        %v1516 = vld [vmem:[%s1387 + $0x160] sm:$0xf0]
        %v1517 = vld [vmem:[%s1387 + $0x168] sm:$0xf]
        %v1518 = vld [vmem:[%s1387 + $0x190] sm:$0xf0]
        %v1519 = vld [vmem:[%s1387 + $0x198] sm:$0xf]
        %v1520 = vld [vmem:[%s1387 + $0x1c0] sm:$0xf0]
        %v1521 = vld [vmem:[%s1387 + $0x1c8] sm:$0xf]
        %v1522 = vld [vmem:[%s1387 + $0x1f0] sm:$0xf0]
        %v1523 = vld [vmem:[%s1387 + $0x1f8] sm:$0xf]
        %v1524 = vld [vmem:[%s1387 + $0x220] sm:$0xf0]
        %v1525 = vld [vmem:[%s1387 + $0x228] sm:$0xf]
        %v1526 = vld [vmem:[%s1387 + $0x250] sm:$0xf0]
        %v1527 = vld [vmem:[%s1387 + $0x258] sm:$0xf]
        %v1528 = vld [vmem:[%s1387 + $0x280] sm:$0xf0]
        %v1529 = vld [vmem:[%s1387 + $0x288] sm:$0xf]
        %v1530 = vld [vmem:[%s1387 + $0x2b0] sm:$0xf0]
        %v1531 = vld [vmem:[%s1387 + $0x2b8] sm:$0xf]
        %v1532 = vld [vmem:[%s1387 + $0x2e0] sm:$0xf0]
        %v1533 = vld [vmem:[%s1387 + $0x2e8] sm:$0xf]
        %v1566 = vrot.slane %v1502, 4
        %v1567 = vrot.slane %v1503, 4
        %v1568 = vsel %vm1121, %v1566, %v1567
        %v1569 = vrot.slane %v1504, 4
        %v1570 = vrot.slane %v1505, 4
        %v1571 = vsel %vm1121, %v1569, %v1570
        %v1572 = vrot.slane %v1506, 4
        %v1573 = vrot.slane %v1507, 4
        %v1574 = vsel %vm1121, %v1572, %v1573
        %v1575 = vrot.slane %v1508, 4
        %v1576 = vrot.slane %v1509, 4
        %v1577 = vsel %vm1121, %v1575, %v1576
        %v1578 = vrot.slane %v1510, 4
        %v1579 = vrot.slane %v1511, 4
        %v1580 = vsel %vm1121, %v1578, %v1579
        %v1581 = vrot.slane %v1512, 4
        %v1582 = vrot.slane %v1513, 4
        %v1583 = vsel %vm1121, %v1581, %v1582
        %v1584 = vrot.slane %v1514, 4
        %v1585 = vrot.slane %v1515, 4
        %v1586 = vsel %vm1121, %v1584, %v1585
        %v1587 = vrot.slane %v1516, 4
        %v1588 = vrot.slane %v1517, 4
        %v1589 = vsel %vm1121, %v1587, %v1588
        %v1590 = vrot.slane %v1518, 4
        %v1591 = vrot.slane %v1519, 4
        %v1592 = vsel %vm1121, %v1590, %v1591
        %v1593 = vrot.slane %v1520, 4
        %v1594 = vrot.slane %v1521, 4
        %v1595 = vsel %vm1121, %v1593, %v1594
        %v1596 = vrot.slane %v1522, 4
        %v1597 = vrot.slane %v1523, 4
        %v1598 = vsel %vm1121, %v1596, %v1597
        %v1599 = vrot.slane %v1524, 4
        %v1600 = vrot.slane %v1525, 4
        %v1601 = vsel %vm1121, %v1599, %v1600
        %v1602 = vrot.slane %v1526, 4
        %v1603 = vrot.slane %v1527, 4
        %v1604 = vsel %vm1121, %v1602, %v1603
        %v1605 = vrot.slane %v1528, 4
        %v1606 = vrot.slane %v1529, 4
        %v1607 = vsel %vm1121, %v1605, %v1606
        %v1608 = vrot.slane %v1530, 4
        %v1609 = vrot.slane %v1531, 4
        %v1610 = vsel %vm1121, %v1608, %v1609
        %v1611 = vrot.slane %v1532, 4
        %v1612 = vrot.slane %v1533, 4
        %v1613 = vsel %vm1121, %v1611, %v1612
        %s1614 = scalar_lea.vmem %s2, 2
        %v1615 = vld [vmem:[%s1614] sm:$0x3]
        %v1617 = vsel %vm1170, %v1568, 0
        %v1620 = vsel %vm1170, %v1571, 0
        %v1623 = vsel %vm1170, %v1574, 0
        %v1626 = vsel %vm1170, %v1577, 0
        %v1629 = vsel %vm1170, %v1580, 0
        %v1632 = vsel %vm1170, %v1583, 0
        %v1635 = vsel %vm1170, %v1586, 0
        %v1638 = vsel %vm1170, %v1589, 0
        %v1641 = vsel %vm1170, %v1592, 0
        %v1644 = vsel %vm1170, %v1595, 0
        %v1647 = vsel %vm1170, %v1598, 0
        %v1650 = vsel %vm1170, %v1601, 0
        %v1653 = vsel %vm1170, %v1604, 0
        %v1656 = vsel %vm1170, %v1607, 0
        %v1659 = vsel %vm1170, %v1610, 0
        %v1662 = vsel %vm1170, %v1613, 0
        %v1665 = vsel %vm1219, %v1615, 0
        %1667 = vmatprep.subr.bf16.mxu0 0
        %1668 = vmatpush1.bf16.msra.mxu0 %v1665
        %1669 = vmatprep.subr.bf16.mxu0 0
        %1670 = vmatpush1.bf16.msra.mxu0 0
        %1671 = vmatprep.subr.bf16.mxu0 0
        %1672 = vmatpush1.bf16.msra.mxu0 0
        %1673 = vmatprep.subr.bf16.mxu0 0
        %1674 = vmatpush1.bf16.msra.mxu0 0
        %1675 = vmatprep.subr.bf16.mxu0 0
        %1676 = vmatpush1.bf16.msra.mxu0 0
        %1677 = vmatprep.subr.bf16.mxu0 0
        %1678 = vmatpush1.bf16.msra.mxu0 0
        %1679 = vmatprep.subr.bf16.mxu0 0
        %1680 = vmatpush1.bf16.msra.mxu0 0
        %1681 = vmatprep.subr.bf16.mxu0 0
        %1682 = vmatpush1.bf16.msra.mxu0 0
        %1683 = vmatprep.subr.bf16.mxu0 0
        %1684 = vmatpush1.bf16.msra.mxu0 0
        %1685 = vmatprep.subr.bf16.mxu0 0
        %1686 = vmatpush1.bf16.msra.mxu0 0
        %1687 = vmatprep.subr.bf16.mxu0 0
        %1688 = vmatpush1.bf16.msra.mxu0 0
        %1689 = vmatprep.subr.bf16.mxu0 0
        %1690 = vmatpush1.bf16.msra.mxu0 0
        %1691 = vmatprep.subr.bf16.mxu0 0
        %1692 = vmatpush1.bf16.msra.mxu0 0
        %1693 = vmatprep.subr.bf16.mxu0 0
        %1694 = vmatpush1.bf16.msra.mxu0 0
        %1695 = vmatprep.subr.bf16.mxu0 0
        %1696 = vmatpush1.bf16.msra.mxu0 0
        %1697 = vmatprep.subr.bf16.mxu0 0
        %1698 = vmatpush1.bf16.msra.mxu0 0
        %1699 = vmatprep.mubr.bf16.mxu0 0
        %1700 = vmatmul.mubr.bf16.gmra.mrb[0].mxu0 %v1617
        %v1701 = vpop.f32.mrb[0].mxu0
        %v1702 = vadd.f32 0.0, %v1701
        %v1703 = vpop.f32.mrb[0].mxu0
        %v1704 = vpop.f32.mrb[0].mxu0
        %v1705 = vadd.f32 0.0, %v1704
        %v1706 = vpop.f32.mrb[0].mxu0
        %1707 = vmatprep.mubr.bf16.mxu0 0
        %1708 = vmatmul.mubr.bf16.gmra.mrb[0].mxu0 %v1620
        %v1709 = vpop.f32.mrb[0].mxu0
        %v1710 = vadd.f32 0.0, %v1709
        %v1711 = vpop.f32.mrb[0].mxu0
        %v1712 = vpop.f32.mrb[0].mxu0
        %v1713 = vadd.f32 0.0, %v1712
        %v1714 = vpop.f32.mrb[0].mxu0
        %1715 = vmatprep.mubr.bf16.mxu0 0
        %1716 = vmatmul.mubr.bf16.gmra.mrb[0].mxu0 %v1623
        %v1717 = vpop.f32.mrb[0].mxu0
        %v1718 = vadd.f32 0.0, %v1717
        %v1719 = vpop.f32.mrb[0].mxu0
        %v1720 = vpop.f32.mrb[0].mxu0
        %v1721 = vadd.f32 0.0, %v1720
        %v1722 = vpop.f32.mrb[0].mxu0
        %1723 = vmatprep.mubr.bf16.mxu0 0
        %1724 = vmatmul.mubr.bf16.gmra.mrb[0].mxu0 %v1626
        %v1725 = vpop.f32.mrb[0].mxu0
        %v1726 = vadd.f32 0.0, %v1725
        %v1727 = vpop.f32.mrb[0].mxu0
        %v1728 = vpop.f32.mrb[0].mxu0
        %v1729 = vadd.f32 0.0, %v1728
        %v1730 = vpop.f32.mrb[0].mxu0
        %1731 = vmatprep.mubr.bf16.mxu0 0
        %1732 = vmatmul.mubr.bf16.gmra.mrb[0].mxu0 %v1629
        %v1733 = vpop.f32.mrb[0].mxu0
        %v1734 = vadd.f32 0.0, %v1733
        %v1735 = vpop.f32.mrb[0].mxu0
        %v1736 = vpop.f32.mrb[0].mxu0
        %v1737 = vadd.f32 0.0, %v1736
        %v1738 = vpop.f32.mrb[0].mxu0
        %1739 = vmatprep.mubr.bf16.mxu0 0
        %1740 = vmatmul.mubr.bf16.gmra.mrb[0].mxu0 %v1632
        %v1741 = vpop.f32.mrb[0].mxu0
        %v1742 = vadd.f32 0.0, %v1741
        %v1743 = vpop.f32.mrb[0].mxu0
        %v1744 = vpop.f32.mrb[0].mxu0
        %v1745 = vadd.f32 0.0, %v1744
        %v1746 = vpop.f32.mrb[0].mxu0
        %1747 = vmatprep.mubr.bf16.mxu0 0
        %1748 = vmatmul.mubr.bf16.gmra.mrb[0].mxu0 %v1635
        %v1749 = vpop.f32.mrb[0].mxu0
        %v1750 = vadd.f32 0.0, %v1749
        %v1751 = vpop.f32.mrb[0].mxu0
        %v1752 = vpop.f32.mrb[0].mxu0
        %v1753 = vadd.f32 0.0, %v1752
        %v1754 = vpop.f32.mrb[0].mxu0
        %1755 = vmatprep.mubr.bf16.mxu0 0
        %1756 = vmatmul.mubr.bf16.gmra.mrb[0].mxu0 %v1638
        %v1757 = vpop.f32.mrb[0].mxu0
        %v1758 = vadd.f32 0.0, %v1757
        %v1759 = vpop.f32.mrb[0].mxu0
        %v1760 = vpop.f32.mrb[0].mxu0
        %v1761 = vadd.f32 0.0, %v1760
        %v1762 = vpop.f32.mrb[0].mxu0
        %1763 = vmatprep.mubr.bf16.mxu0 0
        %1764 = vmatmul.mubr.bf16.gmra.mrb[0].mxu0 %v1641
        %v1765 = vpop.f32.mrb[0].mxu0
        %v1766 = vadd.f32 0.0, %v1765
        %v1767 = vpop.f32.mrb[0].mxu0
        %v1768 = vpop.f32.mrb[0].mxu0
        %v1769 = vadd.f32 0.0, %v1768
        %v1770 = vpop.f32.mrb[0].mxu0
        %1771 = vmatprep.mubr.bf16.mxu0 0
        %1772 = vmatmul.mubr.bf16.gmra.mrb[0].mxu0 %v1644
        %v1773 = vpop.f32.mrb[0].mxu0
        %v1774 = vadd.f32 0.0, %v1773
        %v1775 = vpop.f32.mrb[0].mxu0
        %v1776 = vpop.f32.mrb[0].mxu0
        %v1777 = vadd.f32 0.0, %v1776
        %v1778 = vpop.f32.mrb[0].mxu0
        %1779 = vmatprep.mubr.bf16.mxu0 0
        %1780 = vmatmul.mubr.bf16.gmra.mrb[0].mxu0 %v1647
        %v1781 = vpop.f32.mrb[0].mxu0
        %v1782 = vadd.f32 0.0, %v1781
        %v1783 = vpop.f32.mrb[0].mxu0
        %v1784 = vpop.f32.mrb[0].mxu0
        %v1785 = vadd.f32 0.0, %v1784
        %v1786 = vpop.f32.mrb[0].mxu0
        %1787 = vmatprep.mubr.bf16.mxu0 0
        %1788 = vmatmul.mubr.bf16.gmra.mrb[0].mxu0 %v1650
        %v1789 = vpop.f32.mrb[0].mxu0
        %v1790 = vadd.f32 0.0, %v1789
        %v1791 = vpop.f32.mrb[0].mxu0
        %v1792 = vpop.f32.mrb[0].mxu0
        %v1793 = vadd.f32 0.0, %v1792
        %v1794 = vpop.f32.mrb[0].mxu0
        %1795 = vmatprep.mubr.bf16.mxu0 0
        %1796 = vmatmul.mubr.bf16.gmra.mrb[0].mxu0 %v1653
        %v1797 = vpop.f32.mrb[0].mxu0
        %v1798 = vadd.f32 0.0, %v1797
        %v1799 = vpop.f32.mrb[0].mxu0
        %v1800 = vpop.f32.mrb[0].mxu0
        %v1801 = vadd.f32 0.0, %v1800
        %v1802 = vpop.f32.mrb[0].mxu0
        %1803 = vmatprep.mubr.bf16.mxu0 0
        %1804 = vmatmul.mubr.bf16.gmra.mrb[0].mxu0 %v1656
        %v1805 = vpop.f32.mrb[0].mxu0
        %v1806 = vadd.f32 0.0, %v1805
        %v1807 = vpop.f32.mrb[0].mxu0
        %v1808 = vpop.f32.mrb[0].mxu0
        %v1809 = vadd.f32 0.0, %v1808
        %v1810 = vpop.f32.mrb[0].mxu0
        %1811 = vmatprep.mubr.bf16.mxu0 0
        %1812 = vmatmul.mubr.bf16.gmra.mrb[0].mxu0 %v1659
        %v1813 = vpop.f32.mrb[0].mxu0
        %v1814 = vadd.f32 0.0, %v1813
        %v1815 = vpop.f32.mrb[0].mxu0
        %v1816 = vpop.f32.mrb[0].mxu0
        %v1817 = vadd.f32 0.0, %v1816
        %v1818 = vpop.f32.mrb[0].mxu0
        %1819 = vmatprep.mubr.bf16.mxu0 0
        %1820 = vmatmul.mubr.bf16.gmra.mrb[0].mxu0 %v1662
        %v1821 = vpop.f32.mrb[0].mxu0
        %v1822 = vadd.f32 0.0, %v1821
        %v1823 = vpop.f32.mrb[0].mxu0
        %v1824 = vpop.f32.mrb[0].mxu0
        %v1825 = vadd.f32 0.0, %v1824
        %v1826 = vpop.f32.mrb[0].mxu0
        %1827 = vdwg.mxu0
        %v1829 = vsel %vm1170, %v1455, 0
        %v1832 = vsel %vm1170, %v1458, 0
        %v1835 = vsel %vm1170, %v1461, 0
        %v1838 = vsel %vm1170, %v1464, 0
        %v1841 = vsel %vm1170, %v1467, 0
        %v1844 = vsel %vm1170, %v1470, 0
        %v1847 = vsel %vm1170, %v1473, 0
        %v1850 = vsel %vm1170, %v1476, 0
        %v1853 = vsel %vm1170, %v1479, 0
        %v1856 = vsel %vm1170, %v1482, 0
        %v1859 = vsel %vm1170, %v1485, 0
        %v1862 = vsel %vm1170, %v1488, 0
        %v1865 = vsel %vm1170, %v1491, 0
        %v1868 = vsel %vm1170, %v1494, 0
        %v1871 = vsel %vm1170, %v1497, 0
        %v1874 = vsel %vm1170, %v1500, 0
        %v1877 = vsel %vm1219, %v1501, 0
        %1879 = vmatprep.subr.bf16.mxu0 0
        %1880 = vmatpush1.bf16.msra.mxu0 %v1877
        %1881 = vmatprep.subr.bf16.mxu0 0
        %1882 = vmatpush1.bf16.msra.mxu0 0
        %1883 = vmatprep.subr.bf16.mxu0 0
        %1884 = vmatpush1.bf16.msra.mxu0 0
        %1885 = vmatprep.subr.bf16.mxu0 0
        %1886 = vmatpush1.bf16.msra.mxu0 0
        %1887 = vmatprep.subr.bf16.mxu0 0
        %1888 = vmatpush1.bf16.msra.mxu0 0
        %1889 = vmatprep.subr.bf16.mxu0 0
        %1890 = vmatpush1.bf16.msra.mxu0 0
        %1891 = vmatprep.subr.bf16.mxu0 0
        %1892 = vmatpush1.bf16.msra.mxu0 0
        %1893 = vmatprep.subr.bf16.mxu0 0
        %1894 = vmatpush1.bf16.msra.mxu0 0
        %1895 = vmatprep.subr.bf16.mxu0 0
        %1896 = vmatpush1.bf16.msra.mxu0 0
        %1897 = vmatprep.subr.bf16.mxu0 0
        %1898 = vmatpush1.bf16.msra.mxu0 0
        %1899 = vmatprep.subr.bf16.mxu0 0
        %1900 = vmatpush1.bf16.msra.mxu0 0
        %1901 = vmatprep.subr.bf16.mxu0 0
        %1902 = vmatpush1.bf16.msra.mxu0 0
        %1903 = vmatprep.subr.bf16.mxu0 0
        %1904 = vmatpush1.bf16.msra.mxu0 0
        %1905 = vmatprep.subr.bf16.mxu0 0
        %1906 = vmatpush1.bf16.msra.mxu0 0
        %1907 = vmatprep.subr.bf16.mxu0 0
        %1908 = vmatpush1.bf16.msra.mxu0 0
        %1909 = vmatprep.subr.bf16.mxu0 0
        %1910 = vmatpush1.bf16.msra.mxu0 0
        %1911 = vmatprep.mubr.bf16.mxu0 0
        %1912 = vmatmul.mubr.bf16.gmra.mrb[0].mxu0 %v1829
        %v1913 = vpop.f32.mrb[0].mxu0
        %v1914 = vadd.f32 %v1702, %v1913
        %v1915 = vpop.f32.mrb[0].mxu0
        %v1916 = vpop.f32.mrb[0].mxu0
        %v1917 = vadd.f32 %v1705, %v1916
        %v1918 = vpop.f32.mrb[0].mxu0
        %1919 = vmatprep.mubr.bf16.mxu0 0
        %1920 = vmatmul.mubr.bf16.gmra.mrb[0].mxu0 %v1832
        %v1921 = vpop.f32.mrb[0].mxu0
        %v1922 = vadd.f32 %v1710, %v1921
        %v1923 = vpop.f32.mrb[0].mxu0
        %v1924 = vpop.f32.mrb[0].mxu0
        %v1925 = vadd.f32 %v1713, %v1924
        %v1926 = vpop.f32.mrb[0].mxu0
        %1927 = vmatprep.mubr.bf16.mxu0 0
        %1928 = vmatmul.mubr.bf16.gmra.mrb[0].mxu0 %v1835
        %v1929 = vpop.f32.mrb[0].mxu0
        %v1930 = vadd.f32 %v1718, %v1929
        %v1931 = vpop.f32.mrb[0].mxu0
        %v1932 = vpop.f32.mrb[0].mxu0
        %v1933 = vadd.f32 %v1721, %v1932
        %v1934 = vpop.f32.mrb[0].mxu0
        %1935 = vmatprep.mubr.bf16.mxu0 0
        %1936 = vmatmul.mubr.bf16.gmra.mrb[0].mxu0 %v1838
        %v1937 = vpop.f32.mrb[0].mxu0
        %v1938 = vadd.f32 %v1726, %v1937
        %v1939 = vpop.f32.mrb[0].mxu0
        %v1940 = vpop.f32.mrb[0].mxu0
        %v1941 = vadd.f32 %v1729, %v1940
        %v1942 = vpop.f32.mrb[0].mxu0
        %1943 = vmatprep.mubr.bf16.mxu0 0
        %1944 = vmatmul.mubr.bf16.gmra.mrb[0].mxu0 %v1841
        %v1945 = vpop.f32.mrb[0].mxu0
        %v1946 = vadd.f32 %v1734, %v1945
        %v1947 = vpop.f32.mrb[0].mxu0
        %v1948 = vpop.f32.mrb[0].mxu0
        %v1949 = vadd.f32 %v1737, %v1948
        %v1950 = vpop.f32.mrb[0].mxu0
        %1951 = vmatprep.mubr.bf16.mxu0 0
        %1952 = vmatmul.mubr.bf16.gmra.mrb[0].mxu0 %v1844
        %v1953 = vpop.f32.mrb[0].mxu0
        %v1954 = vadd.f32 %v1742, %v1953
        %v1955 = vpop.f32.mrb[0].mxu0
        %v1956 = vpop.f32.mrb[0].mxu0
        %v1957 = vadd.f32 %v1745, %v1956
        %v1958 = vpop.f32.mrb[0].mxu0
        %1959 = vmatprep.mubr.bf16.mxu0 0
        %1960 = vmatmul.mubr.bf16.gmra.mrb[0].mxu0 %v1847
        %v1961 = vpop.f32.mrb[0].mxu0
        %v1962 = vadd.f32 %v1750, %v1961
        %v1963 = vpop.f32.mrb[0].mxu0
        %v1964 = vpop.f32.mrb[0].mxu0
        %v1965 = vadd.f32 %v1753, %v1964
        %v1966 = vpop.f32.mrb[0].mxu0
        %1967 = vmatprep.mubr.bf16.mxu0 0
        %1968 = vmatmul.mubr.bf16.gmra.mrb[0].mxu0 %v1850
        %v1969 = vpop.f32.mrb[0].mxu0
        %v1970 = vadd.f32 %v1758, %v1969
        %v1971 = vpop.f32.mrb[0].mxu0
        %v1972 = vpop.f32.mrb[0].mxu0
        %v1973 = vadd.f32 %v1761, %v1972
        %v1974 = vpop.f32.mrb[0].mxu0
        %1975 = vmatprep.mubr.bf16.mxu0 0
        %1976 = vmatmul.mubr.bf16.gmra.mrb[0].mxu0 %v1853
        %v1977 = vpop.f32.mrb[0].mxu0
        %v1978 = vadd.f32 %v1766, %v1977
        %v1979 = vpop.f32.mrb[0].mxu0
        %v1980 = vpop.f32.mrb[0].mxu0
        %v1981 = vadd.f32 %v1769, %v1980
        %v1982 = vpop.f32.mrb[0].mxu0
        %1983 = vmatprep.mubr.bf16.mxu0 0
        %1984 = vmatmul.mubr.bf16.gmra.mrb[0].mxu0 %v1856
        %v1985 = vpop.f32.mrb[0].mxu0
        %v1986 = vadd.f32 %v1774, %v1985
        %v1987 = vpop.f32.mrb[0].mxu0
        %v1988 = vpop.f32.mrb[0].mxu0
        %v1989 = vadd.f32 %v1777, %v1988
        %v1990 = vpop.f32.mrb[0].mxu0
        %1991 = vmatprep.mubr.bf16.mxu0 0
        %1992 = vmatmul.mubr.bf16.gmra.mrb[0].mxu0 %v1859
        %v1993 = vpop.f32.mrb[0].mxu0
        %v1994 = vadd.f32 %v1782, %v1993
        %v1995 = vpop.f32.mrb[0].mxu0
        %v1996 = vpop.f32.mrb[0].mxu0
        %v1997 = vadd.f32 %v1785, %v1996
        %v1998 = vpop.f32.mrb[0].mxu0
        %1999 = vmatprep.mubr.bf16.mxu0 0
        %2000 = vmatmul.mubr.bf16.gmra.mrb[0].mxu0 %v1862
        %v2001 = vpop.f32.mrb[0].mxu0
        %v2002 = vadd.f32 %v1790, %v2001
        %v2003 = vpop.f32.mrb[0].mxu0
        %v2004 = vpop.f32.mrb[0].mxu0
        %v2005 = vadd.f32 %v1793, %v2004
        %v2006 = vpop.f32.mrb[0].mxu0
        %2007 = vmatprep.mubr.bf16.mxu0 0
        %2008 = vmatmul.mubr.bf16.gmra.mrb[0].mxu0 %v1865
        %v2009 = vpop.f32.mrb[0].mxu0
        %v2010 = vadd.f32 %v1798, %v2009
        %v2011 = vpop.f32.mrb[0].mxu0
        %v2012 = vpop.f32.mrb[0].mxu0
        %v2013 = vadd.f32 %v1801, %v2012
        %v2014 = vpop.f32.mrb[0].mxu0
        %2015 = vmatprep.mubr.bf16.mxu0 0
        %2016 = vmatmul.mubr.bf16.gmra.mrb[0].mxu0 %v1868
        %v2017 = vpop.f32.mrb[0].mxu0
        %v2018 = vadd.f32 %v1806, %v2017
        %v2019 = vpop.f32.mrb[0].mxu0
        %v2020 = vpop.f32.mrb[0].mxu0
        %v2021 = vadd.f32 %v1809, %v2020
        %v2022 = vpop.f32.mrb[0].mxu0
        %2023 = vmatprep.mubr.bf16.mxu0 0
        %2024 = vmatmul.mubr.bf16.gmra.mrb[0].mxu0 %v1871
        %v2025 = vpop.f32.mrb[0].mxu0
        %v2026 = vadd.f32 %v1814, %v2025
        %v2027 = vpop.f32.mrb[0].mxu0
        %v2028 = vpop.f32.mrb[0].mxu0
        %v2029 = vadd.f32 %v1817, %v2028
        %v2030 = vpop.f32.mrb[0].mxu0
        %2031 = vmatprep.mubr.bf16.mxu0 0
        %2032 = vmatmul.mubr.bf16.gmra.mrb[0].mxu0 %v1874
        %v2033 = vpop.f32.mrb[0].mxu0
        %v2034 = vadd.f32 %v1822, %v2033
        %v2035 = vpop.f32.mrb[0].mxu0
        %v2036 = vpop.f32.mrb[0].mxu0
        %v2037 = vadd.f32 %v1825, %v2036
        %v2038 = vpop.f32.mrb[0].mxu0
        %2039 = vdwg.mxu0
        %v2040 = vld [vmem:[%s1387 + $0x18] sm:$0xfc]
        %v2041 = vld [vmem:[%s1387 + $0x20] sm:$0x3]
        %v2042 = vld [vmem:[%s1387 + $0x48] sm:$0xfc]
        %v2043 = vld [vmem:[%s1387 + $0x50] sm:$0x3]
        %v2044 = vld [vmem:[%s1387 + $0x78] sm:$0xfc]
        %v2045 = vld [vmem:[%s1387 + $0x80] sm:$0x3]
        %v2046 = vld [vmem:[%s1387 + $0xa8] sm:$0xfc]
        %v2047 = vld [vmem:[%s1387 + $0xb0] sm:$0x3]
        %v2048 = vld [vmem:[%s1387 + $0xd8] sm:$0xfc]
        %v2049 = vld [vmem:[%s1387 + $0xe0] sm:$0x3]
        %v2050 = vld [vmem:[%s1387 + $0x108] sm:$0xfc]
        %v2051 = vld [vmem:[%s1387 + $0x110] sm:$0x3]
        %v2052 = vld [vmem:[%s1387 + $0x138] sm:$0xfc]
        %v2053 = vld [vmem:[%s1387 + $0x140] sm:$0x3]
        %v2054 = vld [vmem:[%s1387 + $0x168] sm:$0xfc]
        %v2055 = vld [vmem:[%s1387 + $0x170] sm:$0x3]
        %v2056 = vld [vmem:[%s1387 + $0x198] sm:$0xfc]
        %v2057 = vld [vmem:[%s1387 + $0x1a0] sm:$0x3]
        %v2058 = vld [vmem:[%s1387 + $0x1c8] sm:$0xfc]
        %v2059 = vld [vmem:[%s1387 + $0x1d0] sm:$0x3]
        %v2060 = vld [vmem:[%s1387 + $0x1f8] sm:$0xfc]
        %v2061 = vld [vmem:[%s1387 + $0x200] sm:$0x3]
        %v2062 = vld [vmem:[%s1387 + $0x228] sm:$0xfc]
        %v2063 = vld [vmem:[%s1387 + $0x230] sm:$0x3]
        %v2064 = vld [vmem:[%s1387 + $0x258] sm:$0xfc]
        %v2065 = vld [vmem:[%s1387 + $0x260] sm:$0x3]
        %v2066 = vld [vmem:[%s1387 + $0x288] sm:$0xfc]
        %v2067 = vld [vmem:[%s1387 + $0x290] sm:$0x3]
        %v2068 = vld [vmem:[%s1387 + $0x2b8] sm:$0xfc]
        %v2069 = vld [vmem:[%s1387 + $0x2c0] sm:$0x3]
        %v2070 = vld [vmem:[%s1387 + $0x2e8] sm:$0xfc]
        %v2071 = vld [vmem:[%s1387 + $0x2f0] sm:$0x3]
        %vm2104 = vcmask 1045504
        %v2105 = vrot.slane %v2040, 2
        %v2106 = vrot.slane %v2041, 2
        %v2107 = vsel %vm2104, %v2105, %v2106
        %v2108 = vrot.slane %v2042, 2
        %v2109 = vrot.slane %v2043, 2
        %v2110 = vsel %vm2104, %v2108, %v2109
        %v2111 = vrot.slane %v2044, 2
        %v2112 = vrot.slane %v2045, 2
        %v2113 = vsel %vm2104, %v2111, %v2112
        %v2114 = vrot.slane %v2046, 2
        %v2115 = vrot.slane %v2047, 2
        %v2116 = vsel %vm2104, %v2114, %v2115
        %v2117 = vrot.slane %v2048, 2
        %v2118 = vrot.slane %v2049, 2
        %v2119 = vsel %vm2104, %v2117, %v2118
        %v2120 = vrot.slane %v2050, 2
        %v2121 = vrot.slane %v2051, 2
        %v2122 = vsel %vm2104, %v2120, %v2121
        %v2123 = vrot.slane %v2052, 2
        %v2124 = vrot.slane %v2053, 2
        %v2125 = vsel %vm2104, %v2123, %v2124
        %v2126 = vrot.slane %v2054, 2
        %v2127 = vrot.slane %v2055, 2
        %v2128 = vsel %vm2104, %v2126, %v2127
        %v2129 = vrot.slane %v2056, 2
        %v2130 = vrot.slane %v2057, 2
        %v2131 = vsel %vm2104, %v2129, %v2130
        %v2132 = vrot.slane %v2058, 2
        %v2133 = vrot.slane %v2059, 2
        %v2134 = vsel %vm2104, %v2132, %v2133
        %v2135 = vrot.slane %v2060, 2
        %v2136 = vrot.slane %v2061, 2
        %v2137 = vsel %vm2104, %v2135, %v2136
        %v2138 = vrot.slane %v2062, 2
        %v2139 = vrot.slane %v2063, 2
        %v2140 = vsel %vm2104, %v2138, %v2139
        %v2141 = vrot.slane %v2064, 2
        %v2142 = vrot.slane %v2065, 2
        %v2143 = vsel %vm2104, %v2141, %v2142
        %v2144 = vrot.slane %v2066, 2
        %v2145 = vrot.slane %v2067, 2
        %v2146 = vsel %vm2104, %v2144, %v2145
        %v2147 = vrot.slane %v2068, 2
        %v2148 = vrot.slane %v2069, 2
        %v2149 = vsel %vm2104, %v2147, %v2148
        %v2150 = vrot.slane %v2070, 2
        %v2151 = vrot.slane %v2071, 2
        %v2152 = vsel %vm2104, %v2150, %v2151
        %s2153 = scalar_lea.vmem %s2, 4
        %v2154 = vld [vmem:[%s2153] sm:$0x3]
        %v2156 = vsel %vm1170, %v2107, 0
        %v2159 = vsel %vm1170, %v2110, 0
        %v2162 = vsel %vm1170, %v2113, 0
        %v2165 = vsel %vm1170, %v2116, 0
        %v2168 = vsel %vm1170, %v2119, 0
        %v2171 = vsel %vm1170, %v2122, 0
        %v2174 = vsel %vm1170, %v2125, 0
        %v2177 = vsel %vm1170, %v2128, 0
        %v2180 = vsel %vm1170, %v2131, 0
        %v2183 = vsel %vm1170, %v2134, 0
        %v2186 = vsel %vm1170, %v2137, 0
        %v2189 = vsel %vm1170, %v2140, 0
        %v2192 = vsel %vm1170, %v2143, 0
        %v2195 = vsel %vm1170, %v2146, 0
        %v2198 = vsel %vm1170, %v2149, 0
        %v2201 = vsel %vm1170, %v2152, 0
        %v2204 = vsel %vm1219, %v2154, 0
        %2206 = vmatprep.subr.bf16.mxu0 0
        %2207 = vmatpush1.bf16.msra.mxu0 %v2204
        %2208 = vmatprep.subr.bf16.mxu0 0
        %2209 = vmatpush1.bf16.msra.mxu0 0
        %2210 = vmatprep.subr.bf16.mxu0 0
        %2211 = vmatpush1.bf16.msra.mxu0 0
        %2212 = vmatprep.subr.bf16.mxu0 0
        %2213 = vmatpush1.bf16.msra.mxu0 0
        %2214 = vmatprep.subr.bf16.mxu0 0
        %2215 = vmatpush1.bf16.msra.mxu0 0
        %2216 = vmatprep.subr.bf16.mxu0 0
        %2217 = vmatpush1.bf16.msra.mxu0 0
        %2218 = vmatprep.subr.bf16.mxu0 0
        %2219 = vmatpush1.bf16.msra.mxu0 0
        %2220 = vmatprep.subr.bf16.mxu0 0
        %2221 = vmatpush1.bf16.msra.mxu0 0
        %2222 = vmatprep.subr.bf16.mxu0 0
        %2223 = vmatpush1.bf16.msra.mxu0 0
        %2224 = vmatprep.subr.bf16.mxu0 0
        %2225 = vmatpush1.bf16.msra.mxu0 0
        %2226 = vmatprep.subr.bf16.mxu0 0
        %2227 = vmatpush1.bf16.msra.mxu0 0
        %2228 = vmatprep.subr.bf16.mxu0 0
        %2229 = vmatpush1.bf16.msra.mxu0 0
        %2230 = vmatprep.subr.bf16.mxu0 0
        %2231 = vmatpush1.bf16.msra.mxu0 0
        %2232 = vmatprep.subr.bf16.mxu0 0
        %2233 = vmatpush1.bf16.msra.mxu0 0
        %2234 = vmatprep.subr.bf16.mxu0 0
        %2235 = vmatpush1.bf16.msra.mxu0 0
        %2236 = vmatprep.subr.bf16.mxu0 0
        %2237 = vmatpush1.bf16.msra.mxu0 0
        %2238 = vmatprep.mubr.bf16.mxu0 0
        %2239 = vmatmul.mubr.bf16.gmra.mrb[0].mxu0 %v2156
        %v2240 = vpop.f32.mrb[0].mxu0
        %v2241 = vadd.f32 0.0, %v2240
        %v2242 = vpop.f32.mrb[0].mxu0
        %v2243 = vpop.f32.mrb[0].mxu0
        %v2244 = vadd.f32 0.0, %v2243
        %v2245 = vpop.f32.mrb[0].mxu0
        %2246 = vmatprep.mubr.bf16.mxu0 0
        %2247 = vmatmul.mubr.bf16.gmra.mrb[0].mxu0 %v2159
        %v2248 = vpop.f32.mrb[0].mxu0
        %v2249 = vadd.f32 0.0, %v2248
        %v2250 = vpop.f32.mrb[0].mxu0
        %v2251 = vpop.f32.mrb[0].mxu0
        %v2252 = vadd.f32 0.0, %v2251
        %v2253 = vpop.f32.mrb[0].mxu0
        %2254 = vmatprep.mubr.bf16.mxu0 0
        %2255 = vmatmul.mubr.bf16.gmra.mrb[0].mxu0 %v2162
        %v2256 = vpop.f32.mrb[0].mxu0
        %v2257 = vadd.f32 0.0, %v2256
        %v2258 = vpop.f32.mrb[0].mxu0
        %v2259 = vpop.f32.mrb[0].mxu0
        %v2260 = vadd.f32 0.0, %v2259
        %v2261 = vpop.f32.mrb[0].mxu0
        %2262 = vmatprep.mubr.bf16.mxu0 0
        %2263 = vmatmul.mubr.bf16.gmra.mrb[0].mxu0 %v2165
        %v2264 = vpop.f32.mrb[0].mxu0
        %v2265 = vadd.f32 0.0, %v2264
        %v2266 = vpop.f32.mrb[0].mxu0
        %v2267 = vpop.f32.mrb[0].mxu0
        %v2268 = vadd.f32 0.0, %v2267
        %v2269 = vpop.f32.mrb[0].mxu0
        %2270 = vmatprep.mubr.bf16.mxu0 0
        %2271 = vmatmul.mubr.bf16.gmra.mrb[0].mxu0 %v2168
        %v2272 = vpop.f32.mrb[0].mxu0
        %v2273 = vadd.f32 0.0, %v2272
        %v2274 = vpop.f32.mrb[0].mxu0
        %v2275 = vpop.f32.mrb[0].mxu0
        %v2276 = vadd.f32 0.0, %v2275
        %v2277 = vpop.f32.mrb[0].mxu0
        %2278 = vmatprep.mubr.bf16.mxu0 0
        %2279 = vmatmul.mubr.bf16.gmra.mrb[0].mxu0 %v2171
        %v2280 = vpop.f32.mrb[0].mxu0
        %v2281 = vadd.f32 0.0, %v2280
        %v2282 = vpop.f32.mrb[0].mxu0
        %v2283 = vpop.f32.mrb[0].mxu0
        %v2284 = vadd.f32 0.0, %v2283
        %v2285 = vpop.f32.mrb[0].mxu0
        %2286 = vmatprep.mubr.bf16.mxu0 0
        %2287 = vmatmul.mubr.bf16.gmra.mrb[0].mxu0 %v2174
        %v2288 = vpop.f32.mrb[0].mxu0
        %v2289 = vadd.f32 0.0, %v2288
        %v2290 = vpop.f32.mrb[0].mxu0
        %v2291 = vpop.f32.mrb[0].mxu0
        %v2292 = vadd.f32 0.0, %v2291
        %v2293 = vpop.f32.mrb[0].mxu0
        %2294 = vmatprep.mubr.bf16.mxu0 0
        %2295 = vmatmul.mubr.bf16.gmra.mrb[0].mxu0 %v2177
        %v2296 = vpop.f32.mrb[0].mxu0
        %v2297 = vadd.f32 0.0, %v2296
        %v2298 = vpop.f32.mrb[0].mxu0
        %v2299 = vpop.f32.mrb[0].mxu0
        %v2300 = vadd.f32 0.0, %v2299
        %v2301 = vpop.f32.mrb[0].mxu0
        %2302 = vmatprep.mubr.bf16.mxu0 0
        %2303 = vmatmul.mubr.bf16.gmra.mrb[0].mxu0 %v2180
        %v2304 = vpop.f32.mrb[0].mxu0
        %v2305 = vadd.f32 0.0, %v2304
        %v2306 = vpop.f32.mrb[0].mxu0
        %v2307 = vpop.f32.mrb[0].mxu0
        %v2308 = vadd.f32 0.0, %v2307
        %v2309 = vpop.f32.mrb[0].mxu0
        %2310 = vmatprep.mubr.bf16.mxu0 0
        %2311 = vmatmul.mubr.bf16.gmra.mrb[0].mxu0 %v2183
        %v2312 = vpop.f32.mrb[0].mxu0
        %v2313 = vadd.f32 0.0, %v2312
        %v2314 = vpop.f32.mrb[0].mxu0
        %v2315 = vpop.f32.mrb[0].mxu0
        %v2316 = vadd.f32 0.0, %v2315
        %v2317 = vpop.f32.mrb[0].mxu0
        %2318 = vmatprep.mubr.bf16.mxu0 0
        %2319 = vmatmul.mubr.bf16.gmra.mrb[0].mxu0 %v2186
        %v2320 = vpop.f32.mrb[0].mxu0
        %v2321 = vadd.f32 0.0, %v2320
        %v2322 = vpop.f32.mrb[0].mxu0
        %v2323 = vpop.f32.mrb[0].mxu0
        %v2324 = vadd.f32 0.0, %v2323
        %v2325 = vpop.f32.mrb[0].mxu0
        %2326 = vmatprep.mubr.bf16.mxu0 0
        %2327 = vmatmul.mubr.bf16.gmra.mrb[0].mxu0 %v2189
        %v2328 = vpop.f32.mrb[0].mxu0
        %v2329 = vadd.f32 0.0, %v2328
        %v2330 = vpop.f32.mrb[0].mxu0
        %v2331 = vpop.f32.mrb[0].mxu0
        %v2332 = vadd.f32 0.0, %v2331
        %v2333 = vpop.f32.mrb[0].mxu0
        %2334 = vmatprep.mubr.bf16.mxu0 0
        %2335 = vmatmul.mubr.bf16.gmra.mrb[0].mxu0 %v2192
        %v2336 = vpop.f32.mrb[0].mxu0
        %v2337 = vadd.f32 0.0, %v2336
        %v2338 = vpop.f32.mrb[0].mxu0
        %v2339 = vpop.f32.mrb[0].mxu0
        %v2340 = vadd.f32 0.0, %v2339
        %v2341 = vpop.f32.mrb[0].mxu0
        %2342 = vmatprep.mubr.bf16.mxu0 0
        %2343 = vmatmul.mubr.bf16.gmra.mrb[0].mxu0 %v2195
        %v2344 = vpop.f32.mrb[0].mxu0
        %v2345 = vadd.f32 0.0, %v2344
        %v2346 = vpop.f32.mrb[0].mxu0
        %v2347 = vpop.f32.mrb[0].mxu0
        %v2348 = vadd.f32 0.0, %v2347
        %v2349 = vpop.f32.mrb[0].mxu0
        %2350 = vmatprep.mubr.bf16.mxu0 0
        %2351 = vmatmul.mubr.bf16.gmra.mrb[0].mxu0 %v2198
        %v2352 = vpop.f32.mrb[0].mxu0
        %v2353 = vadd.f32 0.0, %v2352
        %v2354 = vpop.f32.mrb[0].mxu0
        %v2355 = vpop.f32.mrb[0].mxu0
        %v2356 = vadd.f32 0.0, %v2355
        %v2357 = vpop.f32.mrb[0].mxu0
        %2358 = vmatprep.mubr.bf16.mxu0 0
        %2359 = vmatmul.mubr.bf16.gmra.mrb[0].mxu0 %v2201
        %v2360 = vpop.f32.mrb[0].mxu0
        %v2361 = vadd.f32 0.0, %v2360
        %v2362 = vpop.f32.mrb[0].mxu0
        %v2363 = vpop.f32.mrb[0].mxu0
        %v2364 = vadd.f32 0.0, %v2363
        %v2365 = vpop.f32.mrb[0].mxu0
        %2366 = vdwg.mxu0
        %v2367 = vadd.f32 %v1914, %v2241
        %v2368 = vadd.f32 %v1917, %v2244
        %v2369 = vadd.f32 %v1922, %v2249
        %v2370 = vadd.f32 %v1925, %v2252
        %v2371 = vadd.f32 %v1930, %v2257
        %v2372 = vadd.f32 %v1933, %v2260
        %v2373 = vadd.f32 %v1938, %v2265
        %v2374 = vadd.f32 %v1941, %v2268
        %v2375 = vadd.f32 %v1946, %v2273
        %v2376 = vadd.f32 %v1949, %v2276
        %v2377 = vadd.f32 %v1954, %v2281
        %v2378 = vadd.f32 %v1957, %v2284
        %v2379 = vadd.f32 %v1962, %v2289
        %v2380 = vadd.f32 %v1965, %v2292
        %v2381 = vadd.f32 %v1970, %v2297
        %v2382 = vadd.f32 %v1973, %v2300
        %v2383 = vadd.f32 %v1978, %v2305
        %v2384 = vadd.f32 %v1981, %v2308
        %v2385 = vadd.f32 %v1986, %v2313
        %v2386 = vadd.f32 %v1989, %v2316
        %v2387 = vadd.f32 %v1994, %v2321
        %v2388 = vadd.f32 %v1997, %v2324
        %v2389 = vadd.f32 %v2002, %v2329
        %v2390 = vadd.f32 %v2005, %v2332
        %v2391 = vadd.f32 %v2010, %v2337
        %v2392 = vadd.f32 %v2013, %v2340
        %v2393 = vadd.f32 %v2018, %v2345
        %v2394 = vadd.f32 %v2021, %v2348
        %v2395 = vadd.f32 %v2026, %v2353
        %v2396 = vadd.f32 %v2029, %v2356
        %v2397 = vadd.f32 %v2034, %v2361
        %v2398 = vadd.f32 %v2037, %v2364
        %v2399 = vld [vmem:[%s1056 + $0x8] sm:$0xc0]
        %v2400 = vld [vmem:[%s1056 + $0x10] sm:$0x3f]
        %v2401 = vld [vmem:[%s1056 + $0x38] sm:$0xc0]
        %v2402 = vld [vmem:[%s1056 + $0x40] sm:$0x3f]
        %v2403 = vld [vmem:[%s1056 + $0x68] sm:$0xc0]
        %v2404 = vld [vmem:[%s1056 + $0x70] sm:$0x3f]
        %v2405 = vld [vmem:[%s1056 + $0x98] sm:$0xc0]
        %v2406 = vld [vmem:[%s1056 + $0xa0] sm:$0x3f]
        %v2407 = vld [vmem:[%s1056 + $0xc8] sm:$0xc0]
        %v2408 = vld [vmem:[%s1056 + $0xd0] sm:$0x3f]
        %v2409 = vld [vmem:[%s1056 + $0xf8] sm:$0xc0]
        %v2410 = vld [vmem:[%s1056 + $0x100] sm:$0x3f]
        %v2411 = vld [vmem:[%s1056 + $0x128] sm:$0xc0]
        %v2412 = vld [vmem:[%s1056 + $0x130] sm:$0x3f]
        %v2413 = vld [vmem:[%s1056 + $0x158] sm:$0xc0]
        %v2414 = vld [vmem:[%s1056 + $0x160] sm:$0x3f]
        %v2415 = vld [vmem:[%s1056 + $0x188] sm:$0xc0]
        %v2416 = vld [vmem:[%s1056 + $0x190] sm:$0x3f]
        %v2417 = vld [vmem:[%s1056 + $0x1b8] sm:$0xc0]
        %v2418 = vld [vmem:[%s1056 + $0x1c0] sm:$0x3f]
        %v2419 = vld [vmem:[%s1056 + $0x1e8] sm:$0xc0]
        %v2420 = vld [vmem:[%s1056 + $0x1f0] sm:$0x3f]
        %v2421 = vld [vmem:[%s1056 + $0x218] sm:$0xc0]
        %v2422 = vld [vmem:[%s1056 + $0x220] sm:$0x3f]
        %v2423 = vld [vmem:[%s1056 + $0x248] sm:$0xc0]
        %v2424 = vld [vmem:[%s1056 + $0x250] sm:$0x3f]
        %v2425 = vld [vmem:[%s1056 + $0x278] sm:$0xc0]
        %v2426 = vld [vmem:[%s1056 + $0x280] sm:$0x3f]
        %v2427 = vld [vmem:[%s1056 + $0x2a8] sm:$0xc0]
        %v2428 = vld [vmem:[%s1056 + $0x2b0] sm:$0x3f]
        %v2429 = vld [vmem:[%s1056 + $0x2d8] sm:$0xc0]
        %v2430 = vld [vmem:[%s1056 + $0x2e0] sm:$0x3f]
        %v2463 = vrot.slane %v2399, 6
        %v2464 = vrot.slane %v2400, 6
        %v2465 = vsel %vm1452, %v2463, %v2464
        %v2466 = vrot.slane %v2401, 6
        %v2467 = vrot.slane %v2402, 6
        %v2468 = vsel %vm1452, %v2466, %v2467
        %v2469 = vrot.slane %v2403, 6
        %v2470 = vrot.slane %v2404, 6
        %v2471 = vsel %vm1452, %v2469, %v2470
        %v2472 = vrot.slane %v2405, 6
        %v2473 = vrot.slane %v2406, 6
        %v2474 = vsel %vm1452, %v2472, %v2473
        %v2475 = vrot.slane %v2407, 6
        %v2476 = vrot.slane %v2408, 6
        %v2477 = vsel %vm1452, %v2475, %v2476
        %v2478 = vrot.slane %v2409, 6
        %v2479 = vrot.slane %v2410, 6
        %v2480 = vsel %vm1452, %v2478, %v2479
        %v2481 = vrot.slane %v2411, 6
        %v2482 = vrot.slane %v2412, 6
        %v2483 = vsel %vm1452, %v2481, %v2482
        %v2484 = vrot.slane %v2413, 6
        %v2485 = vrot.slane %v2414, 6
        %v2486 = vsel %vm1452, %v2484, %v2485
        %v2487 = vrot.slane %v2415, 6
        %v2488 = vrot.slane %v2416, 6
        %v2489 = vsel %vm1452, %v2487, %v2488
        %v2490 = vrot.slane %v2417, 6
        %v2491 = vrot.slane %v2418, 6
        %v2492 = vsel %vm1452, %v2490, %v2491
        %v2493 = vrot.slane %v2419, 6
        %v2494 = vrot.slane %v2420, 6
        %v2495 = vsel %vm1452, %v2493, %v2494
        %v2496 = vrot.slane %v2421, 6
        %v2497 = vrot.slane %v2422, 6
        %v2498 = vsel %vm1452, %v2496, %v2497
        %v2499 = vrot.slane %v2423, 6
        %v2500 = vrot.slane %v2424, 6
        %v2501 = vsel %vm1452, %v2499, %v2500
        %v2502 = vrot.slane %v2425, 6
        %v2503 = vrot.slane %v2426, 6
        %v2504 = vsel %vm1452, %v2502, %v2503
        %v2505 = vrot.slane %v2427, 6
        %v2506 = vrot.slane %v2428, 6
        %v2507 = vsel %vm1452, %v2505, %v2506
        %v2508 = vrot.slane %v2429, 6
        %v2509 = vrot.slane %v2430, 6
        %v2510 = vsel %vm1452, %v2508, %v2509
        %s2511 = scalar_lea.vmem %s2, 6
        %v2512 = vld [vmem:[%s2511] sm:$0x3]
        %v2514 = vsel %vm1170, %v2465, 0
        %v2517 = vsel %vm1170, %v2468, 0
        %v2520 = vsel %vm1170, %v2471, 0
        %v2523 = vsel %vm1170, %v2474, 0
        %v2526 = vsel %vm1170, %v2477, 0
        %v2529 = vsel %vm1170, %v2480, 0
        %v2532 = vsel %vm1170, %v2483, 0
        %v2535 = vsel %vm1170, %v2486, 0
        %v2538 = vsel %vm1170, %v2489, 0
        %v2541 = vsel %vm1170, %v2492, 0
        %v2544 = vsel %vm1170, %v2495, 0
        %v2547 = vsel %vm1170, %v2498, 0
        %v2550 = vsel %vm1170, %v2501, 0
        %v2553 = vsel %vm1170, %v2504, 0
        %v2556 = vsel %vm1170, %v2507, 0
        %v2559 = vsel %vm1170, %v2510, 0
        %v2562 = vsel %vm1219, %v2512, 0
        %2564 = vmatprep.subr.bf16.mxu0 0
        %2565 = vmatpush1.bf16.msra.mxu0 %v2562
        %2566 = vmatprep.subr.bf16.mxu0 0
        %2567 = vmatpush1.bf16.msra.mxu0 0
        %2568 = vmatprep.subr.bf16.mxu0 0
        %2569 = vmatpush1.bf16.msra.mxu0 0
        %2570 = vmatprep.subr.bf16.mxu0 0
        %2571 = vmatpush1.bf16.msra.mxu0 0
        %2572 = vmatprep.subr.bf16.mxu0 0
        %2573 = vmatpush1.bf16.msra.mxu0 0
        %2574 = vmatprep.subr.bf16.mxu0 0
        %2575 = vmatpush1.bf16.msra.mxu0 0
        %2576 = vmatprep.subr.bf16.mxu0 0
        %2577 = vmatpush1.bf16.msra.mxu0 0
        %2578 = vmatprep.subr.bf16.mxu0 0
        %2579 = vmatpush1.bf16.msra.mxu0 0
        %2580 = vmatprep.subr.bf16.mxu0 0
        %2581 = vmatpush1.bf16.msra.mxu0 0
        %2582 = vmatprep.subr.bf16.mxu0 0
        %2583 = vmatpush1.bf16.msra.mxu0 0
        %2584 = vmatprep.subr.bf16.mxu0 0
        %2585 = vmatpush1.bf16.msra.mxu0 0
        %2586 = vmatprep.subr.bf16.mxu0 0
        %2587 = vmatpush1.bf16.msra.mxu0 0
        %2588 = vmatprep.subr.bf16.mxu0 0
        %2589 = vmatpush1.bf16.msra.mxu0 0
        %2590 = vmatprep.subr.bf16.mxu0 0
        %2591 = vmatpush1.bf16.msra.mxu0 0
        %2592 = vmatprep.subr.bf16.mxu0 0
        %2593 = vmatpush1.bf16.msra.mxu0 0
        %2594 = vmatprep.subr.bf16.mxu0 0
        %2595 = vmatpush1.bf16.msra.mxu0 0
        %2596 = vmatprep.mubr.bf16.mxu0 0
        %2597 = vmatmul.mubr.bf16.gmra.mrb[0].mxu0 %v2514
        %v2598 = vpop.f32.mrb[0].mxu0
        %v2599 = vadd.f32 0.0, %v2598
        %v2600 = vpop.f32.mrb[0].mxu0
        %v2601 = vpop.f32.mrb[0].mxu0
        %v2602 = vadd.f32 0.0, %v2601
        %v2603 = vpop.f32.mrb[0].mxu0
        %2604 = vmatprep.mubr.bf16.mxu0 0
        %2605 = vmatmul.mubr.bf16.gmra.mrb[0].mxu0 %v2517
        %v2606 = vpop.f32.mrb[0].mxu0
        %v2607 = vadd.f32 0.0, %v2606
        %v2608 = vpop.f32.mrb[0].mxu0
        %v2609 = vpop.f32.mrb[0].mxu0
        %v2610 = vadd.f32 0.0, %v2609
        %v2611 = vpop.f32.mrb[0].mxu0
        %2612 = vmatprep.mubr.bf16.mxu0 0
        %2613 = vmatmul.mubr.bf16.gmra.mrb[0].mxu0 %v2520
        %v2614 = vpop.f32.mrb[0].mxu0
        %v2615 = vadd.f32 0.0, %v2614
        %v2616 = vpop.f32.mrb[0].mxu0
        %v2617 = vpop.f32.mrb[0].mxu0
        %v2618 = vadd.f32 0.0, %v2617
        %v2619 = vpop.f32.mrb[0].mxu0
        %2620 = vmatprep.mubr.bf16.mxu0 0
        %2621 = vmatmul.mubr.bf16.gmra.mrb[0].mxu0 %v2523
        %v2622 = vpop.f32.mrb[0].mxu0
        %v2623 = vadd.f32 0.0, %v2622
        %v2624 = vpop.f32.mrb[0].mxu0
        %v2625 = vpop.f32.mrb[0].mxu0
        %v2626 = vadd.f32 0.0, %v2625
        %v2627 = vpop.f32.mrb[0].mxu0
        %2628 = vmatprep.mubr.bf16.mxu0 0
        %2629 = vmatmul.mubr.bf16.gmra.mrb[0].mxu0 %v2526
        %v2630 = vpop.f32.mrb[0].mxu0
        %v2631 = vadd.f32 0.0, %v2630
        %v2632 = vpop.f32.mrb[0].mxu0
        %v2633 = vpop.f32.mrb[0].mxu0
        %v2634 = vadd.f32 0.0, %v2633
        %v2635 = vpop.f32.mrb[0].mxu0
        %2636 = vmatprep.mubr.bf16.mxu0 0
        %2637 = vmatmul.mubr.bf16.gmra.mrb[0].mxu0 %v2529
        %v2638 = vpop.f32.mrb[0].mxu0
        %v2639 = vadd.f32 0.0, %v2638
        %v2640 = vpop.f32.mrb[0].mxu0
        %v2641 = vpop.f32.mrb[0].mxu0
        %v2642 = vadd.f32 0.0, %v2641
        %v2643 = vpop.f32.mrb[0].mxu0
        %2644 = vmatprep.mubr.bf16.mxu0 0
        %2645 = vmatmul.mubr.bf16.gmra.mrb[0].mxu0 %v2532
        %v2646 = vpop.f32.mrb[0].mxu0
        %v2647 = vadd.f32 0.0, %v2646
        %v2648 = vpop.f32.mrb[0].mxu0
        %v2649 = vpop.f32.mrb[0].mxu0
        %v2650 = vadd.f32 0.0, %v2649
        %v2651 = vpop.f32.mrb[0].mxu0
        %2652 = vmatprep.mubr.bf16.mxu0 0
        %2653 = vmatmul.mubr.bf16.gmra.mrb[0].mxu0 %v2535
        %v2654 = vpop.f32.mrb[0].mxu0
        %v2655 = vadd.f32 0.0, %v2654
        %v2656 = vpop.f32.mrb[0].mxu0
        %v2657 = vpop.f32.mrb[0].mxu0
        %v2658 = vadd.f32 0.0, %v2657
        %v2659 = vpop.f32.mrb[0].mxu0
        %2660 = vmatprep.mubr.bf16.mxu0 0
        %2661 = vmatmul.mubr.bf16.gmra.mrb[0].mxu0 %v2538
        %v2662 = vpop.f32.mrb[0].mxu0
        %v2663 = vadd.f32 0.0, %v2662
        %v2664 = vpop.f32.mrb[0].mxu0
        %v2665 = vpop.f32.mrb[0].mxu0
        %v2666 = vadd.f32 0.0, %v2665
        %v2667 = vpop.f32.mrb[0].mxu0
        %2668 = vmatprep.mubr.bf16.mxu0 0
        %2669 = vmatmul.mubr.bf16.gmra.mrb[0].mxu0 %v2541
        %v2670 = vpop.f32.mrb[0].mxu0
        %v2671 = vadd.f32 0.0, %v2670
        %v2672 = vpop.f32.mrb[0].mxu0
        %v2673 = vpop.f32.mrb[0].mxu0
        %v2674 = vadd.f32 0.0, %v2673
        %v2675 = vpop.f32.mrb[0].mxu0
        %2676 = vmatprep.mubr.bf16.mxu0 0
        %2677 = vmatmul.mubr.bf16.gmra.mrb[0].mxu0 %v2544
        %v2678 = vpop.f32.mrb[0].mxu0
        %v2679 = vadd.f32 0.0, %v2678
        %v2680 = vpop.f32.mrb[0].mxu0
        %v2681 = vpop.f32.mrb[0].mxu0
        %v2682 = vadd.f32 0.0, %v2681
        %v2683 = vpop.f32.mrb[0].mxu0
        %2684 = vmatprep.mubr.bf16.mxu0 0
        %2685 = vmatmul.mubr.bf16.gmra.mrb[0].mxu0 %v2547
        %v2686 = vpop.f32.mrb[0].mxu0
        %v2687 = vadd.f32 0.0, %v2686
        %v2688 = vpop.f32.mrb[0].mxu0
        %v2689 = vpop.f32.mrb[0].mxu0
        %v2690 = vadd.f32 0.0, %v2689
        %v2691 = vpop.f32.mrb[0].mxu0
        %2692 = vmatprep.mubr.bf16.mxu0 0
        %2693 = vmatmul.mubr.bf16.gmra.mrb[0].mxu0 %v2550
        %v2694 = vpop.f32.mrb[0].mxu0
        %v2695 = vadd.f32 0.0, %v2694
        %v2696 = vpop.f32.mrb[0].mxu0
        %v2697 = vpop.f32.mrb[0].mxu0
        %v2698 = vadd.f32 0.0, %v2697
        %v2699 = vpop.f32.mrb[0].mxu0
        %2700 = vmatprep.mubr.bf16.mxu0 0
        %2701 = vmatmul.mubr.bf16.gmra.mrb[0].mxu0 %v2553
        %v2702 = vpop.f32.mrb[0].mxu0
        %v2703 = vadd.f32 0.0, %v2702
        %v2704 = vpop.f32.mrb[0].mxu0
        %v2705 = vpop.f32.mrb[0].mxu0
        %v2706 = vadd.f32 0.0, %v2705
        %v2707 = vpop.f32.mrb[0].mxu0
        %2708 = vmatprep.mubr.bf16.mxu0 0
        %2709 = vmatmul.mubr.bf16.gmra.mrb[0].mxu0 %v2556
        %v2710 = vpop.f32.mrb[0].mxu0
        %v2711 = vadd.f32 0.0, %v2710
        %v2712 = vpop.f32.mrb[0].mxu0
        %v2713 = vpop.f32.mrb[0].mxu0
        %v2714 = vadd.f32 0.0, %v2713
        %v2715 = vpop.f32.mrb[0].mxu0
        %2716 = vmatprep.mubr.bf16.mxu0 0
        %2717 = vmatmul.mubr.bf16.gmra.mrb[0].mxu0 %v2559
        %v2718 = vpop.f32.mrb[0].mxu0
        %v2719 = vadd.f32 0.0, %v2718
        %v2720 = vpop.f32.mrb[0].mxu0
        %v2721 = vpop.f32.mrb[0].mxu0
        %v2722 = vadd.f32 0.0, %v2721
        %v2723 = vpop.f32.mrb[0].mxu0
        %2724 = vdwg.mxu0
        %v2725 = vadd.f32 %v2367, %v2599
        %v2726 = vadd.f32 %v2368, %v2602
        %v2727 = vadd.f32 %v2369, %v2607
        %v2728 = vadd.f32 %v2370, %v2610
        %v2729 = vadd.f32 %v2371, %v2615
        %v2730 = vadd.f32 %v2372, %v2618
        %v2731 = vadd.f32 %v2373, %v2623
        %v2732 = vadd.f32 %v2374, %v2626
        %v2733 = vadd.f32 %v2375, %v2631
        %v2734 = vadd.f32 %v2376, %v2634
        %v2735 = vadd.f32 %v2377, %v2639
        %v2736 = vadd.f32 %v2378, %v2642
        %v2737 = vadd.f32 %v2379, %v2647
        %v2738 = vadd.f32 %v2380, %v2650
        %v2739 = vadd.f32 %v2381, %v2655
        %v2740 = vadd.f32 %v2382, %v2658
        %v2741 = vadd.f32 %v2383, %v2663
        %v2742 = vadd.f32 %v2384, %v2666
        %v2743 = vadd.f32 %v2385, %v2671
        %v2744 = vadd.f32 %v2386, %v2674
        %v2745 = vadd.f32 %v2387, %v2679
        %v2746 = vadd.f32 %v2388, %v2682
        %v2747 = vadd.f32 %v2389, %v2687
        %v2748 = vadd.f32 %v2390, %v2690
        %v2749 = vadd.f32 %v2391, %v2695
        %v2750 = vadd.f32 %v2392, %v2698
        %v2751 = vadd.f32 %v2393, %v2703
        %v2752 = vadd.f32 %v2394, %v2706
        %v2753 = vadd.f32 %v2395, %v2711
        %v2754 = vadd.f32 %v2396, %v2714
        %v2755 = vadd.f32 %v2397, %v2719
        %v2756 = vadd.f32 %v2398, %v2722
        %v2757 = vld [vmem:[%s1056 + $0x18] sm:$0xfc]
        %v2758 = vld [vmem:[%s1056 + $0x20] sm:$0x3]
        %v2759 = vld [vmem:[%s1056 + $0x48] sm:$0xfc]
        %v2760 = vld [vmem:[%s1056 + $0x50] sm:$0x3]
        %v2761 = vld [vmem:[%s1056 + $0x78] sm:$0xfc]
        %v2762 = vld [vmem:[%s1056 + $0x80] sm:$0x3]
        %v2763 = vld [vmem:[%s1056 + $0xa8] sm:$0xfc]
        %v2764 = vld [vmem:[%s1056 + $0xb0] sm:$0x3]
        %v2765 = vld [vmem:[%s1056 + $0xd8] sm:$0xfc]
        %v2766 = vld [vmem:[%s1056 + $0xe0] sm:$0x3]
        %v2767 = vld [vmem:[%s1056 + $0x108] sm:$0xfc]
        %v2768 = vld [vmem:[%s1056 + $0x110] sm:$0x3]
        %v2769 = vld [vmem:[%s1056 + $0x138] sm:$0xfc]
        %v2770 = vld [vmem:[%s1056 + $0x140] sm:$0x3]
        %v2771 = vld [vmem:[%s1056 + $0x168] sm:$0xfc]
        %v2772 = vld [vmem:[%s1056 + $0x170] sm:$0x3]
        %v2773 = vld [vmem:[%s1056 + $0x198] sm:$0xfc]
        %v2774 = vld [vmem:[%s1056 + $0x1a0] sm:$0x3]
        %v2775 = vld [vmem:[%s1056 + $0x1c8] sm:$0xfc]
        %v2776 = vld [vmem:[%s1056 + $0x1d0] sm:$0x3]
        %v2777 = vld [vmem:[%s1056 + $0x1f8] sm:$0xfc]
        %v2778 = vld [vmem:[%s1056 + $0x200] sm:$0x3]
        %v2779 = vld [vmem:[%s1056 + $0x228] sm:$0xfc]
        %v2780 = vld [vmem:[%s1056 + $0x230] sm:$0x3]
        %v2781 = vld [vmem:[%s1056 + $0x258] sm:$0xfc]
        %v2782 = vld [vmem:[%s1056 + $0x260] sm:$0x3]
        %v2783 = vld [vmem:[%s1056 + $0x288] sm:$0xfc]
        %v2784 = vld [vmem:[%s1056 + $0x290] sm:$0x3]
        %v2785 = vld [vmem:[%s1056 + $0x2b8] sm:$0xfc]
        %v2786 = vld [vmem:[%s1056 + $0x2c0] sm:$0x3]
        %v2787 = vld [vmem:[%s1056 + $0x2e8] sm:$0xfc]
        %v2788 = vld [vmem:[%s1056 + $0x2f0] sm:$0x3]
        %v2821 = vrot.slane %v2757, 2
        %v2822 = vrot.slane %v2758, 2
        %v2823 = vsel %vm2104, %v2821, %v2822
        %v2824 = vrot.slane %v2759, 2
        %v2825 = vrot.slane %v2760, 2
        %v2826 = vsel %vm2104, %v2824, %v2825
        %v2827 = vrot.slane %v2761, 2
        %v2828 = vrot.slane %v2762, 2
        %v2829 = vsel %vm2104, %v2827, %v2828
        %v2830 = vrot.slane %v2763, 2
        %v2831 = vrot.slane %v2764, 2
        %v2832 = vsel %vm2104, %v2830, %v2831
        %v2833 = vrot.slane %v2765, 2
        %v2834 = vrot.slane %v2766, 2
        %v2835 = vsel %vm2104, %v2833, %v2834
        %v2836 = vrot.slane %v2767, 2
        %v2837 = vrot.slane %v2768, 2
        %v2838 = vsel %vm2104, %v2836, %v2837
        %v2839 = vrot.slane %v2769, 2
        %v2840 = vrot.slane %v2770, 2
        %v2841 = vsel %vm2104, %v2839, %v2840
        %v2842 = vrot.slane %v2771, 2
        %v2843 = vrot.slane %v2772, 2
        %v2844 = vsel %vm2104, %v2842, %v2843
        %v2845 = vrot.slane %v2773, 2
        %v2846 = vrot.slane %v2774, 2
        %v2847 = vsel %vm2104, %v2845, %v2846
        %v2848 = vrot.slane %v2775, 2
        %v2849 = vrot.slane %v2776, 2
        %v2850 = vsel %vm2104, %v2848, %v2849
        %v2851 = vrot.slane %v2777, 2
        %v2852 = vrot.slane %v2778, 2
        %v2853 = vsel %vm2104, %v2851, %v2852
        %v2854 = vrot.slane %v2779, 2
        %v2855 = vrot.slane %v2780, 2
        %v2856 = vsel %vm2104, %v2854, %v2855
        %v2857 = vrot.slane %v2781, 2
        %v2858 = vrot.slane %v2782, 2
        %v2859 = vsel %vm2104, %v2857, %v2858
        %v2860 = vrot.slane %v2783, 2
        %v2861 = vrot.slane %v2784, 2
        %v2862 = vsel %vm2104, %v2860, %v2861
        %v2863 = vrot.slane %v2785, 2
        %v2864 = vrot.slane %v2786, 2
        %v2865 = vsel %vm2104, %v2863, %v2864
        %v2866 = vrot.slane %v2787, 2
        %v2867 = vrot.slane %v2788, 2
        %v2868 = vsel %vm2104, %v2866, %v2867
        %s2869 = scalar_lea.vmem %s2, 8
        %v2870 = vld [vmem:[%s2869] sm:$0x3]
        %v2872 = vsel %vm1170, %v2823, 0
        %v2875 = vsel %vm1170, %v2826, 0
        %v2878 = vsel %vm1170, %v2829, 0
        %v2881 = vsel %vm1170, %v2832, 0
        %v2884 = vsel %vm1170, %v2835, 0
        %v2887 = vsel %vm1170, %v2838, 0
        %v2890 = vsel %vm1170, %v2841, 0
        %v2893 = vsel %vm1170, %v2844, 0
        %v2896 = vsel %vm1170, %v2847, 0
        %v2899 = vsel %vm1170, %v2850, 0
        %v2902 = vsel %vm1170, %v2853, 0
        %v2905 = vsel %vm1170, %v2856, 0
        %v2908 = vsel %vm1170, %v2859, 0
        %v2911 = vsel %vm1170, %v2862, 0
        %v2914 = vsel %vm1170, %v2865, 0
        %v2917 = vsel %vm1170, %v2868, 0
        %v2920 = vsel %vm1219, %v2870, 0
        %2922 = vmatprep.subr.bf16.mxu0 0
        %2923 = vmatpush1.bf16.msra.mxu0 %v2920
        %2924 = vmatprep.subr.bf16.mxu0 0
        %2925 = vmatpush1.bf16.msra.mxu0 0
        %2926 = vmatprep.subr.bf16.mxu0 0
        %2927 = vmatpush1.bf16.msra.mxu0 0
        %2928 = vmatprep.subr.bf16.mxu0 0
        %2929 = vmatpush1.bf16.msra.mxu0 0
        %2930 = vmatprep.subr.bf16.mxu0 0
        %2931 = vmatpush1.bf16.msra.mxu0 0
        %2932 = vmatprep.subr.bf16.mxu0 0
        %2933 = vmatpush1.bf16.msra.mxu0 0
        %2934 = vmatprep.subr.bf16.mxu0 0
        %2935 = vmatpush1.bf16.msra.mxu0 0
        %2936 = vmatprep.subr.bf16.mxu0 0
        %2937 = vmatpush1.bf16.msra.mxu0 0
        %2938 = vmatprep.subr.bf16.mxu0 0
        %2939 = vmatpush1.bf16.msra.mxu0 0
        %2940 = vmatprep.subr.bf16.mxu0 0
        %2941 = vmatpush1.bf16.msra.mxu0 0
        %2942 = vmatprep.subr.bf16.mxu0 0
        %2943 = vmatpush1.bf16.msra.mxu0 0
        %2944 = vmatprep.subr.bf16.mxu0 0
        %2945 = vmatpush1.bf16.msra.mxu0 0
        %2946 = vmatprep.subr.bf16.mxu0 0
        %2947 = vmatpush1.bf16.msra.mxu0 0
        %2948 = vmatprep.subr.bf16.mxu0 0
        %2949 = vmatpush1.bf16.msra.mxu0 0
        %2950 = vmatprep.subr.bf16.mxu0 0
        %2951 = vmatpush1.bf16.msra.mxu0 0
        %2952 = vmatprep.subr.bf16.mxu0 0
        %2953 = vmatpush1.bf16.msra.mxu0 0
        %2954 = vmatprep.mubr.bf16.mxu0 0
        %2955 = vmatmul.mubr.bf16.gmra.mrb[0].mxu0 %v2872
        %v2956 = vpop.f32.mrb[0].mxu0
        %v2957 = vadd.f32 0.0, %v2956
        %v2958 = vpop.f32.mrb[0].mxu0
        %v2959 = vpop.f32.mrb[0].mxu0
        %v2960 = vadd.f32 0.0, %v2959
        %v2961 = vpop.f32.mrb[0].mxu0
        %2962 = vmatprep.mubr.bf16.mxu0 0
        %2963 = vmatmul.mubr.bf16.gmra.mrb[0].mxu0 %v2875
        %v2964 = vpop.f32.mrb[0].mxu0
        %v2965 = vadd.f32 0.0, %v2964
        %v2966 = vpop.f32.mrb[0].mxu0
        %v2967 = vpop.f32.mrb[0].mxu0
        %v2968 = vadd.f32 0.0, %v2967
        %v2969 = vpop.f32.mrb[0].mxu0
        %2970 = vmatprep.mubr.bf16.mxu0 0
        %2971 = vmatmul.mubr.bf16.gmra.mrb[0].mxu0 %v2878
        %v2972 = vpop.f32.mrb[0].mxu0
        %v2973 = vadd.f32 0.0, %v2972
        %v2974 = vpop.f32.mrb[0].mxu0
        %v2975 = vpop.f32.mrb[0].mxu0
        %v2976 = vadd.f32 0.0, %v2975
        %v2977 = vpop.f32.mrb[0].mxu0
        %2978 = vmatprep.mubr.bf16.mxu0 0
        %2979 = vmatmul.mubr.bf16.gmra.mrb[0].mxu0 %v2881
        %v2980 = vpop.f32.mrb[0].mxu0
        %v2981 = vadd.f32 0.0, %v2980
        %v2982 = vpop.f32.mrb[0].mxu0
        %v2983 = vpop.f32.mrb[0].mxu0
        %v2984 = vadd.f32 0.0, %v2983
        %v2985 = vpop.f32.mrb[0].mxu0
        %2986 = vmatprep.mubr.bf16.mxu0 0
        %2987 = vmatmul.mubr.bf16.gmra.mrb[0].mxu0 %v2884
        %v2988 = vpop.f32.mrb[0].mxu0
        %v2989 = vadd.f32 0.0, %v2988
        %v2990 = vpop.f32.mrb[0].mxu0
        %v2991 = vpop.f32.mrb[0].mxu0
        %v2992 = vadd.f32 0.0, %v2991
        %v2993 = vpop.f32.mrb[0].mxu0
        %2994 = vmatprep.mubr.bf16.mxu0 0
        %2995 = vmatmul.mubr.bf16.gmra.mrb[0].mxu0 %v2887
        %v2996 = vpop.f32.mrb[0].mxu0
        %v2997 = vadd.f32 0.0, %v2996
        %v2998 = vpop.f32.mrb[0].mxu0
        %v2999 = vpop.f32.mrb[0].mxu0
        %v3000 = vadd.f32 0.0, %v2999
        %v3001 = vpop.f32.mrb[0].mxu0
        %3002 = vmatprep.mubr.bf16.mxu0 0
        %3003 = vmatmul.mubr.bf16.gmra.mrb[0].mxu0 %v2890
        %v3004 = vpop.f32.mrb[0].mxu0
        %v3005 = vadd.f32 0.0, %v3004
        %v3006 = vpop.f32.mrb[0].mxu0
        %v3007 = vpop.f32.mrb[0].mxu0
        %v3008 = vadd.f32 0.0, %v3007
        %v3009 = vpop.f32.mrb[0].mxu0
        %3010 = vmatprep.mubr.bf16.mxu0 0
        %3011 = vmatmul.mubr.bf16.gmra.mrb[0].mxu0 %v2893
        %v3012 = vpop.f32.mrb[0].mxu0
        %v3013 = vadd.f32 0.0, %v3012
        %v3014 = vpop.f32.mrb[0].mxu0
        %v3015 = vpop.f32.mrb[0].mxu0
        %v3016 = vadd.f32 0.0, %v3015
        %v3017 = vpop.f32.mrb[0].mxu0
        %3018 = vmatprep.mubr.bf16.mxu0 0
        %3019 = vmatmul.mubr.bf16.gmra.mrb[0].mxu0 %v2896
        %v3020 = vpop.f32.mrb[0].mxu0
        %v3021 = vadd.f32 0.0, %v3020
        %v3022 = vpop.f32.mrb[0].mxu0
        %v3023 = vpop.f32.mrb[0].mxu0
        %v3024 = vadd.f32 0.0, %v3023
        %v3025 = vpop.f32.mrb[0].mxu0
        %3026 = vmatprep.mubr.bf16.mxu0 0
        %3027 = vmatmul.mubr.bf16.gmra.mrb[0].mxu0 %v2899
        %v3028 = vpop.f32.mrb[0].mxu0
        %v3029 = vadd.f32 0.0, %v3028
        %v3030 = vpop.f32.mrb[0].mxu0
        %v3031 = vpop.f32.mrb[0].mxu0
        %v3032 = vadd.f32 0.0, %v3031
        %v3033 = vpop.f32.mrb[0].mxu0
        %3034 = vmatprep.mubr.bf16.mxu0 0
        %3035 = vmatmul.mubr.bf16.gmra.mrb[0].mxu0 %v2902
        %v3036 = vpop.f32.mrb[0].mxu0
        %v3037 = vadd.f32 0.0, %v3036
        %v3038 = vpop.f32.mrb[0].mxu0
        %v3039 = vpop.f32.mrb[0].mxu0
        %v3040 = vadd.f32 0.0, %v3039
        %v3041 = vpop.f32.mrb[0].mxu0
        %3042 = vmatprep.mubr.bf16.mxu0 0
        %3043 = vmatmul.mubr.bf16.gmra.mrb[0].mxu0 %v2905
        %v3044 = vpop.f32.mrb[0].mxu0
        %v3045 = vadd.f32 0.0, %v3044
        %v3046 = vpop.f32.mrb[0].mxu0
        %v3047 = vpop.f32.mrb[0].mxu0
        %v3048 = vadd.f32 0.0, %v3047
        %v3049 = vpop.f32.mrb[0].mxu0
        %3050 = vmatprep.mubr.bf16.mxu0 0
        %3051 = vmatmul.mubr.bf16.gmra.mrb[0].mxu0 %v2908
        %v3052 = vpop.f32.mrb[0].mxu0
        %v3053 = vadd.f32 0.0, %v3052
        %v3054 = vpop.f32.mrb[0].mxu0
        %v3055 = vpop.f32.mrb[0].mxu0
        %v3056 = vadd.f32 0.0, %v3055
        %v3057 = vpop.f32.mrb[0].mxu0
        %3058 = vmatprep.mubr.bf16.mxu0 0
        %3059 = vmatmul.mubr.bf16.gmra.mrb[0].mxu0 %v2911
        %v3060 = vpop.f32.mrb[0].mxu0
        %v3061 = vadd.f32 0.0, %v3060
        %v3062 = vpop.f32.mrb[0].mxu0
        %v3063 = vpop.f32.mrb[0].mxu0
        %v3064 = vadd.f32 0.0, %v3063
        %v3065 = vpop.f32.mrb[0].mxu0
        %3066 = vmatprep.mubr.bf16.mxu0 0
        %3067 = vmatmul.mubr.bf16.gmra.mrb[0].mxu0 %v2914
        %v3068 = vpop.f32.mrb[0].mxu0
        %v3069 = vadd.f32 0.0, %v3068
        %v3070 = vpop.f32.mrb[0].mxu0
        %v3071 = vpop.f32.mrb[0].mxu0
        %v3072 = vadd.f32 0.0, %v3071
        %v3073 = vpop.f32.mrb[0].mxu0
        %3074 = vmatprep.mubr.bf16.mxu0 0
        %3075 = vmatmul.mubr.bf16.gmra.mrb[0].mxu0 %v2917
        %v3076 = vpop.f32.mrb[0].mxu0
        %v3077 = vadd.f32 0.0, %v3076
        %v3078 = vpop.f32.mrb[0].mxu0
        %v3079 = vpop.f32.mrb[0].mxu0
        %v3080 = vadd.f32 0.0, %v3079
        %v3081 = vpop.f32.mrb[0].mxu0
        %3082 = vdwg.mxu0
        %v3083 = vadd.f32 %v2725, %v2957
        %v3084 = vadd.f32 %v2726, %v2960
        %v3085 = vadd.f32 %v2727, %v2965
        %v3086 = vadd.f32 %v2728, %v2968
        %v3087 = vadd.f32 %v2729, %v2973
        %v3088 = vadd.f32 %v2730, %v2976
        %v3089 = vadd.f32 %v2731, %v2981
        %v3090 = vadd.f32 %v2732, %v2984
        %v3091 = vadd.f32 %v2733, %v2989
        %v3092 = vadd.f32 %v2734, %v2992
        %v3093 = vadd.f32 %v2735, %v2997
        %v3094 = vadd.f32 %v2736, %v3000
        %v3095 = vadd.f32 %v2737, %v3005
        %v3096 = vadd.f32 %v2738, %v3008
        %v3097 = vadd.f32 %v2739, %v3013
        %v3098 = vadd.f32 %v2740, %v3016
        %v3099 = vadd.f32 %v2741, %v3021
        %v3100 = vadd.f32 %v2742, %v3024
        %v3101 = vadd.f32 %v2743, %v3029
        %v3102 = vadd.f32 %v2744, %v3032
        %v3103 = vadd.f32 %v2745, %v3037
        %v3104 = vadd.f32 %v2746, %v3040
        %v3105 = vadd.f32 %v2747, %v3045
        %v3106 = vadd.f32 %v2748, %v3048
        %v3107 = vadd.f32 %v2749, %v3053
        %v3108 = vadd.f32 %v2750, %v3056
        %v3109 = vadd.f32 %v2751, %v3061
        %v3110 = vadd.f32 %v2752, %v3064
        %v3111 = vadd.f32 %v2753, %v3069
        %v3112 = vadd.f32 %v2754, %v3072
        %v3113 = vadd.f32 %v2755, %v3077
        %v3114 = vadd.f32 %v2756, %v3080
        %s3115 = sadd.s32 %s271, 52
        %s3116 = smul.u32 %s3115, 6
        %s3117 = smul.addr %s3116, 8
        %s3118 = scalar_lea.vmem [#allocation2], %s3117
        %v3119 = vld [vmem:[%s3118 + $0x8] sm:$0xc0]
        %v3120 = vld [vmem:[%s3118 + $0x10] sm:$0x3f]
        %v3121 = vld [vmem:[%s3118 + $0x38] sm:$0xc0]
        %v3122 = vld [vmem:[%s3118 + $0x40] sm:$0x3f]
        %v3123 = vld [vmem:[%s3118 + $0x68] sm:$0xc0]
        %v3124 = vld [vmem:[%s3118 + $0x70] sm:$0x3f]
        %v3125 = vld [vmem:[%s3118 + $0x98] sm:$0xc0]
        %v3126 = vld [vmem:[%s3118 + $0xa0] sm:$0x3f]
        %v3127 = vld [vmem:[%s3118 + $0xc8] sm:$0xc0]
        %v3128 = vld [vmem:[%s3118 + $0xd0] sm:$0x3f]
        %v3129 = vld [vmem:[%s3118 + $0xf8] sm:$0xc0]
        %v3130 = vld [vmem:[%s3118 + $0x100] sm:$0x3f]
        %v3131 = vld [vmem:[%s3118 + $0x128] sm:$0xc0]
        %v3132 = vld [vmem:[%s3118 + $0x130] sm:$0x3f]
        %v3133 = vld [vmem:[%s3118 + $0x158] sm:$0xc0]
        %v3134 = vld [vmem:[%s3118 + $0x160] sm:$0x3f]
        %v3135 = vld [vmem:[%s3118 + $0x188] sm:$0xc0]
        %v3136 = vld [vmem:[%s3118 + $0x190] sm:$0x3f]
        %v3137 = vld [vmem:[%s3118 + $0x1b8] sm:$0xc0]
        %v3138 = vld [vmem:[%s3118 + $0x1c0] sm:$0x3f]
        %v3139 = vld [vmem:[%s3118 + $0x1e8] sm:$0xc0]
        %v3140 = vld [vmem:[%s3118 + $0x1f0] sm:$0x3f]
        %v3141 = vld [vmem:[%s3118 + $0x218] sm:$0xc0]
        %v3142 = vld [vmem:[%s3118 + $0x220] sm:$0x3f]
        %v3143 = vld [vmem:[%s3118 + $0x248] sm:$0xc0]
        %v3144 = vld [vmem:[%s3118 + $0x250] sm:$0x3f]
        %v3145 = vld [vmem:[%s3118 + $0x278] sm:$0xc0]
        %v3146 = vld [vmem:[%s3118 + $0x280] sm:$0x3f]
        %v3147 = vld [vmem:[%s3118 + $0x2a8] sm:$0xc0]
        %v3148 = vld [vmem:[%s3118 + $0x2b0] sm:$0x3f]
        %v3149 = vld [vmem:[%s3118 + $0x2d8] sm:$0xc0]
        %v3150 = vld [vmem:[%s3118 + $0x2e0] sm:$0x3f]
        %v3183 = vrot.slane %v3119, 6
        %v3184 = vrot.slane %v3120, 6
        %v3185 = vsel %vm1452, %v3183, %v3184
        %v3186 = vrot.slane %v3121, 6
        %v3187 = vrot.slane %v3122, 6
        %v3188 = vsel %vm1452, %v3186, %v3187
        %v3189 = vrot.slane %v3123, 6
        %v3190 = vrot.slane %v3124, 6
        %v3191 = vsel %vm1452, %v3189, %v3190
        %v3192 = vrot.slane %v3125, 6
        %v3193 = vrot.slane %v3126, 6
        %v3194 = vsel %vm1452, %v3192, %v3193
        %v3195 = vrot.slane %v3127, 6
        %v3196 = vrot.slane %v3128, 6
        %v3197 = vsel %vm1452, %v3195, %v3196
        %v3198 = vrot.slane %v3129, 6
        %v3199 = vrot.slane %v3130, 6
        %v3200 = vsel %vm1452, %v3198, %v3199
        %v3201 = vrot.slane %v3131, 6
        %v3202 = vrot.slane %v3132, 6
        %v3203 = vsel %vm1452, %v3201, %v3202
        %v3204 = vrot.slane %v3133, 6
        %v3205 = vrot.slane %v3134, 6
        %v3206 = vsel %vm1452, %v3204, %v3205
        %v3207 = vrot.slane %v3135, 6
        %v3208 = vrot.slane %v3136, 6
        %v3209 = vsel %vm1452, %v3207, %v3208
        %v3210 = vrot.slane %v3137, 6
        %v3211 = vrot.slane %v3138, 6
        %v3212 = vsel %vm1452, %v3210, %v3211
        %v3213 = vrot.slane %v3139, 6
        %v3214 = vrot.slane %v3140, 6
        %v3215 = vsel %vm1452, %v3213, %v3214
        %v3216 = vrot.slane %v3141, 6
        %v3217 = vrot.slane %v3142, 6
        %v3218 = vsel %vm1452, %v3216, %v3217
        %v3219 = vrot.slane %v3143, 6
        %v3220 = vrot.slane %v3144, 6
        %v3221 = vsel %vm1452, %v3219, %v3220
        %v3222 = vrot.slane %v3145, 6
        %v3223 = vrot.slane %v3146, 6
        %v3224 = vsel %vm1452, %v3222, %v3223
        %v3225 = vrot.slane %v3147, 6
        %v3226 = vrot.slane %v3148, 6
        %v3227 = vsel %vm1452, %v3225, %v3226
        %v3228 = vrot.slane %v3149, 6
        %v3229 = vrot.slane %v3150, 6
        %v3230 = vsel %vm1452, %v3228, %v3229
        %s3231 = scalar_lea.vmem %s2, 10
        %v3232 = vld [vmem:[%s3231] sm:$0x3]
        %v3234 = vsel %vm1170, %v3185, 0
        %v3237 = vsel %vm1170, %v3188, 0
        %v3240 = vsel %vm1170, %v3191, 0
        %v3243 = vsel %vm1170, %v3194, 0
        %v3246 = vsel %vm1170, %v3197, 0
        %v3249 = vsel %vm1170, %v3200, 0
        %v3252 = vsel %vm1170, %v3203, 0
        %v3255 = vsel %vm1170, %v3206, 0
        %v3258 = vsel %vm1170, %v3209, 0
        %v3261 = vsel %vm1170, %v3212, 0
        %v3264 = vsel %vm1170, %v3215, 0
        %v3267 = vsel %vm1170, %v3218, 0
        %v3270 = vsel %vm1170, %v3221, 0
        %v3273 = vsel %vm1170, %v3224, 0
        %v3276 = vsel %vm1170, %v3227, 0
        %v3279 = vsel %vm1170, %v3230, 0
        %v3282 = vsel %vm1219, %v3232, 0
        %3284 = vmatprep.subr.bf16.mxu0 0
        %3285 = vmatpush1.bf16.msra.mxu0 %v3282
        %3286 = vmatprep.subr.bf16.mxu0 0
        %3287 = vmatpush1.bf16.msra.mxu0 0
        %3288 = vmatprep.subr.bf16.mxu0 0
        %3289 = vmatpush1.bf16.msra.mxu0 0
        %3290 = vmatprep.subr.bf16.mxu0 0
        %3291 = vmatpush1.bf16.msra.mxu0 0
        %3292 = vmatprep.subr.bf16.mxu0 0
        %3293 = vmatpush1.bf16.msra.mxu0 0
        %3294 = vmatprep.subr.bf16.mxu0 0
        %3295 = vmatpush1.bf16.msra.mxu0 0
        %3296 = vmatprep.subr.bf16.mxu0 0
        %3297 = vmatpush1.bf16.msra.mxu0 0
        %3298 = vmatprep.subr.bf16.mxu0 0
        %3299 = vmatpush1.bf16.msra.mxu0 0
        %3300 = vmatprep.subr.bf16.mxu0 0
        %3301 = vmatpush1.bf16.msra.mxu0 0
        %3302 = vmatprep.subr.bf16.mxu0 0
        %3303 = vmatpush1.bf16.msra.mxu0 0
        %3304 = vmatprep.subr.bf16.mxu0 0
        %3305 = vmatpush1.bf16.msra.mxu0 0
        %3306 = vmatprep.subr.bf16.mxu0 0
        %3307 = vmatpush1.bf16.msra.mxu0 0
        %3308 = vmatprep.subr.bf16.mxu0 0
        %3309 = vmatpush1.bf16.msra.mxu0 0
        %3310 = vmatprep.subr.bf16.mxu0 0
        %3311 = vmatpush1.bf16.msra.mxu0 0
        %3312 = vmatprep.subr.bf16.mxu0 0
        %3313 = vmatpush1.bf16.msra.mxu0 0
        %3314 = vmatprep.subr.bf16.mxu0 0
        %3315 = vmatpush1.bf16.msra.mxu0 0
        %3316 = vmatprep.mubr.bf16.mxu0 0
        %3317 = vmatmul.mubr.bf16.gmra.mrb[0].mxu0 %v3234
        %v3318 = vpop.f32.mrb[0].mxu0
        %v3319 = vadd.f32 0.0, %v3318
        %v3320 = vpop.f32.mrb[0].mxu0
        %v3321 = vpop.f32.mrb[0].mxu0
        %v3322 = vadd.f32 0.0, %v3321
        %v3323 = vpop.f32.mrb[0].mxu0
        %3324 = vmatprep.mubr.bf16.mxu0 0
        %3325 = vmatmul.mubr.bf16.gmra.mrb[0].mxu0 %v3237
        %v3326 = vpop.f32.mrb[0].mxu0
        %v3327 = vadd.f32 0.0, %v3326
        %v3328 = vpop.f32.mrb[0].mxu0
        %v3329 = vpop.f32.mrb[0].mxu0
        %v3330 = vadd.f32 0.0, %v3329
        %v3331 = vpop.f32.mrb[0].mxu0
        %3332 = vmatprep.mubr.bf16.mxu0 0
        %3333 = vmatmul.mubr.bf16.gmra.mrb[0].mxu0 %v3240
        %v3334 = vpop.f32.mrb[0].mxu0
        %v3335 = vadd.f32 0.0, %v3334
        %v3336 = vpop.f32.mrb[0].mxu0
        %v3337 = vpop.f32.mrb[0].mxu0
        %v3338 = vadd.f32 0.0, %v3337
        %v3339 = vpop.f32.mrb[0].mxu0
        %3340 = vmatprep.mubr.bf16.mxu0 0
        %3341 = vmatmul.mubr.bf16.gmra.mrb[0].mxu0 %v3243
        %v3342 = vpop.f32.mrb[0].mxu0
        %v3343 = vadd.f32 0.0, %v3342
        %v3344 = vpop.f32.mrb[0].mxu0
        %v3345 = vpop.f32.mrb[0].mxu0
        %v3346 = vadd.f32 0.0, %v3345
        %v3347 = vpop.f32.mrb[0].mxu0
        %3348 = vmatprep.mubr.bf16.mxu0 0
        %3349 = vmatmul.mubr.bf16.gmra.mrb[0].mxu0 %v3246
        %v3350 = vpop.f32.mrb[0].mxu0
        %v3351 = vadd.f32 0.0, %v3350
        %v3352 = vpop.f32.mrb[0].mxu0
        %v3353 = vpop.f32.mrb[0].mxu0
        %v3354 = vadd.f32 0.0, %v3353
        %v3355 = vpop.f32.mrb[0].mxu0
        %3356 = vmatprep.mubr.bf16.mxu0 0
        %3357 = vmatmul.mubr.bf16.gmra.mrb[0].mxu0 %v3249
        %v3358 = vpop.f32.mrb[0].mxu0
        %v3359 = vadd.f32 0.0, %v3358
        %v3360 = vpop.f32.mrb[0].mxu0
        %v3361 = vpop.f32.mrb[0].mxu0
        %v3362 = vadd.f32 0.0, %v3361
        %v3363 = vpop.f32.mrb[0].mxu0
        %3364 = vmatprep.mubr.bf16.mxu0 0
        %3365 = vmatmul.mubr.bf16.gmra.mrb[0].mxu0 %v3252
        %v3366 = vpop.f32.mrb[0].mxu0
        %v3367 = vadd.f32 0.0, %v3366
        %v3368 = vpop.f32.mrb[0].mxu0
        %v3369 = vpop.f32.mrb[0].mxu0
        %v3370 = vadd.f32 0.0, %v3369
        %v3371 = vpop.f32.mrb[0].mxu0
        %3372 = vmatprep.mubr.bf16.mxu0 0
        %3373 = vmatmul.mubr.bf16.gmra.mrb[0].mxu0 %v3255
        %v3374 = vpop.f32.mrb[0].mxu0
        %v3375 = vadd.f32 0.0, %v3374
        %v3376 = vpop.f32.mrb[0].mxu0
        %v3377 = vpop.f32.mrb[0].mxu0
        %v3378 = vadd.f32 0.0, %v3377
        %v3379 = vpop.f32.mrb[0].mxu0
        %3380 = vmatprep.mubr.bf16.mxu0 0
        %3381 = vmatmul.mubr.bf16.gmra.mrb[0].mxu0 %v3258
        %v3382 = vpop.f32.mrb[0].mxu0
        %v3383 = vadd.f32 0.0, %v3382
        %v3384 = vpop.f32.mrb[0].mxu0
        %v3385 = vpop.f32.mrb[0].mxu0
        %v3386 = vadd.f32 0.0, %v3385
        %v3387 = vpop.f32.mrb[0].mxu0
        %3388 = vmatprep.mubr.bf16.mxu0 0
        %3389 = vmatmul.mubr.bf16.gmra.mrb[0].mxu0 %v3261
        %v3390 = vpop.f32.mrb[0].mxu0
        %v3391 = vadd.f32 0.0, %v3390
        %v3392 = vpop.f32.mrb[0].mxu0
        %v3393 = vpop.f32.mrb[0].mxu0
        %v3394 = vadd.f32 0.0, %v3393
        %v3395 = vpop.f32.mrb[0].mxu0
        %3396 = vmatprep.mubr.bf16.mxu0 0
        %3397 = vmatmul.mubr.bf16.gmra.mrb[0].mxu0 %v3264
        %v3398 = vpop.f32.mrb[0].mxu0
        %v3399 = vadd.f32 0.0, %v3398
        %v3400 = vpop.f32.mrb[0].mxu0
        %v3401 = vpop.f32.mrb[0].mxu0
        %v3402 = vadd.f32 0.0, %v3401
        %v3403 = vpop.f32.mrb[0].mxu0
        %3404 = vmatprep.mubr.bf16.mxu0 0
        %3405 = vmatmul.mubr.bf16.gmra.mrb[0].mxu0 %v3267
        %v3406 = vpop.f32.mrb[0].mxu0
        %v3407 = vadd.f32 0.0, %v3406
        %v3408 = vpop.f32.mrb[0].mxu0
        %v3409 = vpop.f32.mrb[0].mxu0
        %v3410 = vadd.f32 0.0, %v3409
        %v3411 = vpop.f32.mrb[0].mxu0
        %3412 = vmatprep.mubr.bf16.mxu0 0
        %3413 = vmatmul.mubr.bf16.gmra.mrb[0].mxu0 %v3270
        %v3414 = vpop.f32.mrb[0].mxu0
        %v3415 = vadd.f32 0.0, %v3414
        %v3416 = vpop.f32.mrb[0].mxu0
        %v3417 = vpop.f32.mrb[0].mxu0
        %v3418 = vadd.f32 0.0, %v3417
        %v3419 = vpop.f32.mrb[0].mxu0
        %3420 = vmatprep.mubr.bf16.mxu0 0
        %3421 = vmatmul.mubr.bf16.gmra.mrb[0].mxu0 %v3273
        %v3422 = vpop.f32.mrb[0].mxu0
        %v3423 = vadd.f32 0.0, %v3422
        %v3424 = vpop.f32.mrb[0].mxu0
        %v3425 = vpop.f32.mrb[0].mxu0
        %v3426 = vadd.f32 0.0, %v3425
        %v3427 = vpop.f32.mrb[0].mxu0
        %3428 = vmatprep.mubr.bf16.mxu0 0
        %3429 = vmatmul.mubr.bf16.gmra.mrb[0].mxu0 %v3276
        %v3430 = vpop.f32.mrb[0].mxu0
        %v3431 = vadd.f32 0.0, %v3430
        %v3432 = vpop.f32.mrb[0].mxu0
        %v3433 = vpop.f32.mrb[0].mxu0
        %v3434 = vadd.f32 0.0, %v3433
        %v3435 = vpop.f32.mrb[0].mxu0
        %3436 = vmatprep.mubr.bf16.mxu0 0
        %3437 = vmatmul.mubr.bf16.gmra.mrb[0].mxu0 %v3279
        %v3438 = vpop.f32.mrb[0].mxu0
        %v3439 = vadd.f32 0.0, %v3438
        %v3440 = vpop.f32.mrb[0].mxu0
        %v3441 = vpop.f32.mrb[0].mxu0
        %v3442 = vadd.f32 0.0, %v3441
        %v3443 = vpop.f32.mrb[0].mxu0
        %3444 = vdwg.mxu0
        %v3445 = vadd.f32 %v3083, %v3319
        %v3446 = vadd.f32 %v3084, %v3322
        %v3447 = vadd.f32 %v3085, %v3327
        %v3448 = vadd.f32 %v3086, %v3330
        %v3449 = vadd.f32 %v3087, %v3335
        %v3450 = vadd.f32 %v3088, %v3338
        %v3451 = vadd.f32 %v3089, %v3343
        %v3452 = vadd.f32 %v3090, %v3346
        %v3453 = vadd.f32 %v3091, %v3351
        %v3454 = vadd.f32 %v3092, %v3354
        %v3455 = vadd.f32 %v3093, %v3359
        %v3456 = vadd.f32 %v3094, %v3362
        %v3457 = vadd.f32 %v3095, %v3367
        %v3458 = vadd.f32 %v3096, %v3370
        %v3459 = vadd.f32 %v3097, %v3375
        %v3460 = vadd.f32 %v3098, %v3378
        %v3461 = vadd.f32 %v3099, %v3383
        %v3462 = vadd.f32 %v3100, %v3386
        %v3463 = vadd.f32 %v3101, %v3391
        %v3464 = vadd.f32 %v3102, %v3394
        %v3465 = vadd.f32 %v3103, %v3399
        %v3466 = vadd.f32 %v3104, %v3402
        %v3467 = vadd.f32 %v3105, %v3407
        %v3468 = vadd.f32 %v3106, %v3410
        %v3469 = vadd.f32 %v3107, %v3415
        %v3470 = vadd.f32 %v3108, %v3418
        %v3471 = vadd.f32 %v3109, %v3423
        %v3472 = vadd.f32 %v3110, %v3426
        %v3473 = vadd.f32 %v3111, %v3431
        %v3474 = vadd.f32 %v3112, %v3434
        %v3475 = vadd.f32 %v3113, %v3439
        %v3476 = vadd.f32 %v3114, %v3442
        %v3477 = vld [vmem:[%s3118 + $0x10] sm:$0xf0]
        %v3478 = vld [vmem:[%s3118 + $0x18] sm:$0xf]
        %v3479 = vld [vmem:[%s3118 + $0x40] sm:$0xf0]
        %v3480 = vld [vmem:[%s3118 + $0x48] sm:$0xf]
        %v3481 = vld [vmem:[%s3118 + $0x70] sm:$0xf0]
        %v3482 = vld [vmem:[%s3118 + $0x78] sm:$0xf]
        %v3483 = vld [vmem:[%s3118 + $0xa0] sm:$0xf0]
        %v3484 = vld [vmem:[%s3118 + $0xa8] sm:$0xf]
        %v3485 = vld [vmem:[%s3118 + $0xd0] sm:$0xf0]
        %v3486 = vld [vmem:[%s3118 + $0xd8] sm:$0xf]
        %v3487 = vld [vmem:[%s3118 + $0x100] sm:$0xf0]
        %v3488 = vld [vmem:[%s3118 + $0x108] sm:$0xf]
        %v3489 = vld [vmem:[%s3118 + $0x130] sm:$0xf0]
        %v3490 = vld [vmem:[%s3118 + $0x138] sm:$0xf]
        %v3491 = vld [vmem:[%s3118 + $0x160] sm:$0xf0]
        %v3492 = vld [vmem:[%s3118 + $0x168] sm:$0xf]
        %v3493 = vld [vmem:[%s3118 + $0x190] sm:$0xf0]
        %v3494 = vld [vmem:[%s3118 + $0x198] sm:$0xf]
        %v3495 = vld [vmem:[%s3118 + $0x1c0] sm:$0xf0]
        %v3496 = vld [vmem:[%s3118 + $0x1c8] sm:$0xf]
        %v3497 = vld [vmem:[%s3118 + $0x1f0] sm:$0xf0]
        %v3498 = vld [vmem:[%s3118 + $0x1f8] sm:$0xf]
        %v3499 = vld [vmem:[%s3118 + $0x220] sm:$0xf0]
        %v3500 = vld [vmem:[%s3118 + $0x228] sm:$0xf]
        %v3501 = vld [vmem:[%s3118 + $0x250] sm:$0xf0]
        %v3502 = vld [vmem:[%s3118 + $0x258] sm:$0xf]
        %v3503 = vld [vmem:[%s3118 + $0x280] sm:$0xf0]
        %v3504 = vld [vmem:[%s3118 + $0x288] sm:$0xf]
        %v3505 = vld [vmem:[%s3118 + $0x2b0] sm:$0xf0]
        %v3506 = vld [vmem:[%s3118 + $0x2b8] sm:$0xf]
        %v3507 = vld [vmem:[%s3118 + $0x2e0] sm:$0xf0]
        %v3508 = vld [vmem:[%s3118 + $0x2e8] sm:$0xf]
        %v3541 = vrot.slane %v3477, 4
        %v3542 = vrot.slane %v3478, 4
        %v3543 = vsel %vm1121, %v3541, %v3542
        %v3544 = vrot.slane %v3479, 4
        %v3545 = vrot.slane %v3480, 4
        %v3546 = vsel %vm1121, %v3544, %v3545
        %v3547 = vrot.slane %v3481, 4
        %v3548 = vrot.slane %v3482, 4
        %v3549 = vsel %vm1121, %v3547, %v3548
        %v3550 = vrot.slane %v3483, 4
        %v3551 = vrot.slane %v3484, 4
        %v3552 = vsel %vm1121, %v3550, %v3551
        %v3553 = vrot.slane %v3485, 4
        %v3554 = vrot.slane %v3486, 4
        %v3555 = vsel %vm1121, %v3553, %v3554
        %v3556 = vrot.slane %v3487, 4
        %v3557 = vrot.slane %v3488, 4
        %v3558 = vsel %vm1121, %v3556, %v3557
        %v3559 = vrot.slane %v3489, 4
        %v3560 = vrot.slane %v3490, 4
        %v3561 = vsel %vm1121, %v3559, %v3560
        %v3562 = vrot.slane %v3491, 4
        %v3563 = vrot.slane %v3492, 4
        %v3564 = vsel %vm1121, %v3562, %v3563
        %v3565 = vrot.slane %v3493, 4
        %v3566 = vrot.slane %v3494, 4
        %v3567 = vsel %vm1121, %v3565, %v3566
        %v3568 = vrot.slane %v3495, 4
        %v3569 = vrot.slane %v3496, 4
        %v3570 = vsel %vm1121, %v3568, %v3569
        %v3571 = vrot.slane %v3497, 4
        %v3572 = vrot.slane %v3498, 4
        %v3573 = vsel %vm1121, %v3571, %v3572
        %v3574 = vrot.slane %v3499, 4
        %v3575 = vrot.slane %v3500, 4
        %v3576 = vsel %vm1121, %v3574, %v3575
        %v3577 = vrot.slane %v3501, 4
        %v3578 = vrot.slane %v3502, 4
        %v3579 = vsel %vm1121, %v3577, %v3578
        %v3580 = vrot.slane %v3503, 4
        %v3581 = vrot.slane %v3504, 4
        %v3582 = vsel %vm1121, %v3580, %v3581
        %v3583 = vrot.slane %v3505, 4
        %v3584 = vrot.slane %v3506, 4
        %v3585 = vsel %vm1121, %v3583, %v3584
        %v3586 = vrot.slane %v3507, 4
        %v3587 = vrot.slane %v3508, 4
        %v3588 = vsel %vm1121, %v3586, %v3587
        %s3589 = scalar_lea.vmem %s2, 12
        %v3590 = vld [vmem:[%s3589] sm:$0x3]
        %v3592 = vsel %vm1170, %v3543, 0
        %v3595 = vsel %vm1170, %v3546, 0
        %v3598 = vsel %vm1170, %v3549, 0
        %v3601 = vsel %vm1170, %v3552, 0
        %v3604 = vsel %vm1170, %v3555, 0
        %v3607 = vsel %vm1170, %v3558, 0
        %v3610 = vsel %vm1170, %v3561, 0
        %v3613 = vsel %vm1170, %v3564, 0
        %v3616 = vsel %vm1170, %v3567, 0
        %v3619 = vsel %vm1170, %v3570, 0
        %v3622 = vsel %vm1170, %v3573, 0
        %v3625 = vsel %vm1170, %v3576, 0
        %v3628 = vsel %vm1170, %v3579, 0
        %v3631 = vsel %vm1170, %v3582, 0
        %v3634 = vsel %vm1170, %v3585, 0
        %v3637 = vsel %vm1170, %v3588, 0
        %v3640 = vsel %vm1219, %v3590, 0
        %3642 = vmatprep.subr.bf16.mxu0 0
        %3643 = vmatpush1.bf16.msra.mxu0 %v3640
        %3644 = vmatprep.subr.bf16.mxu0 0
        %3645 = vmatpush1.bf16.msra.mxu0 0
        %3646 = vmatprep.subr.bf16.mxu0 0
        %3647 = vmatpush1.bf16.msra.mxu0 0
        %3648 = vmatprep.subr.bf16.mxu0 0
        %3649 = vmatpush1.bf16.msra.mxu0 0
        %3650 = vmatprep.subr.bf16.mxu0 0
        %3651 = vmatpush1.bf16.msra.mxu0 0
        %3652 = vmatprep.subr.bf16.mxu0 0
        %3653 = vmatpush1.bf16.msra.mxu0 0
        %3654 = vmatprep.subr.bf16.mxu0 0
        %3655 = vmatpush1.bf16.msra.mxu0 0
        %3656 = vmatprep.subr.bf16.mxu0 0
        %3657 = vmatpush1.bf16.msra.mxu0 0
        %3658 = vmatprep.subr.bf16.mxu0 0
        %3659 = vmatpush1.bf16.msra.mxu0 0
        %3660 = vmatprep.subr.bf16.mxu0 0
        %3661 = vmatpush1.bf16.msra.mxu0 0
        %3662 = vmatprep.subr.bf16.mxu0 0
        %3663 = vmatpush1.bf16.msra.mxu0 0
        %3664 = vmatprep.subr.bf16.mxu0 0
        %3665 = vmatpush1.bf16.msra.mxu0 0
        %3666 = vmatprep.subr.bf16.mxu0 0
        %3667 = vmatpush1.bf16.msra.mxu0 0
        %3668 = vmatprep.subr.bf16.mxu0 0
        %3669 = vmatpush1.bf16.msra.mxu0 0
        %3670 = vmatprep.subr.bf16.mxu0 0
        %3671 = vmatpush1.bf16.msra.mxu0 0
        %3672 = vmatprep.subr.bf16.mxu0 0
        %3673 = vmatpush1.bf16.msra.mxu0 0
        %3674 = vmatprep.mubr.bf16.mxu0 0
        %3675 = vmatmul.mubr.bf16.gmra.mrb[0].mxu0 %v3592
        %v3676 = vpop.f32.mrb[0].mxu0
        %v3677 = vadd.f32 0.0, %v3676
        %v3678 = vpop.f32.mrb[0].mxu0
        %v3679 = vpop.f32.mrb[0].mxu0
        %v3680 = vadd.f32 0.0, %v3679
        %v3681 = vpop.f32.mrb[0].mxu0
        %3682 = vmatprep.mubr.bf16.mxu0 0
        %3683 = vmatmul.mubr.bf16.gmra.mrb[0].mxu0 %v3595
        %v3684 = vpop.f32.mrb[0].mxu0
        %v3685 = vadd.f32 0.0, %v3684
        %v3686 = vpop.f32.mrb[0].mxu0
        %v3687 = vpop.f32.mrb[0].mxu0
        %v3688 = vadd.f32 0.0, %v3687
        %v3689 = vpop.f32.mrb[0].mxu0
        %3690 = vmatprep.mubr.bf16.mxu0 0
        %3691 = vmatmul.mubr.bf16.gmra.mrb[0].mxu0 %v3598
        %v3692 = vpop.f32.mrb[0].mxu0
        %v3693 = vadd.f32 0.0, %v3692
        %v3694 = vpop.f32.mrb[0].mxu0
        %v3695 = vpop.f32.mrb[0].mxu0
        %v3696 = vadd.f32 0.0, %v3695
        %v3697 = vpop.f32.mrb[0].mxu0
        %3698 = vmatprep.mubr.bf16.mxu0 0
        %3699 = vmatmul.mubr.bf16.gmra.mrb[0].mxu0 %v3601
        %v3700 = vpop.f32.mrb[0].mxu0
        %v3701 = vadd.f32 0.0, %v3700
        %v3702 = vpop.f32.mrb[0].mxu0
        %v3703 = vpop.f32.mrb[0].mxu0
        %v3704 = vadd.f32 0.0, %v3703
        %v3705 = vpop.f32.mrb[0].mxu0
        %3706 = vmatprep.mubr.bf16.mxu0 0
        %3707 = vmatmul.mubr.bf16.gmra.mrb[0].mxu0 %v3604
        %v3708 = vpop.f32.mrb[0].mxu0
        %v3709 = vadd.f32 0.0, %v3708
        %v3710 = vpop.f32.mrb[0].mxu0
        %v3711 = vpop.f32.mrb[0].mxu0
        %v3712 = vadd.f32 0.0, %v3711
        %v3713 = vpop.f32.mrb[0].mxu0
        %3714 = vmatprep.mubr.bf16.mxu0 0
        %3715 = vmatmul.mubr.bf16.gmra.mrb[0].mxu0 %v3607
        %v3716 = vpop.f32.mrb[0].mxu0
        %v3717 = vadd.f32 0.0, %v3716
        %v3718 = vpop.f32.mrb[0].mxu0
        %v3719 = vpop.f32.mrb[0].mxu0
        %v3720 = vadd.f32 0.0, %v3719
        %v3721 = vpop.f32.mrb[0].mxu0
        %3722 = vmatprep.mubr.bf16.mxu0 0
        %3723 = vmatmul.mubr.bf16.gmra.mrb[0].mxu0 %v3610
        %v3724 = vpop.f32.mrb[0].mxu0
        %v3725 = vadd.f32 0.0, %v3724
        %v3726 = vpop.f32.mrb[0].mxu0
        %v3727 = vpop.f32.mrb[0].mxu0
        %v3728 = vadd.f32 0.0, %v3727
        %v3729 = vpop.f32.mrb[0].mxu0
        %3730 = vmatprep.mubr.bf16.mxu0 0
        %3731 = vmatmul.mubr.bf16.gmra.mrb[0].mxu0 %v3613
        %v3732 = vpop.f32.mrb[0].mxu0
        %v3733 = vadd.f32 0.0, %v3732
        %v3734 = vpop.f32.mrb[0].mxu0
        %v3735 = vpop.f32.mrb[0].mxu0
        %v3736 = vadd.f32 0.0, %v3735
        %v3737 = vpop.f32.mrb[0].mxu0
        %3738 = vmatprep.mubr.bf16.mxu0 0
        %3739 = vmatmul.mubr.bf16.gmra.mrb[0].mxu0 %v3616
        %v3740 = vpop.f32.mrb[0].mxu0
        %v3741 = vadd.f32 0.0, %v3740
        %v3742 = vpop.f32.mrb[0].mxu0
        %v3743 = vpop.f32.mrb[0].mxu0
        %v3744 = vadd.f32 0.0, %v3743
        %v3745 = vpop.f32.mrb[0].mxu0
        %3746 = vmatprep.mubr.bf16.mxu0 0
        %3747 = vmatmul.mubr.bf16.gmra.mrb[0].mxu0 %v3619
        %v3748 = vpop.f32.mrb[0].mxu0
        %v3749 = vadd.f32 0.0, %v3748
        %v3750 = vpop.f32.mrb[0].mxu0
        %v3751 = vpop.f32.mrb[0].mxu0
        %v3752 = vadd.f32 0.0, %v3751
        %v3753 = vpop.f32.mrb[0].mxu0
        %3754 = vmatprep.mubr.bf16.mxu0 0
        %3755 = vmatmul.mubr.bf16.gmra.mrb[0].mxu0 %v3622
        %v3756 = vpop.f32.mrb[0].mxu0
        %v3757 = vadd.f32 0.0, %v3756
        %v3758 = vpop.f32.mrb[0].mxu0
        %v3759 = vpop.f32.mrb[0].mxu0
        %v3760 = vadd.f32 0.0, %v3759
        %v3761 = vpop.f32.mrb[0].mxu0
        %3762 = vmatprep.mubr.bf16.mxu0 0
        %3763 = vmatmul.mubr.bf16.gmra.mrb[0].mxu0 %v3625
        %v3764 = vpop.f32.mrb[0].mxu0
        %v3765 = vadd.f32 0.0, %v3764
        %v3766 = vpop.f32.mrb[0].mxu0
        %v3767 = vpop.f32.mrb[0].mxu0
        %v3768 = vadd.f32 0.0, %v3767
        %v3769 = vpop.f32.mrb[0].mxu0
        %3770 = vmatprep.mubr.bf16.mxu0 0
        %3771 = vmatmul.mubr.bf16.gmra.mrb[0].mxu0 %v3628
        %v3772 = vpop.f32.mrb[0].mxu0
        %v3773 = vadd.f32 0.0, %v3772
        %v3774 = vpop.f32.mrb[0].mxu0
        %v3775 = vpop.f32.mrb[0].mxu0
        %v3776 = vadd.f32 0.0, %v3775
        %v3777 = vpop.f32.mrb[0].mxu0
        %3778 = vmatprep.mubr.bf16.mxu0 0
        %3779 = vmatmul.mubr.bf16.gmra.mrb[0].mxu0 %v3631
        %v3780 = vpop.f32.mrb[0].mxu0
        %v3781 = vadd.f32 0.0, %v3780
        %v3782 = vpop.f32.mrb[0].mxu0
        %v3783 = vpop.f32.mrb[0].mxu0
        %v3784 = vadd.f32 0.0, %v3783
        %v3785 = vpop.f32.mrb[0].mxu0
        %3786 = vmatprep.mubr.bf16.mxu0 0
        %3787 = vmatmul.mubr.bf16.gmra.mrb[0].mxu0 %v3634
        %v3788 = vpop.f32.mrb[0].mxu0
        %v3789 = vadd.f32 0.0, %v3788
        %v3790 = vpop.f32.mrb[0].mxu0
        %v3791 = vpop.f32.mrb[0].mxu0
        %v3792 = vadd.f32 0.0, %v3791
        %v3793 = vpop.f32.mrb[0].mxu0
        %3794 = vmatprep.mubr.bf16.mxu0 0
        %3795 = vmatmul.mubr.bf16.gmra.mrb[0].mxu0 %v3637
        %v3796 = vpop.f32.mrb[0].mxu0
        %v3797 = vadd.f32 0.0, %v3796
        %v3798 = vpop.f32.mrb[0].mxu0
        %v3799 = vpop.f32.mrb[0].mxu0
        %v3800 = vadd.f32 0.0, %v3799
        %v3801 = vpop.f32.mrb[0].mxu0
        %3802 = vdwg.mxu0
        %v3803 = vadd.f32 %v3445, %v3677
        %v3804 = vadd.f32 %v3446, %v3680
        %v3805 = vadd.f32 %v3447, %v3685
        %v3806 = vadd.f32 %v3448, %v3688
        %v3807 = vadd.f32 %v3449, %v3693
        %v3808 = vadd.f32 %v3450, %v3696
        %v3809 = vadd.f32 %v3451, %v3701
        %v3810 = vadd.f32 %v3452, %v3704
        %v3811 = vadd.f32 %v3453, %v3709
        %v3812 = vadd.f32 %v3454, %v3712
        %v3813 = vadd.f32 %v3455, %v3717
        %v3814 = vadd.f32 %v3456, %v3720
        %v3815 = vadd.f32 %v3457, %v3725
        %v3816 = vadd.f32 %v3458, %v3728
        %v3817 = vadd.f32 %v3459, %v3733
        %v3818 = vadd.f32 %v3460, %v3736
        %v3819 = vadd.f32 %v3461, %v3741
        %v3820 = vadd.f32 %v3462, %v3744
        %v3821 = vadd.f32 %v3463, %v3749
        %v3822 = vadd.f32 %v3464, %v3752
        %v3823 = vadd.f32 %v3465, %v3757
        %v3824 = vadd.f32 %v3466, %v3760
        %v3825 = vadd.f32 %v3467, %v3765
        %v3826 = vadd.f32 %v3468, %v3768
        %v3827 = vadd.f32 %v3469, %v3773
        %v3828 = vadd.f32 %v3470, %v3776
        %v3829 = vadd.f32 %v3471, %v3781
        %v3830 = vadd.f32 %v3472, %v3784
        %v3831 = vadd.f32 %v3473, %v3789
        %v3832 = vadd.f32 %v3474, %v3792
        %v3833 = vadd.f32 %v3475, %v3797
        %v3834 = vadd.f32 %v3476, %v3800
        %v3835 = vld [vmem:[%s3118 + $0x18] sm:$0xfc]
        %v3836 = vld [vmem:[%s3118 + $0x20] sm:$0x3]
        %v3837 = vld [vmem:[%s3118 + $0x48] sm:$0xfc]
        %v3838 = vld [vmem:[%s3118 + $0x50] sm:$0x3]
        %v3839 = vld [vmem:[%s3118 + $0x78] sm:$0xfc]
        %v3840 = vld [vmem:[%s3118 + $0x80] sm:$0x3]
        %v3841 = vld [vmem:[%s3118 + $0xa8] sm:$0xfc]
        %v3842 = vld [vmem:[%s3118 + $0xb0] sm:$0x3]
        %v3843 = vld [vmem:[%s3118 + $0xd8] sm:$0xfc]
        %v3844 = vld [vmem:[%s3118 + $0xe0] sm:$0x3]
        %v3845 = vld [vmem:[%s3118 + $0x108] sm:$0xfc]
        %v3846 = vld [vmem:[%s3118 + $0x110] sm:$0x3]
        %v3847 = vld [vmem:[%s3118 + $0x138] sm:$0xfc]
        %v3848 = vld [vmem:[%s3118 + $0x140] sm:$0x3]
        %v3849 = vld [vmem:[%s3118 + $0x168] sm:$0xfc]
        %v3850 = vld [vmem:[%s3118 + $0x170] sm:$0x3]
        %v3851 = vld [vmem:[%s3118 + $0x198] sm:$0xfc]
        %v3852 = vld [vmem:[%s3118 + $0x1a0] sm:$0x3]
        %v3853 = vld [vmem:[%s3118 + $0x1c8] sm:$0xfc]
        %v3854 = vld [vmem:[%s3118 + $0x1d0] sm:$0x3]
        %v3855 = vld [vmem:[%s3118 + $0x1f8] sm:$0xfc]
        %v3856 = vld [vmem:[%s3118 + $0x200] sm:$0x3]
        %v3857 = vld [vmem:[%s3118 + $0x228] sm:$0xfc]
        %v3858 = vld [vmem:[%s3118 + $0x230] sm:$0x3]
        %v3859 = vld [vmem:[%s3118 + $0x258] sm:$0xfc]
        %v3860 = vld [vmem:[%s3118 + $0x260] sm:$0x3]
        %v3861 = vld [vmem:[%s3118 + $0x288] sm:$0xfc]
        %v3862 = vld [vmem:[%s3118 + $0x290] sm:$0x3]
        %v3863 = vld [vmem:[%s3118 + $0x2b8] sm:$0xfc]
        %v3864 = vld [vmem:[%s3118 + $0x2c0] sm:$0x3]
        %v3865 = vld [vmem:[%s3118 + $0x2e8] sm:$0xfc]
        %v3866 = vld [vmem:[%s3118 + $0x2f0] sm:$0x3]
        %v3899 = vrot.slane %v3835, 2
        %v3900 = vrot.slane %v3836, 2
        %v3901 = vsel %vm2104, %v3899, %v3900
        %v3902 = vrot.slane %v3837, 2
        %v3903 = vrot.slane %v3838, 2
        %v3904 = vsel %vm2104, %v3902, %v3903
        %v3905 = vrot.slane %v3839, 2
        %v3906 = vrot.slane %v3840, 2
        %v3907 = vsel %vm2104, %v3905, %v3906
        %v3908 = vrot.slane %v3841, 2
        %v3909 = vrot.slane %v3842, 2
        %v3910 = vsel %vm2104, %v3908, %v3909
        %v3911 = vrot.slane %v3843, 2
        %v3912 = vrot.slane %v3844, 2
        %v3913 = vsel %vm2104, %v3911, %v3912
        %v3914 = vrot.slane %v3845, 2
        %v3915 = vrot.slane %v3846, 2
        %v3916 = vsel %vm2104, %v3914, %v3915
        %v3917 = vrot.slane %v3847, 2
        %v3918 = vrot.slane %v3848, 2
        %v3919 = vsel %vm2104, %v3917, %v3918
        %v3920 = vrot.slane %v3849, 2
        %v3921 = vrot.slane %v3850, 2
        %v3922 = vsel %vm2104, %v3920, %v3921
        %v3923 = vrot.slane %v3851, 2
        %v3924 = vrot.slane %v3852, 2
        %v3925 = vsel %vm2104, %v3923, %v3924
        %v3926 = vrot.slane %v3853, 2
        %v3927 = vrot.slane %v3854, 2
        %v3928 = vsel %vm2104, %v3926, %v3927
        %v3929 = vrot.slane %v3855, 2
        %v3930 = vrot.slane %v3856, 2
        %v3931 = vsel %vm2104, %v3929, %v3930
        %v3932 = vrot.slane %v3857, 2
        %v3933 = vrot.slane %v3858, 2
        %v3934 = vsel %vm2104, %v3932, %v3933
        %v3935 = vrot.slane %v3859, 2
        %v3936 = vrot.slane %v3860, 2
        %v3937 = vsel %vm2104, %v3935, %v3936
        %v3938 = vrot.slane %v3861, 2
        %v3939 = vrot.slane %v3862, 2
        %v3940 = vsel %vm2104, %v3938, %v3939
        %v3941 = vrot.slane %v3863, 2
        %v3942 = vrot.slane %v3864, 2
        %v3943 = vsel %vm2104, %v3941, %v3942
        %v3944 = vrot.slane %v3865, 2
        %v3945 = vrot.slane %v3866, 2
        %v3946 = vsel %vm2104, %v3944, %v3945
        %s3947 = scalar_lea.vmem %s2, 14
        %v3948 = vld [vmem:[%s3947] sm:$0x3]
        %v3950 = vsel %vm1170, %v3901, 0
        %v3953 = vsel %vm1170, %v3904, 0
        %v3956 = vsel %vm1170, %v3907, 0
        %v3959 = vsel %vm1170, %v3910, 0
        %v3962 = vsel %vm1170, %v3913, 0
        %v3965 = vsel %vm1170, %v3916, 0
        %v3968 = vsel %vm1170, %v3919, 0
        %v3971 = vsel %vm1170, %v3922, 0
        %v3974 = vsel %vm1170, %v3925, 0
        %v3977 = vsel %vm1170, %v3928, 0
        %v3980 = vsel %vm1170, %v3931, 0
        %v3983 = vsel %vm1170, %v3934, 0
        %v3986 = vsel %vm1170, %v3937, 0
        %v3989 = vsel %vm1170, %v3940, 0
        %v3992 = vsel %vm1170, %v3943, 0
        %v3995 = vsel %vm1170, %v3946, 0
        %v3998 = vsel %vm1219, %v3948, 0
        %4000 = vmatprep.subr.bf16.mxu0 0
        %4001 = vmatpush1.bf16.msra.mxu0 %v3998
        %4002 = vmatprep.subr.bf16.mxu0 0
        %4003 = vmatpush1.bf16.msra.mxu0 0
        %4004 = vmatprep.subr.bf16.mxu0 0
        %4005 = vmatpush1.bf16.msra.mxu0 0
        %4006 = vmatprep.subr.bf16.mxu0 0
        %4007 = vmatpush1.bf16.msra.mxu0 0
        %4008 = vmatprep.subr.bf16.mxu0 0
        %4009 = vmatpush1.bf16.msra.mxu0 0
        %4010 = vmatprep.subr.bf16.mxu0 0
        %4011 = vmatpush1.bf16.msra.mxu0 0
        %4012 = vmatprep.subr.bf16.mxu0 0
        %4013 = vmatpush1.bf16.msra.mxu0 0
        %4014 = vmatprep.subr.bf16.mxu0 0
        %4015 = vmatpush1.bf16.msra.mxu0 0
        %4016 = vmatprep.subr.bf16.mxu0 0
        %4017 = vmatpush1.bf16.msra.mxu0 0
        %4018 = vmatprep.subr.bf16.mxu0 0
        %4019 = vmatpush1.bf16.msra.mxu0 0
        %4020 = vmatprep.subr.bf16.mxu0 0
        %4021 = vmatpush1.bf16.msra.mxu0 0
        %4022 = vmatprep.subr.bf16.mxu0 0
        %4023 = vmatpush1.bf16.msra.mxu0 0
        %4024 = vmatprep.subr.bf16.mxu0 0
        %4025 = vmatpush1.bf16.msra.mxu0 0
        %4026 = vmatprep.subr.bf16.mxu0 0
        %4027 = vmatpush1.bf16.msra.mxu0 0
        %4028 = vmatprep.subr.bf16.mxu0 0
        %4029 = vmatpush1.bf16.msra.mxu0 0
        %4030 = vmatprep.subr.bf16.mxu0 0
        %4031 = vmatpush1.bf16.msra.mxu0 0
        %4032 = vmatprep.mubr.bf16.mxu0 0
        %4033 = vmatmul.mubr.bf16.gmra.mrb[0].mxu0 %v3950
        %v4034 = vpop.f32.mrb[0].mxu0
        %v4035 = vadd.f32 0.0, %v4034
        %v4036 = vpop.f32.mrb[0].mxu0
        %v4037 = vpop.f32.mrb[0].mxu0
        %v4038 = vadd.f32 0.0, %v4037
        %v4039 = vpop.f32.mrb[0].mxu0
        %4040 = vmatprep.mubr.bf16.mxu0 0
        %4041 = vmatmul.mubr.bf16.gmra.mrb[0].mxu0 %v3953
        %v4042 = vpop.f32.mrb[0].mxu0
        %v4043 = vadd.f32 0.0, %v4042
        %v4044 = vpop.f32.mrb[0].mxu0
        %v4045 = vpop.f32.mrb[0].mxu0
        %v4046 = vadd.f32 0.0, %v4045
        %v4047 = vpop.f32.mrb[0].mxu0
        %4048 = vmatprep.mubr.bf16.mxu0 0
        %4049 = vmatmul.mubr.bf16.gmra.mrb[0].mxu0 %v3956
        %v4050 = vpop.f32.mrb[0].mxu0
        %v4051 = vadd.f32 0.0, %v4050
        %v4052 = vpop.f32.mrb[0].mxu0
        %v4053 = vpop.f32.mrb[0].mxu0
        %v4054 = vadd.f32 0.0, %v4053
        %v4055 = vpop.f32.mrb[0].mxu0
        %4056 = vmatprep.mubr.bf16.mxu0 0
        %4057 = vmatmul.mubr.bf16.gmra.mrb[0].mxu0 %v3959
        %v4058 = vpop.f32.mrb[0].mxu0
        %v4059 = vadd.f32 0.0, %v4058
        %v4060 = vpop.f32.mrb[0].mxu0
        %v4061 = vpop.f32.mrb[0].mxu0
        %v4062 = vadd.f32 0.0, %v4061
        %v4063 = vpop.f32.mrb[0].mxu0
        %4064 = vmatprep.mubr.bf16.mxu0 0
        %4065 = vmatmul.mubr.bf16.gmra.mrb[0].mxu0 %v3962
        %v4066 = vpop.f32.mrb[0].mxu0
        %v4067 = vadd.f32 0.0, %v4066
        %v4068 = vpop.f32.mrb[0].mxu0
        %v4069 = vpop.f32.mrb[0].mxu0
        %v4070 = vadd.f32 0.0, %v4069
        %v4071 = vpop.f32.mrb[0].mxu0
        %4072 = vmatprep.mubr.bf16.mxu0 0
        %4073 = vmatmul.mubr.bf16.gmra.mrb[0].mxu0 %v3965
        %v4074 = vpop.f32.mrb[0].mxu0
        %v4075 = vadd.f32 0.0, %v4074
        %v4076 = vpop.f32.mrb[0].mxu0
        %v4077 = vpop.f32.mrb[0].mxu0
        %v4078 = vadd.f32 0.0, %v4077
        %v4079 = vpop.f32.mrb[0].mxu0
        %4080 = vmatprep.mubr.bf16.mxu0 0
        %4081 = vmatmul.mubr.bf16.gmra.mrb[0].mxu0 %v3968
        %v4082 = vpop.f32.mrb[0].mxu0
        %v4083 = vadd.f32 0.0, %v4082
        %v4084 = vpop.f32.mrb[0].mxu0
        %v4085 = vpop.f32.mrb[0].mxu0
        %v4086 = vadd.f32 0.0, %v4085
        %v4087 = vpop.f32.mrb[0].mxu0
        %4088 = vmatprep.mubr.bf16.mxu0 0
        %4089 = vmatmul.mubr.bf16.gmra.mrb[0].mxu0 %v3971
        %v4090 = vpop.f32.mrb[0].mxu0
        %v4091 = vadd.f32 0.0, %v4090
        %v4092 = vpop.f32.mrb[0].mxu0
        %v4093 = vpop.f32.mrb[0].mxu0
        %v4094 = vadd.f32 0.0, %v4093
        %v4095 = vpop.f32.mrb[0].mxu0
        %4096 = vmatprep.mubr.bf16.mxu0 0
        %4097 = vmatmul.mubr.bf16.gmra.mrb[0].mxu0 %v3974
        %v4098 = vpop.f32.mrb[0].mxu0
        %v4099 = vadd.f32 0.0, %v4098
        %v4100 = vpop.f32.mrb[0].mxu0
        %v4101 = vpop.f32.mrb[0].mxu0
        %v4102 = vadd.f32 0.0, %v4101
        %v4103 = vpop.f32.mrb[0].mxu0
        %4104 = vmatprep.mubr.bf16.mxu0 0
        %4105 = vmatmul.mubr.bf16.gmra.mrb[0].mxu0 %v3977
        %v4106 = vpop.f32.mrb[0].mxu0
        %v4107 = vadd.f32 0.0, %v4106
        %v4108 = vpop.f32.mrb[0].mxu0
        %v4109 = vpop.f32.mrb[0].mxu0
        %v4110 = vadd.f32 0.0, %v4109
        %v4111 = vpop.f32.mrb[0].mxu0
        %4112 = vmatprep.mubr.bf16.mxu0 0
        %4113 = vmatmul.mubr.bf16.gmra.mrb[0].mxu0 %v3980
        %v4114 = vpop.f32.mrb[0].mxu0
        %v4115 = vadd.f32 0.0, %v4114
        %v4116 = vpop.f32.mrb[0].mxu0
        %v4117 = vpop.f32.mrb[0].mxu0
        %v4118 = vadd.f32 0.0, %v4117
        %v4119 = vpop.f32.mrb[0].mxu0
        %4120 = vmatprep.mubr.bf16.mxu0 0
        %4121 = vmatmul.mubr.bf16.gmra.mrb[0].mxu0 %v3983
        %v4122 = vpop.f32.mrb[0].mxu0
        %v4123 = vadd.f32 0.0, %v4122
        %v4124 = vpop.f32.mrb[0].mxu0
        %v4125 = vpop.f32.mrb[0].mxu0
        %v4126 = vadd.f32 0.0, %v4125
        %v4127 = vpop.f32.mrb[0].mxu0
        %4128 = vmatprep.mubr.bf16.mxu0 0
        %4129 = vmatmul.mubr.bf16.gmra.mrb[0].mxu0 %v3986
        %v4130 = vpop.f32.mrb[0].mxu0
        %v4131 = vadd.f32 0.0, %v4130
        %v4132 = vpop.f32.mrb[0].mxu0
        %v4133 = vpop.f32.mrb[0].mxu0
        %v4134 = vadd.f32 0.0, %v4133
        %v4135 = vpop.f32.mrb[0].mxu0
        %4136 = vmatprep.mubr.bf16.mxu0 0
        %4137 = vmatmul.mubr.bf16.gmra.mrb[0].mxu0 %v3989
        %v4138 = vpop.f32.mrb[0].mxu0
        %v4139 = vadd.f32 0.0, %v4138
        %v4140 = vpop.f32.mrb[0].mxu0
        %v4141 = vpop.f32.mrb[0].mxu0
        %v4142 = vadd.f32 0.0, %v4141
        %v4143 = vpop.f32.mrb[0].mxu0
        %4144 = vmatprep.mubr.bf16.mxu0 0
        %4145 = vmatmul.mubr.bf16.gmra.mrb[0].mxu0 %v3992
        %v4146 = vpop.f32.mrb[0].mxu0
        %v4147 = vadd.f32 0.0, %v4146
        %v4148 = vpop.f32.mrb[0].mxu0
        %v4149 = vpop.f32.mrb[0].mxu0
        %v4150 = vadd.f32 0.0, %v4149
        %v4151 = vpop.f32.mrb[0].mxu0
        %4152 = vmatprep.mubr.bf16.mxu0 0
        %4153 = vmatmul.mubr.bf16.gmra.mrb[0].mxu0 %v3995
        %v4154 = vpop.f32.mrb[0].mxu0
        %v4155 = vadd.f32 0.0, %v4154
        %v4156 = vpop.f32.mrb[0].mxu0
        %v4157 = vpop.f32.mrb[0].mxu0
        %v4158 = vadd.f32 0.0, %v4157
        %v4159 = vpop.f32.mrb[0].mxu0
        %4160 = vdwg.mxu0
        %v4161 = vadd.f32 %v3803, %v4035
        %v4162 = vadd.f32 %v3804, %v4038
        %v4163 = vadd.f32 %v3805, %v4043
        %v4164 = vadd.f32 %v3806, %v4046
        %v4165 = vadd.f32 %v3807, %v4051
        %v4166 = vadd.f32 %v3808, %v4054
        %v4167 = vadd.f32 %v3809, %v4059
        %v4168 = vadd.f32 %v3810, %v4062
        %v4169 = vadd.f32 %v3811, %v4067
        %v4170 = vadd.f32 %v3812, %v4070
        %v4171 = vadd.f32 %v3813, %v4075
        %v4172 = vadd.f32 %v3814, %v4078
        %v4173 = vadd.f32 %v3815, %v4083
        %v4174 = vadd.f32 %v3816, %v4086
        %v4175 = vadd.f32 %v3817, %v4091
        %v4176 = vadd.f32 %v3818, %v4094
        %v4177 = vadd.f32 %v3819, %v4099
        %v4178 = vadd.f32 %v3820, %v4102
        %v4179 = vadd.f32 %v3821, %v4107
        %v4180 = vadd.f32 %v3822, %v4110
        %v4181 = vadd.f32 %v3823, %v4115
        %v4182 = vadd.f32 %v3824, %v4118
        %v4183 = vadd.f32 %v3825, %v4123
        %v4184 = vadd.f32 %v3826, %v4126
        %v4185 = vadd.f32 %v3827, %v4131
        %v4186 = vadd.f32 %v3828, %v4134
        %v4187 = vadd.f32 %v3829, %v4139
        %v4188 = vadd.f32 %v3830, %v4142
        %v4189 = vadd.f32 %v3831, %v4147
        %v4190 = vadd.f32 %v3832, %v4150
        %v4191 = vadd.f32 %v3833, %v4155
        %v4192 = vadd.f32 %v3834, %v4158
        // Predicated region
        $region45: #{tpu_custom_call.1} parent=39 // pred_check
          %p4193 = pneg %p272
        $region46: #{tpu_custom_call.1} parent=39 // pred_check_branch
          %4195 = sbr.rel (%p4193) target = $region48
        $region47: #{tpu_custom_call.1} parent=39 // pred_region
          %4196 = vst [vmem:[#allocation3] sm:$0xff] %v1258
          %4197 = vst [vmem:[#allocation3 + $0x8] sm:$0xff] %v1261
          %4198 = vst [vmem:[#allocation3 + $0x10] sm:$0xff] %v1266
          %4199 = vst [vmem:[#allocation3 + $0x18] sm:$0xff] %v1269
          %4200 = vst [vmem:[#allocation3 + $0x20] sm:$0xff] %v1274
          %4201 = vst [vmem:[#allocation3 + $0x28] sm:$0xff] %v1277
          %4202 = vst [vmem:[#allocation3 + $0x30] sm:$0xff] %v1282
          %4203 = vst [vmem:[#allocation3 + $0x38] sm:$0xff] %v1285
          %4204 = vst [vmem:[#allocation3 + $0x40] sm:$0xff] %v1290
          %4205 = vst [vmem:[#allocation3 + $0x48] sm:$0xff] %v1293
          %4206 = vst [vmem:[#allocation3 + $0x50] sm:$0xff] %v1298
          %4207 = vst [vmem:[#allocation3 + $0x58] sm:$0xff] %v1301
          %4208 = vst [vmem:[#allocation3 + $0x60] sm:$0xff] %v1306
          %4209 = vst [vmem:[#allocation3 + $0x68] sm:$0xff] %v1309
          %4210 = vst [vmem:[#allocation3 + $0x70] sm:$0xff] %v1314
          %4211 = vst [vmem:[#allocation3 + $0x78] sm:$0xff] %v1317
          %4212 = vst [vmem:[#allocation3 + $0x80] sm:$0xff] %v1322
          %4213 = vst [vmem:[#allocation3 + $0x88] sm:$0xff] %v1325
          %4214 = vst [vmem:[#allocation3 + $0x90] sm:$0xff] %v1330
          %4215 = vst [vmem:[#allocation3 + $0x98] sm:$0xff] %v1333
          %4216 = vst [vmem:[#allocation3 + $0xa0] sm:$0xff] %v1338
          %4217 = vst [vmem:[#allocation3 + $0xa8] sm:$0xff] %v1341
          %4218 = vst [vmem:[#allocation3 + $0xb0] sm:$0xff] %v1346
          %4219 = vst [vmem:[#allocation3 + $0xb8] sm:$0xff] %v1349
          %4220 = vst [vmem:[#allocation3 + $0xc0] sm:$0xff] %v1354
          %4221 = vst [vmem:[#allocation3 + $0xc8] sm:$0xff] %v1357
          %4222 = vst [vmem:[#allocation3 + $0xd0] sm:$0xff] %v1362
          %4223 = vst [vmem:[#allocation3 + $0xd8] sm:$0xff] %v1365
          %4224 = vst [vmem:[#allocation3 + $0xe0] sm:$0xff] %v1370
          %4225 = vst [vmem:[#allocation3 + $0xe8] sm:$0xff] %v1373
          %4226 = vst [vmem:[#allocation3 + $0xf0] sm:$0xff] %v1378
          %4227 = vst [vmem:[#allocation3 + $0xf8] sm:$0xff] %v1381
        $region48: #{tpu_custom_call.1} parent=39 // pred_fallthru
          _
        %p4228 = scmp.ne.s32.totalorder %s26, 0
        // Predicated region
        $region49: #{tpu_custom_call.1} parent=39 // pred_check
          %p4229 = pneg %p4228
        $region50: #{tpu_custom_call.1} parent=39 // pred_check_branch
          %4231 = sbr.rel (%p4229) target = $region52
        $region51: #{tpu_custom_call.1} parent=39 // pred_region
          %v4232 = vld [vmem:[#allocation3] sm:$0xff]
          %v4233 = vld [vmem:[#allocation3 + $0x8] sm:$0xff]
          %v4234 = vld [vmem:[#allocation3 + $0x10] sm:$0xff]
          %v4235 = vld [vmem:[#allocation3 + $0x18] sm:$0xff]
          %v4236 = vld [vmem:[#allocation3 + $0x20] sm:$0xff]
          %v4237 = vld [vmem:[#allocation3 + $0x28] sm:$0xff]
          %v4238 = vld [vmem:[#allocation3 + $0x30] sm:$0xff]
          %v4239 = vld [vmem:[#allocation3 + $0x38] sm:$0xff]
          %v4240 = vld [vmem:[#allocation3 + $0x40] sm:$0xff]
          %v4241 = vld [vmem:[#allocation3 + $0x48] sm:$0xff]
          %v4242 = vld [vmem:[#allocation3 + $0x50] sm:$0xff]
          %v4243 = vld [vmem:[#allocation3 + $0x58] sm:$0xff]
          %v4244 = vld [vmem:[#allocation3 + $0x60] sm:$0xff]
          %v4245 = vld [vmem:[#allocation3 + $0x68] sm:$0xff]
          %v4246 = vld [vmem:[#allocation3 + $0x70] sm:$0xff]
          %v4247 = vld [vmem:[#allocation3 + $0x78] sm:$0xff]
          %v4248 = vld [vmem:[#allocation3 + $0x80] sm:$0xff]
          %v4249 = vld [vmem:[#allocation3 + $0x88] sm:$0xff]
          %v4250 = vld [vmem:[#allocation3 + $0x90] sm:$0xff]
          %v4251 = vld [vmem:[#allocation3 + $0x98] sm:$0xff]
          %v4252 = vld [vmem:[#allocation3 + $0xa0] sm:$0xff]
          %v4253 = vld [vmem:[#allocation3 + $0xa8] sm:$0xff]
          %v4254 = vld [vmem:[#allocation3 + $0xb0] sm:$0xff]
          %v4255 = vld [vmem:[#allocation3 + $0xb8] sm:$0xff]
          %v4256 = vld [vmem:[#allocation3 + $0xc0] sm:$0xff]
          %v4257 = vld [vmem:[#allocation3 + $0xc8] sm:$0xff]
          %v4258 = vld [vmem:[#allocation3 + $0xd0] sm:$0xff]
          %v4259 = vld [vmem:[#allocation3 + $0xd8] sm:$0xff]
          %v4260 = vld [vmem:[#allocation3 + $0xe0] sm:$0xff]
          %v4261 = vld [vmem:[#allocation3 + $0xe8] sm:$0xff]
          %v4262 = vld [vmem:[#allocation3 + $0xf0] sm:$0xff]
          %v4263 = vld [vmem:[#allocation3 + $0xf8] sm:$0xff]
          %v4264 = vadd.f32 %v4232, %v1258
          %v4265 = vadd.f32 %v4233, %v1261
          %v4266 = vadd.f32 %v4234, %v1266
          %v4267 = vadd.f32 %v4235, %v1269
          %v4268 = vadd.f32 %v4236, %v1274
          %v4269 = vadd.f32 %v4237, %v1277
          %v4270 = vadd.f32 %v4238, %v1282
          %v4271 = vadd.f32 %v4239, %v1285
          %v4272 = vadd.f32 %v4240, %v1290
          %v4273 = vadd.f32 %v4241, %v1293
          %v4274 = vadd.f32 %v4242, %v1298
          %v4275 = vadd.f32 %v4243, %v1301
          %v4276 = vadd.f32 %v4244, %v1306
          %v4277 = vadd.f32 %v4245, %v1309
          %v4278 = vadd.f32 %v4246, %v1314
          %v4279 = vadd.f32 %v4247, %v1317
          %v4280 = vadd.f32 %v4248, %v1322
          %v4281 = vadd.f32 %v4249, %v1325
          %v4282 = vadd.f32 %v4250, %v1330
          %v4283 = vadd.f32 %v4251, %v1333
          %v4284 = vadd.f32 %v4252, %v1338
          %v4285 = vadd.f32 %v4253, %v1341
          %v4286 = vadd.f32 %v4254, %v1346
          %v4287 = vadd.f32 %v4255, %v1349
          %v4288 = vadd.f32 %v4256, %v1354
          %v4289 = vadd.f32 %v4257, %v1357
          %v4290 = vadd.f32 %v4258, %v1362
          %v4291 = vadd.f32 %v4259, %v1365
          %v4292 = vadd.f32 %v4260, %v1370
          %v4293 = vadd.f32 %v4261, %v1373
          %v4294 = vadd.f32 %v4262, %v1378
          %v4295 = vadd.f32 %v4263, %v1381
          %4296 = vst [vmem:[#allocation3] sm:$0xff] %v4264
          %4297 = vst [vmem:[#allocation3 + $0x8] sm:$0xff] %v4265
          %4298 = vst [vmem:[#allocation3 + $0x10] sm:$0xff] %v4266
          %4299 = vst [vmem:[#allocation3 + $0x18] sm:$0xff] %v4267
          %4300 = vst [vmem:[#allocation3 + $0x20] sm:$0xff] %v4268
          %4301 = vst [vmem:[#allocation3 + $0x28] sm:$0xff] %v4269
          %4302 = vst [vmem:[#allocation3 + $0x30] sm:$0xff] %v4270
          %4303 = vst [vmem:[#allocation3 + $0x38] sm:$0xff] %v4271
          %4304 = vst [vmem:[#allocation3 + $0x40] sm:$0xff] %v4272
          %4305 = vst [vmem:[#allocation3 + $0x48] sm:$0xff] %v4273
          %4306 = vst [vmem:[#allocation3 + $0x50] sm:$0xff] %v4274
          %4307 = vst [vmem:[#allocation3 + $0x58] sm:$0xff] %v4275
          %4308 = vst [vmem:[#allocation3 + $0x60] sm:$0xff] %v4276
          %4309 = vst [vmem:[#allocation3 + $0x68] sm:$0xff] %v4277
          %4310 = vst [vmem:[#allocation3 + $0x70] sm:$0xff] %v4278
          %4311 = vst [vmem:[#allocation3 + $0x78] sm:$0xff] %v4279
          %4312 = vst [vmem:[#allocation3 + $0x80] sm:$0xff] %v4280
          %4313 = vst [vmem:[#allocation3 + $0x88] sm:$0xff] %v4281
          %4314 = vst [vmem:[#allocation3 + $0x90] sm:$0xff] %v4282
          %4315 = vst [vmem:[#allocation3 + $0x98] sm:$0xff] %v4283
          %4316 = vst [vmem:[#allocation3 + $0xa0] sm:$0xff] %v4284
          %4317 = vst [vmem:[#allocation3 + $0xa8] sm:$0xff] %v4285
          %4318 = vst [vmem:[#allocation3 + $0xb0] sm:$0xff] %v4286
          %4319 = vst [vmem:[#allocation3 + $0xb8] sm:$0xff] %v4287
          %4320 = vst [vmem:[#allocation3 + $0xc0] sm:$0xff] %v4288
          %4321 = vst [vmem:[#allocation3 + $0xc8] sm:$0xff] %v4289
          %4322 = vst [vmem:[#allocation3 + $0xd0] sm:$0xff] %v4290
          %4323 = vst [vmem:[#allocation3 + $0xd8] sm:$0xff] %v4291
          %4324 = vst [vmem:[#allocation3 + $0xe0] sm:$0xff] %v4292
          %4325 = vst [vmem:[#allocation3 + $0xe8] sm:$0xff] %v4293
          %4326 = vst [vmem:[#allocation3 + $0xf0] sm:$0xff] %v4294
          %4327 = vst [vmem:[#allocation3 + $0xf8] sm:$0xff] %v4295
        $region52: #{tpu_custom_call.1} parent=39 // pred_fallthru
          _
        %v4328 = vld [vmem:[#allocation3] sm:$0xff]
        %v4329 = vld [vmem:[#allocation3 + $0x8] sm:$0xff]
        %v4330 = vld [vmem:[#allocation3 + $0x10] sm:$0xff]
        %v4331 = vld [vmem:[#allocation3 + $0x18] sm:$0xff]
        %v4332 = vld [vmem:[#allocation3 + $0x20] sm:$0xff]
        %v4333 = vld [vmem:[#allocation3 + $0x28] sm:$0xff]
        %v4334 = vld [vmem:[#allocation3 + $0x30] sm:$0xff]
        %v4335 = vld [vmem:[#allocation3 + $0x38] sm:$0xff]
        %v4336 = vld [vmem:[#allocation3 + $0x40] sm:$0xff]
        %v4337 = vld [vmem:[#allocation3 + $0x48] sm:$0xff]
        %v4338 = vld [vmem:[#allocation3 + $0x50] sm:$0xff]
        %v4339 = vld [vmem:[#allocation3 + $0x58] sm:$0xff]
        %v4340 = vld [vmem:[#allocation3 + $0x60] sm:$0xff]
        %v4341 = vld [vmem:[#allocation3 + $0x68] sm:$0xff]
        %v4342 = vld [vmem:[#allocation3 + $0x70] sm:$0xff]
        %v4343 = vld [vmem:[#allocation3 + $0x78] sm:$0xff]
        %v4344 = vld [vmem:[#allocation3 + $0x80] sm:$0xff]
        %v4345 = vld [vmem:[#allocation3 + $0x88] sm:$0xff]
        %v4346 = vld [vmem:[#allocation3 + $0x90] sm:$0xff]
        %v4347 = vld [vmem:[#allocation3 + $0x98] sm:$0xff]
        %v4348 = vld [vmem:[#allocation3 + $0xa0] sm:$0xff]
        %v4349 = vld [vmem:[#allocation3 + $0xa8] sm:$0xff]
        %v4350 = vld [vmem:[#allocation3 + $0xb0] sm:$0xff]
        %v4351 = vld [vmem:[#allocation3 + $0xb8] sm:$0xff]
        %v4352 = vld [vmem:[#allocation3 + $0xc0] sm:$0xff]
        %v4353 = vld [vmem:[#allocation3 + $0xc8] sm:$0xff]
        %v4354 = vld [vmem:[#allocation3 + $0xd0] sm:$0xff]
        %v4355 = vld [vmem:[#allocation3 + $0xd8] sm:$0xff]
        %v4356 = vld [vmem:[#allocation3 + $0xe0] sm:$0xff]
        %v4357 = vld [vmem:[#allocation3 + $0xe8] sm:$0xff]
        %v4358 = vld [vmem:[#allocation3 + $0xf0] sm:$0xff]
        %v4359 = vld [vmem:[#allocation3 + $0xf8] sm:$0xff]
        %4392 = vrot.lane.b32.xlu0 %v4161, 32
        %v4393 = vpop.permute.xlu0 %4392
        %4394 = vrot.lane.b32.xlu0 %v4162, 32
        %v4395 = vpop.permute.xlu0 %4394
        %4396 = vrot.lane.b32.xlu0 %v4163, 32
        %v4397 = vpop.permute.xlu0 %4396
        %4398 = vrot.lane.b32.xlu0 %v4164, 32
        %v4399 = vpop.permute.xlu0 %4398
        %4400 = vrot.lane.b32.xlu0 %v4165, 32
        %v4401 = vpop.permute.xlu0 %4400
        %4402 = vrot.lane.b32.xlu0 %v4166, 32
        %v4403 = vpop.permute.xlu0 %4402
        %4404 = vrot.lane.b32.xlu0 %v4167, 32
        %v4405 = vpop.permute.xlu0 %4404
        %4406 = vrot.lane.b32.xlu0 %v4168, 32
        %v4407 = vpop.permute.xlu0 %4406
        %4408 = vrot.lane.b32.xlu0 %v4169, 32
        %v4409 = vpop.permute.xlu0 %4408
        %4410 = vrot.lane.b32.xlu0 %v4170, 32
        %v4411 = vpop.permute.xlu0 %4410
        %4412 = vrot.lane.b32.xlu0 %v4171, 32
        %v4413 = vpop.permute.xlu0 %4412
        %4414 = vrot.lane.b32.xlu0 %v4172, 32
        %v4415 = vpop.permute.xlu0 %4414
        %4416 = vrot.lane.b32.xlu0 %v4173, 32
        %v4417 = vpop.permute.xlu0 %4416
        %4418 = vrot.lane.b32.xlu0 %v4174, 32
        %v4419 = vpop.permute.xlu0 %4418
        %4420 = vrot.lane.b32.xlu0 %v4175, 32
        %v4421 = vpop.permute.xlu0 %4420
        %4422 = vrot.lane.b32.xlu0 %v4176, 32
        %v4423 = vpop.permute.xlu0 %4422
        %4424 = vrot.lane.b32.xlu0 %v4177, 32
        %v4425 = vpop.permute.xlu0 %4424
        %4426 = vrot.lane.b32.xlu0 %v4178, 32
        %v4427 = vpop.permute.xlu0 %4426
        %4428 = vrot.lane.b32.xlu0 %v4179, 32
        %v4429 = vpop.permute.xlu0 %4428
        %4430 = vrot.lane.b32.xlu0 %v4180, 32
        %v4431 = vpop.permute.xlu0 %4430
        %4432 = vrot.lane.b32.xlu0 %v4181, 32
        %v4433 = vpop.permute.xlu0 %4432
        %4434 = vrot.lane.b32.xlu0 %v4182, 32
        %v4435 = vpop.permute.xlu0 %4434
        %4436 = vrot.lane.b32.xlu0 %v4183, 32
        %v4437 = vpop.permute.xlu0 %4436
        %4438 = vrot.lane.b32.xlu0 %v4184, 32
        %v4439 = vpop.permute.xlu0 %4438
        %4440 = vrot.lane.b32.xlu0 %v4185, 32
        %v4441 = vpop.permute.xlu0 %4440
        %4442 = vrot.lane.b32.xlu0 %v4186, 32
        %v4443 = vpop.permute.xlu0 %4442
        %4444 = vrot.lane.b32.xlu0 %v4187, 32
        %v4445 = vpop.permute.xlu0 %4444
        %4446 = vrot.lane.b32.xlu0 %v4188, 32
        %v4447 = vpop.permute.xlu0 %4446
        %4448 = vrot.lane.b32.xlu0 %v4189, 32
        %v4449 = vpop.permute.xlu0 %4448
        %4450 = vrot.lane.b32.xlu0 %v4190, 32
        %v4451 = vpop.permute.xlu0 %4450
        %4452 = vrot.lane.b32.xlu0 %v4191, 32
        %v4453 = vpop.permute.xlu0 %4452
        %4454 = vrot.lane.b32.xlu0 %v4192, 32
        %v4455 = vpop.permute.xlu0 %4454
        %v4488 = vadd.f32 %v4328, %v4393
        %v4489 = vadd.f32 %v4329, %v4395
        %v4490 = vadd.f32 %v4330, %v4397
        %v4491 = vadd.f32 %v4331, %v4399
        %v4492 = vadd.f32 %v4332, %v4401
        %v4493 = vadd.f32 %v4333, %v4403
        %v4494 = vadd.f32 %v4334, %v4405
        %v4495 = vadd.f32 %v4335, %v4407
        %v4496 = vadd.f32 %v4336, %v4409
        %v4497 = vadd.f32 %v4337, %v4411
        %v4498 = vadd.f32 %v4338, %v4413
        %v4499 = vadd.f32 %v4339, %v4415
        %v4500 = vadd.f32 %v4340, %v4417
        %v4501 = vadd.f32 %v4341, %v4419
        %v4502 = vadd.f32 %v4342, %v4421
        %v4503 = vadd.f32 %v4343, %v4423
        %v4504 = vadd.f32 %v4344, %v4425
        %v4505 = vadd.f32 %v4345, %v4427
        %v4506 = vadd.f32 %v4346, %v4429
        %v4507 = vadd.f32 %v4347, %v4431
        %v4508 = vadd.f32 %v4348, %v4433
        %v4509 = vadd.f32 %v4349, %v4435
        %v4510 = vadd.f32 %v4350, %v4437
        %v4511 = vadd.f32 %v4351, %v4439
        %v4512 = vadd.f32 %v4352, %v4441
        %v4513 = vadd.f32 %v4353, %v4443
        %v4514 = vadd.f32 %v4354, %v4445
        %v4515 = vadd.f32 %v4355, %v4447
        %v4516 = vadd.f32 %v4356, %v4449
        %v4517 = vadd.f32 %v4357, %v4451
        %v4518 = vadd.f32 %v4358, %v4453
        %v4519 = vadd.f32 %v4359, %v4455
        %vm4520 = vcmask 523520
        %4521 = vst.msk [vmem:[#allocation3] sm:$0xff] %vm4520, %v4488
        %4522 = vst.msk [vmem:[#allocation3 + $0x8] sm:$0xff] %vm4520, %v4489
        %4523 = vst.msk [vmem:[#allocation3 + $0x10] sm:$0xff] %vm4520, %v4490
        %4524 = vst.msk [vmem:[#allocation3 + $0x18] sm:$0xff] %vm4520, %v4491
        %4525 = vst.msk [vmem:[#allocation3 + $0x20] sm:$0xff] %vm4520, %v4492
        %4526 = vst.msk [vmem:[#allocation3 + $0x28] sm:$0xff] %vm4520, %v4493
        %4527 = vst.msk [vmem:[#allocation3 + $0x30] sm:$0xff] %vm4520, %v4494
        %4528 = vst.msk [vmem:[#allocation3 + $0x38] sm:$0xff] %vm4520, %v4495
        %4529 = vst.msk [vmem:[#allocation3 + $0x40] sm:$0xff] %vm4520, %v4496
        %4530 = vst.msk [vmem:[#allocation3 + $0x48] sm:$0xff] %vm4520, %v4497
        %4531 = vst.msk [vmem:[#allocation3 + $0x50] sm:$0xff] %vm4520, %v4498
        %4532 = vst.msk [vmem:[#allocation3 + $0x58] sm:$0xff] %vm4520, %v4499
        %4533 = vst.msk [vmem:[#allocation3 + $0x60] sm:$0xff] %vm4520, %v4500
        %4534 = vst.msk [vmem:[#allocation3 + $0x68] sm:$0xff] %vm4520, %v4501
        %4535 = vst.msk [vmem:[#allocation3 + $0x70] sm:$0xff] %vm4520, %v4502
        %4536 = vst.msk [vmem:[#allocation3 + $0x78] sm:$0xff] %vm4520, %v4503
        %4537 = vst.msk [vmem:[#allocation3 + $0x80] sm:$0xff] %vm4520, %v4504
        %4538 = vst.msk [vmem:[#allocation3 + $0x88] sm:$0xff] %vm4520, %v4505
        %4539 = vst.msk [vmem:[#allocation3 + $0x90] sm:$0xff] %vm4520, %v4506
        %4540 = vst.msk [vmem:[#allocation3 + $0x98] sm:$0xff] %vm4520, %v4507
        %4541 = vst.msk [vmem:[#allocation3 + $0xa0] sm:$0xff] %vm4520, %v4508
        %4542 = vst.msk [vmem:[#allocation3 + $0xa8] sm:$0xff] %vm4520, %v4509
        %4543 = vst.msk [vmem:[#allocation3 + $0xb0] sm:$0xff] %vm4520, %v4510
        %4544 = vst.msk [vmem:[#allocation3 + $0xb8] sm:$0xff] %vm4520, %v4511
        %4545 = vst.msk [vmem:[#allocation3 + $0xc0] sm:$0xff] %vm4520, %v4512
        %4546 = vst.msk [vmem:[#allocation3 + $0xc8] sm:$0xff] %vm4520, %v4513
        %4547 = vst.msk [vmem:[#allocation3 + $0xd0] sm:$0xff] %vm4520, %v4514
        %4548 = vst.msk [vmem:[#allocation3 + $0xd8] sm:$0xff] %vm4520, %v4515
        %4549 = vst.msk [vmem:[#allocation3 + $0xe0] sm:$0xff] %vm4520, %v4516
        %4550 = vst.msk [vmem:[#allocation3 + $0xe8] sm:$0xff] %vm4520, %v4517
        %4551 = vst.msk [vmem:[#allocation3 + $0xf0] sm:$0xff] %vm4520, %v4518
        %4552 = vst.msk [vmem:[#allocation3 + $0xf8] sm:$0xff] %vm4520, %v4519
        // Predicated region
        $region53: #{tpu_custom_call.1} parent=39 // pred_check
          %p4553 = pneg %p272
        $region54: #{tpu_custom_call.1} parent=39 // pred_check_branch
          %4555 = sbr.rel (%p4553) target = $region56
        $region55: #{tpu_custom_call.1} parent=39 // pred_region
          %v4556 = vld [vmem:[%s4] sm:$0x3]
          %v4557 = vld [vmem:[#allocation3] sm:$0xff]
          %v4558 = vld [vmem:[#allocation3 + $0x8] sm:$0xff]
          %v4559 = vld [vmem:[#allocation3 + $0x10] sm:$0xff]
          %v4560 = vld [vmem:[#allocation3 + $0x18] sm:$0xff]
          %v4561 = vld [vmem:[#allocation3 + $0x20] sm:$0xff]
          %v4562 = vld [vmem:[#allocation3 + $0x28] sm:$0xff]
          %v4563 = vld [vmem:[#allocation3 + $0x30] sm:$0xff]
          %v4564 = vld [vmem:[#allocation3 + $0x38] sm:$0xff]
          %v4565 = vld [vmem:[#allocation3 + $0x40] sm:$0xff]
          %v4566 = vld [vmem:[#allocation3 + $0x48] sm:$0xff]
          %v4567 = vld [vmem:[#allocation3 + $0x50] sm:$0xff]
          %v4568 = vld [vmem:[#allocation3 + $0x58] sm:$0xff]
          %v4569 = vld [vmem:[#allocation3 + $0x60] sm:$0xff]
          %v4570 = vld [vmem:[#allocation3 + $0x68] sm:$0xff]
          %v4571 = vld [vmem:[#allocation3 + $0x70] sm:$0xff]
          %v4572 = vld [vmem:[#allocation3 + $0x78] sm:$0xff]
          %v4573 = vld [vmem:[#allocation3 + $0x80] sm:$0xff]
          %v4574 = vld [vmem:[#allocation3 + $0x88] sm:$0xff]
          %v4575 = vld [vmem:[#allocation3 + $0x90] sm:$0xff]
          %v4576 = vld [vmem:[#allocation3 + $0x98] sm:$0xff]
          %v4577 = vld [vmem:[#allocation3 + $0xa0] sm:$0xff]
          %v4578 = vld [vmem:[#allocation3 + $0xa8] sm:$0xff]
          %v4579 = vld [vmem:[#allocation3 + $0xb0] sm:$0xff]
          %v4580 = vld [vmem:[#allocation3 + $0xb8] sm:$0xff]
          %v4581 = vld [vmem:[#allocation3 + $0xc0] sm:$0xff]
          %v4582 = vld [vmem:[#allocation3 + $0xc8] sm:$0xff]
          %v4583 = vld [vmem:[#allocation3 + $0xd0] sm:$0xff]
          %v4584 = vld [vmem:[#allocation3 + $0xd8] sm:$0xff]
          %v4585 = vld [vmem:[#allocation3 + $0xe0] sm:$0xff]
          %v4586 = vld [vmem:[#allocation3 + $0xe8] sm:$0xff]
          %v4587 = vld [vmem:[#allocation3 + $0xf0] sm:$0xff]
          %v4588 = vld [vmem:[#allocation3 + $0xf8] sm:$0xff]
          %v4589 = vlaneseq
          %v4590 = vshrl.u32 %v4589, 7
          %v4591 = vsub.s32 0, %v4590
          %v4592 = vrot.slane %v4556, %v4591
          %v4593 = vmul.f32 %v4557, %v4592
          %v4594 = vmul.f32 %v4558, %v4592
          %v4595 = vmul.f32 %v4559, %v4592
          %v4596 = vmul.f32 %v4560, %v4592
          %v4597 = vmul.f32 %v4561, %v4592
          %v4598 = vmul.f32 %v4562, %v4592
          %v4599 = vmul.f32 %v4563, %v4592
          %v4600 = vmul.f32 %v4564, %v4592
          %v4601 = vmul.f32 %v4565, %v4592
          %v4602 = vmul.f32 %v4566, %v4592
          %v4603 = vmul.f32 %v4567, %v4592
          %v4604 = vmul.f32 %v4568, %v4592
          %v4605 = vmul.f32 %v4569, %v4592
          %v4606 = vmul.f32 %v4570, %v4592
          %v4607 = vmul.f32 %v4571, %v4592
          %v4608 = vmul.f32 %v4572, %v4592
          %v4609 = vmul.f32 %v4573, %v4592
          %v4610 = vmul.f32 %v4574, %v4592
          %v4611 = vmul.f32 %v4575, %v4592
          %v4612 = vmul.f32 %v4576, %v4592
          %v4613 = vmul.f32 %v4577, %v4592
          %v4614 = vmul.f32 %v4578, %v4592
          %v4615 = vmul.f32 %v4579, %v4592
          %v4616 = vmul.f32 %v4580, %v4592
          %v4617 = vmul.f32 %v4581, %v4592
          %v4618 = vmul.f32 %v4582, %v4592
          %v4619 = vmul.f32 %v4583, %v4592
          %v4620 = vmul.f32 %v4584, %v4592
          %v4621 = vmul.f32 %v4585, %v4592
          %v4622 = vmul.f32 %v4586, %v4592
          %v4623 = vmul.f32 %v4587, %v4592
          %v4624 = vmul.f32 %v4588, %v4592
          %v4625 = vlaneseq
          %v4626 = vshrl.u32 %v4625, 7
          %v4627 = vsub.s32 1, %v4626
          %v4628 = vrot.slane %v4556, %v4627
          %v4629 = vadd.f32 %v4593, %v4628
          %v4630 = vadd.f32 %v4594, %v4628
          %v4631 = vadd.f32 %v4595, %v4628
          %v4632 = vadd.f32 %v4596, %v4628
          %v4633 = vadd.f32 %v4597, %v4628
          %v4634 = vadd.f32 %v4598, %v4628
          %v4635 = vadd.f32 %v4599, %v4628
          %v4636 = vadd.f32 %v4600, %v4628
          %v4637 = vadd.f32 %v4601, %v4628
          %v4638 = vadd.f32 %v4602, %v4628
          %v4639 = vadd.f32 %v4603, %v4628
          %v4640 = vadd.f32 %v4604, %v4628
          %v4641 = vadd.f32 %v4605, %v4628
          %v4642 = vadd.f32 %v4606, %v4628
          %v4643 = vadd.f32 %v4607, %v4628
          %v4644 = vadd.f32 %v4608, %v4628
          %v4645 = vadd.f32 %v4609, %v4628
          %v4646 = vadd.f32 %v4610, %v4628
          %v4647 = vadd.f32 %v4611, %v4628
          %v4648 = vadd.f32 %v4612, %v4628
          %v4649 = vadd.f32 %v4613, %v4628
          %v4650 = vadd.f32 %v4614, %v4628
          %v4651 = vadd.f32 %v4615, %v4628
          %v4652 = vadd.f32 %v4616, %v4628
          %v4653 = vadd.f32 %v4617, %v4628
          %v4654 = vadd.f32 %v4618, %v4628
          %v4655 = vadd.f32 %v4619, %v4628
          %v4656 = vadd.f32 %v4620, %v4628
          %v4657 = vadd.f32 %v4621, %v4628
          %v4658 = vadd.f32 %v4622, %v4628
          %v4659 = vadd.f32 %v4623, %v4628
          %v4660 = vadd.f32 %v4624, %v4628
          %v4661 = vmax.f32 %v4629, 0.0
          %v4662 = vmax.f32 %v4630, 0.0
          %v4663 = vmax.f32 %v4631, 0.0
          %v4664 = vmax.f32 %v4632, 0.0
          %v4665 = vmax.f32 %v4633, 0.0
          %v4666 = vmax.f32 %v4634, 0.0
          %v4667 = vmax.f32 %v4635, 0.0
          %v4668 = vmax.f32 %v4636, 0.0
          %v4669 = vmax.f32 %v4637, 0.0
          %v4670 = vmax.f32 %v4638, 0.0
          %v4671 = vmax.f32 %v4639, 0.0
          %v4672 = vmax.f32 %v4640, 0.0
          %v4673 = vmax.f32 %v4641, 0.0
          %v4674 = vmax.f32 %v4642, 0.0
          %v4675 = vmax.f32 %v4643, 0.0
          %v4676 = vmax.f32 %v4644, 0.0
          %v4677 = vmax.f32 %v4645, 0.0
          %v4678 = vmax.f32 %v4646, 0.0
          %v4679 = vmax.f32 %v4647, 0.0
          %v4680 = vmax.f32 %v4648, 0.0
          %v4681 = vmax.f32 %v4649, 0.0
          %v4682 = vmax.f32 %v4650, 0.0
          %v4683 = vmax.f32 %v4651, 0.0
          %v4684 = vmax.f32 %v4652, 0.0
          %v4685 = vmax.f32 %v4653, 0.0
          %v4686 = vmax.f32 %v4654, 0.0
          %v4687 = vmax.f32 %v4655, 0.0
          %v4688 = vmax.f32 %v4656, 0.0
          %v4689 = vmax.f32 %v4657, 0.0
          %v4690 = vmax.f32 %v4658, 0.0
          %v4691 = vmax.f32 %v4659, 0.0
          %v4692 = vmax.f32 %v4660, 0.0
          %4725 = vrot.lane.b32.xlu0 %v4661, 32
          %v4726 = vpop.permute.xlu0 %4725
          %4727 = vrot.lane.b32.xlu0 %v4662, 32
          %v4728 = vpop.permute.xlu0 %4727
          %4729 = vrot.lane.b32.xlu0 %v4663, 32
          %v4730 = vpop.permute.xlu0 %4729
          %4731 = vrot.lane.b32.xlu0 %v4664, 32
          %v4732 = vpop.permute.xlu0 %4731
          %4733 = vrot.lane.b32.xlu0 %v4665, 32
          %v4734 = vpop.permute.xlu0 %4733
          %4735 = vrot.lane.b32.xlu0 %v4666, 32
          %v4736 = vpop.permute.xlu0 %4735
          %4737 = vrot.lane.b32.xlu0 %v4667, 32
          %v4738 = vpop.permute.xlu0 %4737
          %4739 = vrot.lane.b32.xlu0 %v4668, 32
          %v4740 = vpop.permute.xlu0 %4739
          %4741 = vrot.lane.b32.xlu0 %v4669, 32
          %v4742 = vpop.permute.xlu0 %4741
          %4743 = vrot.lane.b32.xlu0 %v4670, 32
          %v4744 = vpop.permute.xlu0 %4743
          %4745 = vrot.lane.b32.xlu0 %v4671, 32
          %v4746 = vpop.permute.xlu0 %4745
          %4747 = vrot.lane.b32.xlu0 %v4672, 32
          %v4748 = vpop.permute.xlu0 %4747
          %4749 = vrot.lane.b32.xlu0 %v4673, 32
          %v4750 = vpop.permute.xlu0 %4749
          %4751 = vrot.lane.b32.xlu0 %v4674, 32
          %v4752 = vpop.permute.xlu0 %4751
          %4753 = vrot.lane.b32.xlu0 %v4675, 32
          %v4754 = vpop.permute.xlu0 %4753
          %4755 = vrot.lane.b32.xlu0 %v4676, 32
          %v4756 = vpop.permute.xlu0 %4755
          %4757 = vrot.lane.b32.xlu0 %v4677, 32
          %v4758 = vpop.permute.xlu0 %4757
          %4759 = vrot.lane.b32.xlu0 %v4678, 32
          %v4760 = vpop.permute.xlu0 %4759
          %4761 = vrot.lane.b32.xlu0 %v4679, 32
          %v4762 = vpop.permute.xlu0 %4761
          %4763 = vrot.lane.b32.xlu0 %v4680, 32
          %v4764 = vpop.permute.xlu0 %4763
          %4765 = vrot.lane.b32.xlu0 %v4681, 32
          %v4766 = vpop.permute.xlu0 %4765
          %4767 = vrot.lane.b32.xlu0 %v4682, 32
          %v4768 = vpop.permute.xlu0 %4767
          %4769 = vrot.lane.b32.xlu0 %v4683, 32
          %v4770 = vpop.permute.xlu0 %4769
          %4771 = vrot.lane.b32.xlu0 %v4684, 32
          %v4772 = vpop.permute.xlu0 %4771
          %4773 = vrot.lane.b32.xlu0 %v4685, 32
          %v4774 = vpop.permute.xlu0 %4773
          %4775 = vrot.lane.b32.xlu0 %v4686, 32
          %v4776 = vpop.permute.xlu0 %4775
          %4777 = vrot.lane.b32.xlu0 %v4687, 32
          %v4778 = vpop.permute.xlu0 %4777
          %4779 = vrot.lane.b32.xlu0 %v4688, 32
          %v4780 = vpop.permute.xlu0 %4779
          %4781 = vrot.lane.b32.xlu0 %v4689, 32
          %v4782 = vpop.permute.xlu0 %4781
          %4783 = vrot.lane.b32.xlu0 %v4690, 32
          %v4784 = vpop.permute.xlu0 %4783
          %4785 = vrot.lane.b32.xlu0 %v4691, 32
          %v4786 = vpop.permute.xlu0 %4785
          %4787 = vrot.lane.b32.xlu0 %v4692, 32
          %v4788 = vpop.permute.xlu0 %4787
          %vm4821 = vcmask 1047808
          %4822 = vst.msk [vmem:[%s257] sm:$0xff] %vm4821, %v4726
          %vm4823 = vcmask 261120
          %4824 = vst.msk [vmem:[%s257 + $0x8] sm:$0xff] %vm4823, %v4726
          %4825 = vst.msk [vmem:[%s257 + $0x10] sm:$0xff] %vm4821, %v4728
          %4826 = vst.msk [vmem:[%s257 + $0x18] sm:$0xff] %vm4823, %v4728
          %4827 = vst.msk [vmem:[%s257 + $0x20] sm:$0xff] %vm4821, %v4730
          %4828 = vst.msk [vmem:[%s257 + $0x28] sm:$0xff] %vm4823, %v4730
          %4829 = vst.msk [vmem:[%s257 + $0x30] sm:$0xff] %vm4821, %v4732
          %4830 = vst.msk [vmem:[%s257 + $0x38] sm:$0xff] %vm4823, %v4732
          %4831 = vst.msk [vmem:[%s257 + $0x40] sm:$0xff] %vm4821, %v4734
          %4832 = vst.msk [vmem:[%s257 + $0x48] sm:$0xff] %vm4823, %v4734
          %4833 = vst.msk [vmem:[%s257 + $0x50] sm:$0xff] %vm4821, %v4736
          %4834 = vst.msk [vmem:[%s257 + $0x58] sm:$0xff] %vm4823, %v4736
          %4835 = vst.msk [vmem:[%s257 + $0x60] sm:$0xff] %vm4821, %v4738
          %4836 = vst.msk [vmem:[%s257 + $0x68] sm:$0xff] %vm4823, %v4738
          %4837 = vst.msk [vmem:[%s257 + $0x70] sm:$0xff] %vm4821, %v4740
          %4838 = vst.msk [vmem:[%s257 + $0x78] sm:$0xff] %vm4823, %v4740
          %4839 = vst.msk [vmem:[%s257 + $0x80] sm:$0xff] %vm4821, %v4742
          %4840 = vst.msk [vmem:[%s257 + $0x88] sm:$0xff] %vm4823, %v4742
          %4841 = vst.msk [vmem:[%s257 + $0x90] sm:$0xff] %vm4821, %v4744
          %4842 = vst.msk [vmem:[%s257 + $0x98] sm:$0xff] %vm4823, %v4744
          %4843 = vst.msk [vmem:[%s257 + $0xa0] sm:$0xff] %vm4821, %v4746
          %4844 = vst.msk [vmem:[%s257 + $0xa8] sm:$0xff] %vm4823, %v4746
          %4845 = vst.msk [vmem:[%s257 + $0xb0] sm:$0xff] %vm4821, %v4748
          %4846 = vst.msk [vmem:[%s257 + $0xb8] sm:$0xff] %vm4823, %v4748
          %4847 = vst.msk [vmem:[%s257 + $0xc0] sm:$0xff] %vm4821, %v4750
          %4848 = vst.msk [vmem:[%s257 + $0xc8] sm:$0xff] %vm4823, %v4750
          %4849 = vst.msk [vmem:[%s257 + $0xd0] sm:$0xff] %vm4821, %v4752
          %4850 = vst.msk [vmem:[%s257 + $0xd8] sm:$0xff] %vm4823, %v4752
          %4851 = vst.msk [vmem:[%s257 + $0xe0] sm:$0xff] %vm4821, %v4754
          %4852 = vst.msk [vmem:[%s257 + $0xe8] sm:$0xff] %vm4823, %v4754
          %4853 = vst.msk [vmem:[%s257 + $0xf0] sm:$0xff] %vm4821, %v4756
          %4854 = vst.msk [vmem:[%s257 + $0xf8] sm:$0xff] %vm4823, %v4756
          %4855 = vst.msk [vmem:[%s257 + $0x100] sm:$0xff] %vm4821, %v4758
          %4856 = vst.msk [vmem:[%s257 + $0x108] sm:$0xff] %vm4823, %v4758
          %4857 = vst.msk [vmem:[%s257 + $0x110] sm:$0xff] %vm4821, %v4760
          %4858 = vst.msk [vmem:[%s257 + $0x118] sm:$0xff] %vm4823, %v4760
          %4859 = vst.msk [vmem:[%s257 + $0x120] sm:$0xff] %vm4821, %v4762
          %4860 = vst.msk [vmem:[%s257 + $0x128] sm:$0xff] %vm4823, %v4762
          %4861 = vst.msk [vmem:[%s257 + $0x130] sm:$0xff] %vm4821, %v4764
          %4862 = vst.msk [vmem:[%s257 + $0x138] sm:$0xff] %vm4823, %v4764
          %4863 = vst.msk [vmem:[%s257 + $0x140] sm:$0xff] %vm4821, %v4766
          %4864 = vst.msk [vmem:[%s257 + $0x148] sm:$0xff] %vm4823, %v4766
          %4865 = vst.msk [vmem:[%s257 + $0x150] sm:$0xff] %vm4821, %v4768
          %4866 = vst.msk [vmem:[%s257 + $0x158] sm:$0xff] %vm4823, %v4768
          %4867 = vst.msk [vmem:[%s257 + $0x160] sm:$0xff] %vm4821, %v4770
          %4868 = vst.msk [vmem:[%s257 + $0x168] sm:$0xff] %vm4823, %v4770
          %4869 = vst.msk [vmem:[%s257 + $0x170] sm:$0xff] %vm4821, %v4772
          %4870 = vst.msk [vmem:[%s257 + $0x178] sm:$0xff] %vm4823, %v4772
          %4871 = vst.msk [vmem:[%s257 + $0x180] sm:$0xff] %vm4821, %v4774
          %4872 = vst.msk [vmem:[%s257 + $0x188] sm:$0xff] %vm4823, %v4774
          %4873 = vst.msk [vmem:[%s257 + $0x190] sm:$0xff] %vm4821, %v4776
          %4874 = vst.msk [vmem:[%s257 + $0x198] sm:$0xff] %vm4823, %v4776
          %4875 = vst.msk [vmem:[%s257 + $0x1a0] sm:$0xff] %vm4821, %v4778
          %4876 = vst.msk [vmem:[%s257 + $0x1a8] sm:$0xff] %vm4823, %v4778
          %4877 = vst.msk [vmem:[%s257 + $0x1b0] sm:$0xff] %vm4821, %v4780
          %4878 = vst.msk [vmem:[%s257 + $0x1b8] sm:$0xff] %vm4823, %v4780
          %4879 = vst.msk [vmem:[%s257 + $0x1c0] sm:$0xff] %vm4821, %v4782
          %4880 = vst.msk [vmem:[%s257 + $0x1c8] sm:$0xff] %vm4823, %v4782
          %4881 = vst.msk [vmem:[%s257 + $0x1d0] sm:$0xff] %vm4821, %v4784
          %4882 = vst.msk [vmem:[%s257 + $0x1d8] sm:$0xff] %vm4823, %v4784
          %4883 = vst.msk [vmem:[%s257 + $0x1e0] sm:$0xff] %vm4821, %v4786
          %4884 = vst.msk [vmem:[%s257 + $0x1e8] sm:$0xff] %vm4823, %v4786
          %4885 = vst.msk [vmem:[%s257 + $0x1f0] sm:$0xff] %vm4821, %v4788
          %4886 = vst.msk [vmem:[%s257 + $0x1f8] sm:$0xff] %vm4823, %v4788
          %v4887 = vld [vmem:[%s268] sm:$0x1]
          %v4889 = vlaneseq
          %v4890 = vshrl.u32 %v4889, 7
          %v4891 = vsub.s32 0, %v4890
          %v4892 = vrot.slane %v4887, %v4891
          %4894 = vst.msk [vmem:[%s257] sm:$0xff] %vm4823, %v4892
          %4895 = vst.msk [vmem:[%s257 + $0x10] sm:$0xff] %vm4823, %v4892
          %4896 = vst.msk [vmem:[%s257 + $0x20] sm:$0xff] %vm4823, %v4892
          %4897 = vst.msk [vmem:[%s257 + $0x30] sm:$0xff] %vm4823, %v4892
          %4898 = vst.msk [vmem:[%s257 + $0x40] sm:$0xff] %vm4823, %v4892
          %4899 = vst.msk [vmem:[%s257 + $0x50] sm:$0xff] %vm4823, %v4892
          %4900 = vst.msk [vmem:[%s257 + $0x60] sm:$0xff] %vm4823, %v4892
          %4901 = vst.msk [vmem:[%s257 + $0x70] sm:$0xff] %vm4823, %v4892
          %4902 = vst.msk [vmem:[%s257 + $0x80] sm:$0xff] %vm4823, %v4892
          %4903 = vst.msk [vmem:[%s257 + $0x90] sm:$0xff] %vm4823, %v4892
          %4904 = vst.msk [vmem:[%s257 + $0xa0] sm:$0xff] %vm4823, %v4892
          %4905 = vst.msk [vmem:[%s257 + $0xb0] sm:$0xff] %vm4823, %v4892
          %4906 = vst.msk [vmem:[%s257 + $0xc0] sm:$0xff] %vm4823, %v4892
          %4907 = vst.msk [vmem:[%s257 + $0xd0] sm:$0xff] %vm4823, %v4892
          %4908 = vst.msk [vmem:[%s257 + $0xe0] sm:$0xff] %vm4823, %v4892
          %4909 = vst.msk [vmem:[%s257 + $0xf0] sm:$0xff] %vm4823, %v4892
          %4910 = vst.msk [vmem:[%s257 + $0x100] sm:$0xff] %vm4823, %v4892
          %4911 = vst.msk [vmem:[%s257 + $0x110] sm:$0xff] %vm4823, %v4892
          %4912 = vst.msk [vmem:[%s257 + $0x120] sm:$0xff] %vm4823, %v4892
          %4913 = vst.msk [vmem:[%s257 + $0x130] sm:$0xff] %vm4823, %v4892
          %4914 = vst.msk [vmem:[%s257 + $0x140] sm:$0xff] %vm4823, %v4892
          %4915 = vst.msk [vmem:[%s257 + $0x150] sm:$0xff] %vm4823, %v4892
          %4916 = vst.msk [vmem:[%s257 + $0x160] sm:$0xff] %vm4823, %v4892
          %4917 = vst.msk [vmem:[%s257 + $0x170] sm:$0xff] %vm4823, %v4892
          %4918 = vst.msk [vmem:[%s257 + $0x180] sm:$0xff] %vm4823, %v4892
          %4919 = vst.msk [vmem:[%s257 + $0x190] sm:$0xff] %vm4823, %v4892
          %4920 = vst.msk [vmem:[%s257 + $0x1a0] sm:$0xff] %vm4823, %v4892
          %4921 = vst.msk [vmem:[%s257 + $0x1b0] sm:$0xff] %vm4823, %v4892
          %4922 = vst.msk [vmem:[%s257 + $0x1c0] sm:$0xff] %vm4823, %v4892
          %4923 = vst.msk [vmem:[%s257 + $0x1d0] sm:$0xff] %vm4823, %v4892
          %4924 = vst.msk [vmem:[%s257 + $0x1e0] sm:$0xff] %vm4823, %v4892
          %4925 = vst.msk [vmem:[%s257 + $0x1f0] sm:$0xff] %vm4823, %v4892
        $region56: #{tpu_custom_call.1} parent=39 // pred_fallthru
          _
        %s4926 = sand.u32 %s165, 1
        %s4927 = scalar_lea.sflag [#allocation5], %s4926
        %s4928 = sand.u32 %s165, 1
        %s4929 = smul.addr %s4928, 512
        %s4930 = scalar_lea.vmem [#allocation4], %s4929
        // Predicated region
        $region57: #{tpu_custom_call.1} parent=39 // pred_check
          %p4931 = pneg %p175
        $region58: #{tpu_custom_call.1} parent=39 // pred_check_branch
          %4933 = sbr.rel (%p4931) target = $region60
        $region59: #{tpu_custom_call.1} parent=39 // pred_region
          %s4934 = smul.u32 16, %s25
          %s4936 = ssub.s32 8192, 8192
          %4937 = vsyncadd %s4927, %s4936
          %s4938 = smul.addr %s4934, 4
          %s4939 = smul.addr %s24, 64
          %s4940 = sadd.s32 %s4938, %s4939
          %s4941 = smul.addr %s4940, 128
          %s4942 = scalar_lea.hbm %s5, %s4941
          %s4943 = sshll.u32 %s4930, 4
          %s4944 = int_to_ptr.vmem [resolvable:$true] %s4943
          %4949 = dma.vmem_to_hbm [thread:$0]  %s4944, 8192, %s4942, %s4927, 256, 256, 16
        $region60: #{tpu_custom_call.1} parent=39 // pred_fallthru
          _
      $region40: #{tpu_custom_call.1} parent=5 // pred_fallthru
        _
      %p4950 = scmp.le.s32.totalorder 2, %s14
      // Predicated region
      $region61: #{tpu_custom_call.1} parent=5 // pred_check
        %p4951 = pneg %p4950
      $region62: #{tpu_custom_call.1} parent=5 // pred_check_branch
        %4953 = sbr.rel (%p4951) target = $region64
      $region63: #{tpu_custom_call.1} parent=5 // pred_region
        %s4954 = ssub.s32 %s14, 2
        // Predicated region
        $region65: #{tpu_custom_call.1} parent=63 // pred_check
          %p4955 = pneg %p181
        $region66: #{tpu_custom_call.1} parent=63 // pred_check_branch
          %4957 = sbr.rel (%p4955) target = $region68
        $region67: #{tpu_custom_call.1} parent=63 // pred_region
          %s4958 = sand.u32 %s166, 1
          %s4959 = scalar_lea.sflag [#allocation5], %s4958
          %s4960 = sand.u32 %s166, 1
          %s4961 = smul.addr %s4960, 512
          %s4962 = scalar_lea.vmem [#allocation4], %s4961
          %4963 = dma.done %s4959, 8192
        $region68: #{tpu_custom_call.1} parent=63 // pred_fallthru
          _
      $region64: #{tpu_custom_call.1} parent=5 // pred_fallthru
        _
    $region6: #{tpu_custom_call.1} parent=1 // loop_footer
      %s18 = sadd.s32 1, %s14
    $region7: #{tpu_custom_call.1} parent=1 // loop_footer_branch
      %13 = sbr.rel target = $region3
    $region8: #{tpu_custom_call.1} parent=1 // loop_exit
      _
    %4964 = vsyncpa [#allocation5], 1
    %s4965 = scalar_lea.sflag [#allocation5], 1
    %4966 = vsyncpa %s4965, 1

</llo_original>
